<compile_context>
chip_gen: v7x
topology: tpu7x:2x2x1
jax: 0.10.0
libtpu: 0.0.40
codegen_flags: <defaults>
</compile_context>

<pallas_src>
import functools

import jax
import jax.numpy as jnp
from jax import lax
from jax.experimental import pallas as pl
from jax.experimental.pallas import tpu as pltpu


def _round_up(x, m):
    return ((x + m - 1) // m) * m


def _pick_t_tile(seq_len, b_pad, h_pad, requested):
    """Cap the time tile so the per-call VMEM estimate stays within a conservative budget
    that also fits v7x (64 MiB physical) and v5e's small default scoped VMEM limit."""
    budget = 24 * 1024 * 1024
    t = max(1, min(requested, seq_len))
    fixed = 2 * (h_pad * 4 * h_pad * 2) + 6 * b_pad * h_pad * 4       # weights + h/c state
    per_t = b_pad * (2 * 4 * h_pad * 2      # gx input tile, bf16, double-buffered
                     + 2 * 4 * h_pad * 2    # fused gx_next output tile, bf16, double-buffered
                     + h_pad * 4)           # y scratch tile, f32
    while t > 1 and fixed + t * per_t > budget:
        t = max(1, t // 2)
    return t


def _lstm_recurrent_kernel(*refs, hidden_pad, t_tile, seq_len, needs_mask,
                           fuse_next, unroll):
    """Recurrent part of one LSTM layer over a tile of `t_tile` time steps.

    Inputs (all padded to (8,128) granularity, gate order (i, f, o, g)):
      gx_ref : (t_tile, B_pad, 4*H_pad) bf16  precomputed x @ W_ih^T + (b_ih + b_hh)
      whh_ref: (H_pad, 4*H_pad)         bf16  recurrent weights, transposed
      h0/c0  : (B_pad, H_pad)           f32   initial state
      [fused] wih_n_ref: (H_pad, 4*H_pad) bf16, bias_n_ref: (1, 4*H_pad) f32
    Outputs:
      out_ref: final layer  -> (t_tile, B_pad, H_pad) f32  per-step hidden output
               fused layer  -> (t_tile, B_pad, 4*H_pad) bf16 next layer's gates_x
      hN/cN  : (B_pad, H_pad) f32 final state (written on last tile only)
    """
    if fuse_next:
        (gx_ref, whh_ref, h0_ref, c0_ref, wih_n_ref, bias_n_ref,
         out_ref, hN_ref, cN_ref, h_sc, c_sc, y_sc) = refs
    else:
        (gx_ref, whh_ref, h0_ref, c0_ref,
         out_ref, hN_ref, cN_ref, h_sc, c_sc) = refs

    ti = pl.program_id(0)
    H = hidden_pad

    # Load initial state once, on the first time tile.
    @pl.when(ti == 0)
    def _():
        h_sc[...] = h0_ref[...]
        c_sc[...] = c0_ref[...]

    whh = whh_ref[...]                      # (H_pad, 4*H_pad) bf16, resident for the tile

    def step(j, carry):
        h_prev, c_prev = carry              # f32 (B_pad, H_pad)
        # Recurrent projection on the MXU: bf16 operands, f32 accumulation.
        gates = gx_ref[j].astype(jnp.float32) + jnp.dot(
            h_prev.astype(jnp.bfloat16), whh, preferred_element_type=jnp.float32)
        # Gate layout (i, f, o | g): one wide sigmoid stream + one tanh stream.
        # sigmoid(x) == 0.5*(tanh(0.5*x)+1)  (single EUP op per stream).
        sig = 0.5 * (jnp.tanh(0.5 * gates[:, 0:3 * H]) + 1.0)
        g_g = jnp.tanh(gates[:, 3 * H:4 * H])
        i_g = sig[:, 0 * H:1 * H]
        f_g = sig[:, 1 * H:2 * H]
        o_g = sig[:, 2 * H:3 * H]
        c_new = f_g * c_prev + i_g * g_g
        h_new = o_g * jnp.tanh(c_new)
        if needs_mask:  # only emitted when seq_len % t_tile != 0
            valid = (ti * t_tile + j) < seq_len
            h_new = jnp.where(valid, h_new, h_prev)
            c_new = jnp.where(valid, c_new, c_prev)
        if fuse_next:
            y_sc[j] = h_new                       # f32 tile buffer (reshape-friendly)
        else:
            out_ref[j] = h_new.astype(out_ref.dtype)
        return h_new, c_new

    h_fin, c_fin = lax.fori_loop(0, t_tile, step, (h_sc[...], c_sc[...]),
                                 unroll=max(1, min(unroll, t_tile)))
    h_sc[...] = h_fin
    c_sc[...] = c_fin

    if fuse_next:
        # Fused next-layer input projection: t_tile*B_pad rows through the MXU at once
        # instead of an HBM round-trip of y and a separate XLA einsum.
        T, B, _ = y_sc.shape
        Gn = out_ref.shape[2]
        y_flat = y_sc[...].reshape(T * B, H).astype(jnp.bfloat16)   # reshape on f32, then cast
        gx_nxt = jnp.dot(y_flat, wih_n_ref[...],
                         preferred_element_type=jnp.float32) + bias_n_ref[...]
        out_ref[...] = gx_nxt.reshape(T, B, Gn).astype(out_ref.dtype)

    # Final-state outputs: single store on the last grid step only.
    @pl.when(ti == pl.num_programs(0) - 1)
    def _():
        hN_ref[...] = h_fin
        cN_ref[...] = c_fin


def _pack_layer_weights(w_ih, w_hh, b_ih, b_hh, *, d_in_pad, h_pad):
    """Repack into padded, (i, f, o, g)-ordered, transposed bf16 layout.

    Zero padding (rows AND columns) guarantees padded hidden lanes stay exactly 0
    through the recurrence, so results are independent of the padding.
    """
    f32 = jnp.float32
    four_h, d_in = w_ih.shape
    H = four_h // 4
    perm = jnp.array([0, 1, 3, 2])          # PyTorch (i, f, g, o) -> (i, f, o, g)
    wih_r = w_ih.reshape(4, H, d_in)[perm]
    whh_r = w_hh.reshape(4, H, H)[perm]
    bias_r = (b_ih + b_hh).reshape(4, H)[perm]

    wih_p = jnp.zeros((4, h_pad, d_in_pad), f32).at[:, :H, :d_in].set(wih_r)
    whh_p = jnp.zeros((4, h_pad, h_pad), f32).at[:, :H, :H].set(whh_r)
    bias_p = jnp.zeros((4, h_pad), f32).at[:, :H].set(bias_r)

    wih_t = wih_p.reshape(4 * h_pad, d_in_pad).T.astype(jnp.bfloat16)   # (d_in_pad, 4*h_pad)
    whh_t = whh_p.reshape(4 * h_pad, h_pad).T.astype(jnp.bfloat16)      # (h_pad, 4*h_pad)
    bias = bias_p.reshape(1, 4 * h_pad)                                  # f32
    return wih_t, whh_t, bias


def _lstm_layer_call(gx, whh_t, h0_p, c0_p, *, seq_len, t_tile, unroll,
                     wih_next_t=None, bias_next=None):
    """One recurrent layer over the full (padded) sequence of precomputed gates_x."""
    S_pad, B_pad, G = gx.shape
    H_pad = G // 4
    n_tiles = S_pad // t_tile
    fuse_next = wih_next_t is not None
    f32 = jnp.float32

    def const_spec(shape):
        # Grid-invariant operand: constant index map + single buffering (no re-DMA,
        # half the VMEM of the default double-buffered pipeline).
        return pl.BlockSpec(shape, lambda i: (0,) * len(shape),
                            pipeline_mode=pl.Buffered(1))

    in_specs = [
        pl.BlockSpec((t_tile, B_pad, G), lambda i: (i, 0, 0)),   # gates_x tile (bf16)
        const_spec((H_pad, G)),                                  # W_hh^T
        const_spec((B_pad, H_pad)),                              # h0
        const_spec((B_pad, H_pad)),                              # c0
    ]
    inputs = [gx, whh_t, h0_p, c0_p]
    scratch = [pltpu.VMEM((B_pad, H_pad), f32),    # h state (persists across tiles)
               pltpu.VMEM((B_pad, H_pad), f32)]    # c state

    if fuse_next:
        Gn = wih_next_t.shape[1]
        in_specs += [const_spec((H_pad, Gn)),      # next layer W_ih^T
                     const_spec((1, Gn))]          # next layer bias (b_ih + b_hh)
        inputs += [wih_next_t, bias_next]
        scratch += [pltpu.VMEM((t_tile, B_pad, H_pad), f32)]   # y tile buffer
        out0_shape = jax.ShapeDtypeStruct((S_pad, B_pad, Gn), jnp.bfloat16)
        out0_spec = pl.BlockSpec((t_tile, B_pad, Gn), lambda i: (i, 0, 0))
    else:
        out0_shape = jax.ShapeDtypeStruct((S_pad, B_pad, H_pad), f32)
        out0_spec = pl.BlockSpec((t_tile, B_pad, H_pad), lambda i: (i, 0, 0))

    kernel = functools.partial(
        _lstm_recurrent_kernel, hidden_pad=H_pad, t_tile=t_tile, seq_len=seq_len,
        needs_mask=(S_pad != seq_len), fuse_next=fuse_next, unroll=unroll)

    return pl.pallas_call(
        kernel,
        out_shape=(out0_shape,
                   jax.ShapeDtypeStruct((B_pad, H_pad), f32),
                   jax.ShapeDtypeStruct((B_pad, H_pad), f32)),
        grid_spec=pltpu.PrefetchScalarGridSpec(
            num_scalar_prefetch=0,
            grid=(n_tiles,),
            in_specs=in_specs,
            out_specs=[out0_spec,
                       pl.BlockSpec((B_pad, H_pad), lambda i: (0, 0)),   # h_n
                       pl.BlockSpec((B_pad, H_pad), lambda i: (0, 0))],  # c_n
            scratch_shapes=scratch),
        compiler_params=pltpu.CompilerParams(
            dimension_semantics=("arbitrary",),            # recurrent over time tiles
            vmem_limit_bytes=48 * 1024 * 1024),            # < v7x 64 MiB physical
    )(*inputs)


def lstm_enc_forward(x, params, h0, c0, *, t_tile=32, unroll=8):
    """Multi-layer LSTM encoder forward, mirroring LSTM_enc.forward.

    x: (S, B, input_dim); h0, c0: (num_layers, B, H)
    returns (lstm_out, (h_n, c_n))
    """
    S, B, D_in = x.shape
    num_layers = len(params)
    H = params[0][1].shape[1]
    f32 = jnp.float32

    B_pad = _round_up(B, 8)          # sublane granularity
    H_pad = _round_up(H, 128)        # lane granularity
    t_tile = _pick_t_tile(S, B_pad, H_pad, t_tile)
    n_tiles = pl.cdiv(S, t_tile)
    S_pad = n_tiles * t_tile

    packed = []
    for layer in range(num_layers):
        w_ih, w_hh, b_ih, b_hh = params[layer]
        d_in_pad = D_in if layer == 0 else H_pad
        packed.append(_pack_layer_weights(w_ih, w_hh, b_ih, b_hh,
                                          d_in_pad=d_in_pad, h_pad=H_pad))

    # Padded initial state (zeros in padded lanes keep padded hidden lanes exactly 0).
    h0_p = jnp.zeros((num_layers, B_pad, H_pad), f32).at[:, :B, :H].set(h0.astype(f32))
    c0_p = jnp.zeros((num_layers, B_pad, H_pad), f32).at[:, :B, :H].set(c0.astype(f32))

    # Layer-0 input projection: pad x FIRST so the einsum writes the padded buffer
    # directly (no post-hoc full-size copy); hand gates_x to the kernel in bf16.
    x_p = jnp.zeros((S_pad, B_pad, D_in), jnp.bfloat16).at[:S, :B, :].set(
        x.astype(jnp.bfloat16))
    wih0_t, _, bias0 = packed[0]
    gx = (jnp.einsum("sbd,dg->sbg", x_p, wih0_t, preferred_element_type=f32)
          + bias0).astype(jnp.bfloat16)                       # (S_pad, B_pad, 4*H_pad)

    h_list, c_list = [], []
    out = None
    for layer in range(num_layers):
        _, whh_t, _ = packed[layer]
        last = layer == num_layers - 1
        if last:
            out, h_n, c_n = _lstm_layer_call(
                gx, whh_t, h0_p[layer], c0_p[layer],
                seq_len=S, t_tile=t_tile, unroll=unroll)
        else:
            # Intermediate layer: emit the NEXT layer's gates_x directly (fused projection).
            wih_nxt_t, _, bias_nxt = packed[layer + 1]
            gx, h_n, c_n = _lstm_layer_call(
                gx, whh_t, h0_p[layer], c0_p[layer],
                seq_len=S, t_tile=t_tile, unroll=unroll,
                wih_next_t=wih_nxt_t, bias_next=bias_nxt)
        h_list.append(h_n[:B, :H])
        c_list.append(c_n[:B, :H])

    lstm_out = out[:S, :B, :H]
    return lstm_out, (jnp.stack(h_list, axis=0), jnp.stack(c_list, axis=0))


# ---------------- pure-JAX f32 reference (silent correctness check) ----------------
def _ref_lstm(x, params, h0, c0):
    num_layers = len(params)
    inp = x
    h_fin, c_fin = [], []
    for layer in range(num_layers):
        w_ih, w_hh, b_ih, b_hh = params[layer]
        H = w_hh.shape[1]
        h, c = h0[layer], c0[layer]
        ys = []
        for t in range(inp.shape[0]):
            gates = inp[t] @ w_ih.T + h @ w_hh.T + b_ih + b_hh
            i = jax.nn.sigmoid(gates[:, 0 * H:1 * H])
            f = jax.nn.sigmoid(gates[:, 1 * H:2 * H])
            g = jnp.tanh(gates[:, 2 * H:3 * H])
            o = jax.nn.sigmoid(gates[:, 3 * H:4 * H])
            c = f * c + i * g
            h = o * jnp.tanh(c)
            ys.append(h)
        inp = jnp.stack(ys, axis=0)
        h_fin.append(h)
        c_fin.append(c)
    return inp, (jnp.stack(h_fin), jnp.stack(c_fin))


if __name__ == "__main__":
    # Small shapes consistent with the module.
    input_dim, hidden_dim, num_layers, batch_size = 16, 32, 2, 2
    seq_len = 8

    key = jax.random.PRNGKey(0)
    keys = jax.random.split(key, 4 * num_layers + 3)

    # PyTorch LSTM init: U(-1/sqrt(H), 1/sqrt(H)).
    bound = 1.0 / jnp.sqrt(hidden_dim)
    params = []
    for layer in range(num_layers):
        d_in = input_dim if layer == 0 else hidden_dim
        k0, k1, k2, k3 = keys[4 * layer: 4 * layer + 4]
        w_ih = jax.random.uniform(k0, (4 * hidden_dim, d_in),
                                  minval=-bound, maxval=bound, dtype=jnp.float32)
        w_hh = jax.random.uniform(k1, (4 * hidden_dim, hidden_dim),
                                  minval=-bound, maxval=bound, dtype=jnp.float32)
        b_ih = jax.random.uniform(k2, (4 * hidden_dim,),
                                  minval=-bound, maxval=bound, dtype=jnp.float32)
        b_hh = jax.random.uniform(k3, (4 * hidden_dim,),
                                  minval=-bound, maxval=bound, dtype=jnp.float32)
        params.append((w_ih, w_hh, b_ih, b_hh))

    # init_hidden(): xavier_normal_ on (num_layers, batch, hidden) -> std = sqrt(2/(B+H))
    std = jnp.sqrt(2.0 / (batch_size + hidden_dim))
    h0 = std * jax.random.normal(keys[-3], (num_layers, batch_size, hidden_dim), jnp.float32)
    c0 = std * jax.random.normal(keys[-2], (num_layers, batch_size, hidden_dim), jnp.float32)

    x = jax.random.normal(keys[-1], (seq_len, batch_size, input_dim), jnp.float32)

    fwd = jax.jit(lstm_enc_forward)
    lstm_out, (h_n, c_n) = fwd(x, params, h0, c0)
    jax.block_until_ready((lstm_out, h_n, c_n))

    # Silent sanity check vs. f32 reference (bf16 MXU operands / bf16 gates_x -> looser tol).
    ref_out, (ref_h, ref_c) = _ref_lstm(x, params, h0, c0)
    assert jnp.allclose(lstm_out, ref_out, atol=3e-2, rtol=3e-2)
    assert jnp.allclose(h_n, ref_h, atol=3e-2, rtol=3e-2)
    assert jnp.allclose(c_n, ref_c, atol=3e-2, rtol=3e-2)

    print("KERNEL_OK")
</pallas_src>

<mosaic_0001>
module attributes {stable_mosaic.version = 11 : i64} {
  func.func @_lstm_recurrent_kernel(%arg0: i32, %arg1: memref<8x8x512xbf16, #tpu.memory_space<vmem>>, %arg2: memref<128x512xbf16, #tpu.memory_space<vmem>>, %arg3: memref<8x128xf32, #tpu.memory_space<vmem>>, %arg4: memref<8x128xf32, #tpu.memory_space<vmem>>, %arg5: memref<128x512xbf16, #tpu.memory_space<vmem>>, %arg6: memref<1x512xf32, #tpu.memory_space<vmem>>, %arg7: memref<8x8x512xbf16, #tpu.memory_space<vmem>>, %arg8: memref<8x128xf32, #tpu.memory_space<vmem>>, %arg9: memref<8x128xf32, #tpu.memory_space<vmem>>, %arg10: memref<8x128xf32, #tpu.memory_space<vmem>>, %arg11: memref<8x128xf32, #tpu.memory_space<vmem>>, %arg12: memref<8x8x128xf32, #tpu.memory_space<vmem>>) attributes {dimension_semantics = [#tpu.dimension_semantics<arbitrary>], iteration_bounds = array<i64: 1>, scalar_prefetch = 0 : i64, scratch_operands = 3 : i64, tpu.core_type = #tpu.core_type<tc>, window_params = [{transform_indices = @transform_0, window_bounds = array<i64: 8, 8, 512>}, {pipeline_mode = #tpu.pipeline_mode<synchronous>, transform_indices = @transform_1, window_bounds = array<i64: 128, 512>}, {pipeline_mode = #tpu.pipeline_mode<synchronous>, transform_indices = @transform_2, window_bounds = array<i64: 8, 128>}, {pipeline_mode = #tpu.pipeline_mode<synchronous>, transform_indices = @transform_3, window_bounds = array<i64: 8, 128>}, {pipeline_mode = #tpu.pipeline_mode<synchronous>, transform_indices = @transform_4, window_bounds = array<i64: 128, 512>}, {pipeline_mode = #tpu.pipeline_mode<synchronous>, transform_indices = @transform_5, window_bounds = array<i64: 1, 512>}, {transform_indices = @transform_6, window_bounds = array<i64: 8, 8, 512>}, {pipeline_mode = #tpu.pipeline_mode<synchronous>, transform_indices = @transform_7, window_bounds = array<i64: 8, 128>}, {pipeline_mode = #tpu.pipeline_mode<synchronous>, transform_indices = @transform_8, window_bounds = array<i64: 8, 128>}]} {
    %c0_i32 = arith.constant 0 : i32
    %0 = arith.cmpi eq, %arg0, %c0_i32 : i32
    %1 = arith.extui %0 : i1 to i32
    %c0_i32_0 = arith.constant 0 : i32
    %2 = arith.cmpi ne, %1, %c0_i32_0 : i32
    scf.if %2 {
      %c0_87 = arith.constant 0 : index
      %c0_88 = arith.constant 0 : index
      %254 = vector.load %arg3[%c0_87, %c0_88] : memref<8x128xf32, #tpu.memory_space<vmem>>, vector<8x128xf32>
      %c0_89 = arith.constant 0 : index
      %c0_90 = arith.constant 0 : index
      %255 = vector.load %arg10[%c0_89, %c0_90] : memref<8x128xf32, #tpu.memory_space<vmem>>, vector<8x128xf32>
      tpu.vector_store %arg10[%c0_89, %c0_90], %254 {strides = array<i32>} : memref<8x128xf32, #tpu.memory_space<vmem>>, vector<8x128xf32>,
      %c0_91 = arith.constant 0 : index
      %c0_92 = arith.constant 0 : index
      %256 = vector.load %arg4[%c0_91, %c0_92] : memref<8x128xf32, #tpu.memory_space<vmem>>, vector<8x128xf32>
      %c0_93 = arith.constant 0 : index
      %c0_94 = arith.constant 0 : index
      %257 = vector.load %arg11[%c0_93, %c0_94] : memref<8x128xf32, #tpu.memory_space<vmem>>, vector<8x128xf32>
      tpu.vector_store %arg11[%c0_93, %c0_94], %256 {strides = array<i32>} : memref<8x128xf32, #tpu.memory_space<vmem>>, vector<8x128xf32>,
    } else {
    }
    %c0 = arith.constant 0 : index
    %c0_1 = arith.constant 0 : index
    %3 = vector.load %arg2[%c0, %c0_1] : memref<128x512xbf16, #tpu.memory_space<vmem>>, vector<128x512xbf16>
    %c0_2 = arith.constant 0 : index
    %c0_3 = arith.constant 0 : index
    %4 = vector.load %arg10[%c0_2, %c0_3] : memref<8x128xf32, #tpu.memory_space<vmem>>, vector<8x128xf32>
    %c0_4 = arith.constant 0 : index
    %c0_5 = arith.constant 0 : index
    %5 = vector.load %arg11[%c0_4, %c0_5] : memref<8x128xf32, #tpu.memory_space<vmem>>, vector<8x128xf32>
    %c0_i32_6 = arith.constant 0 : i32
    %6 = arith.index_cast %c0_i32_6 : i32 to index
    %c0_7 = arith.constant 0 : index
    %c0_8 = arith.constant 0 : index
    %7 = vector.load %arg1[%6, %c0_7, %c0_8] : memref<8x8x512xbf16, #tpu.memory_space<vmem>>, vector<1x8x512xbf16>
    %8 = vector.shape_cast %7 : vector<1x8x512xbf16> to vector<8x512xbf16>
    %9 = arith.extf %8 : vector<8x512xbf16> to vector<8x512xf32>
    %10 = arith.truncf %4 : vector<8x128xf32> to vector<8x128xbf16>
    %cst = arith.constant dense<0.000000e+00> : vector<8x512xf32>
    %11 = tpu.matmul %10, %3, %cst {dimension_numbers = #tpu.dot_dimension_numbers<[1], [0], [0], [1], [0, 0, 1, 1], [], []>} : vector<8x128xbf16>, vector<128x512xbf16>, vector<8x512xf32> -> vector<8x512xf32>
    %12 = arith.addf %9, %11 : vector<8x512xf32>
    %13 = vector.extract_strided_slice %12 {offsets = [0, 0], sizes = [8, 384], strides = [1, 1]} : vector<8x512xf32> to vector<8x384xf32>
    %cst_9 = arith.constant 5.000000e-01 : f32
    %14 = vector.broadcast %cst_9 : f32 to vector<8x384xf32>
    %15 = arith.mulf %14, %13 : vector<8x384xf32>
    %16 = math.tanh %15 : vector<8x384xf32>
    %cst_10 = arith.constant 1.000000e+00 : f32
    %17 = vector.broadcast %cst_10 : f32 to vector<8x384xf32>
    %18 = arith.addf %16, %17 : vector<8x384xf32>
    %cst_11 = arith.constant 5.000000e-01 : f32
    %19 = vector.broadcast %cst_11 : f32 to vector<8x384xf32>
    %20 = arith.mulf %19, %18 : vector<8x384xf32>
    %21 = vector.extract_strided_slice %12 {offsets = [0, 384], sizes = [8, 128], strides = [1, 1]} : vector<8x512xf32> to vector<8x128xf32>
    %22 = math.tanh %21 : vector<8x128xf32>
    %23 = vector.extract_strided_slice %20 {offsets = [0, 0], sizes = [8, 128], strides = [1, 1]} : vector<8x384xf32> to vector<8x128xf32>
    %24 = vector.extract_strided_slice %20 {offsets = [0, 128], sizes = [8, 128], strides = [1, 1]} : vector<8x384xf32> to vector<8x128xf32>
    %25 = vector.extract_strided_slice %20 {offsets = [0, 256], sizes = [8, 128], strides = [1, 1]} : vector<8x384xf32> to vector<8x128xf32>
    %26 = arith.mulf %24, %5 : vector<8x128xf32>
    %27 = arith.mulf %23, %22 : vector<8x128xf32>
    %28 = arith.addf %26, %27 : vector<8x128xf32>
    %29 = math.tanh %28 : vector<8x128xf32>
    %30 = arith.mulf %25, %29 : vector<8x128xf32>
    %31 = arith.index_cast %c0_i32_6 : i32 to index
    %c0_12 = arith.constant 0 : index
    %c0_13 = arith.constant 0 : index
    %32 = vector.load %arg12[%31, %c0_12, %c0_13] : memref<8x8x128xf32, #tpu.memory_space<vmem>>, vector<1x8x128xf32>
    %33 = vector.shape_cast %32 : vector<1x8x128xf32> to vector<8x128xf32>
    %34 = vector.shape_cast %30 : vector<8x128xf32> to vector<1x8x128xf32>
    tpu.vector_store %arg12[%31, %c0_12, %c0_13], %34 {strides = array<i32>} : memref<8x8x128xf32, #tpu.memory_space<vmem>>, vector<1x8x128xf32>,
    %c1_i32 = arith.constant 1 : i32
    %35 = arith.index_cast %c1_i32 : i32 to index
    %c0_14 = arith.constant 0 : index
    %c0_15 = arith.constant 0 : index
    %36 = vector.load %arg1[%35, %c0_14, %c0_15] : memref<8x8x512xbf16, #tpu.memory_space<vmem>>, vector<1x8x512xbf16>
    %37 = vector.shape_cast %36 : vector<1x8x512xbf16> to vector<8x512xbf16>
    %38 = arith.extf %37 : vector<8x512xbf16> to vector<8x512xf32>
    %39 = arith.truncf %30 : vector<8x128xf32> to vector<8x128xbf16>
    %cst_16 = arith.constant dense<0.000000e+00> : vector<8x512xf32>
    %40 = tpu.matmul %39, %3, %cst_16 {dimension_numbers = #tpu.dot_dimension_numbers<[1], [0], [0], [1], [0, 0, 1, 1], [], []>} : vector<8x128xbf16>, vector<128x512xbf16>, vector<8x512xf32> -> vector<8x512xf32>
    %41 = arith.addf %38, %40 : vector<8x512xf32>
    %42 = vector.extract_strided_slice %41 {offsets = [0, 0], sizes = [8, 384], strides = [1, 1]} : vector<8x512xf32> to vector<8x384xf32>
    %cst_17 = arith.constant 5.000000e-01 : f32
    %43 = vector.broadcast %cst_17 : f32 to vector<8x384xf32>
    %44 = arith.mulf %43, %42 : vector<8x384xf32>
    %45 = math.tanh %44 : vector<8x384xf32>
    %cst_18 = arith.constant 1.000000e+00 : f32
    %46 = vector.broadcast %cst_18 : f32 to vector<8x384xf32>
    %47 = arith.addf %45, %46 : vector<8x384xf32>
    %cst_19 = arith.constant 5.000000e-01 : f32
    %48 = vector.broadcast %cst_19 : f32 to vector<8x384xf32>
    %49 = arith.mulf %48, %47 : vector<8x384xf32>
    %50 = vector.extract_strided_slice %41 {offsets = [0, 384], sizes = [8, 128], strides = [1, 1]} : vector<8x512xf32> to vector<8x128xf32>
    %51 = math.tanh %50 : vector<8x128xf32>
    %52 = vector.extract_strided_slice %49 {offsets = [0, 0], sizes = [8, 128], strides = [1, 1]} : vector<8x384xf32> to vector<8x128xf32>
    %53 = vector.extract_strided_slice %49 {offsets = [0, 128], sizes = [8, 128], strides = [1, 1]} : vector<8x384xf32> to vector<8x128xf32>
    %54 = vector.extract_strided_slice %49 {offsets = [0, 256], sizes = [8, 128], strides = [1, 1]} : vector<8x384xf32> to vector<8x128xf32>
    %55 = arith.mulf %53, %28 : vector<8x128xf32>
    %56 = arith.mulf %52, %51 : vector<8x128xf32>
    %57 = arith.addf %55, %56 : vector<8x128xf32>
    %58 = math.tanh %57 : vector<8x128xf32>
    %59 = arith.mulf %54, %58 : vector<8x128xf32>
    %60 = arith.index_cast %c1_i32 : i32 to index
    %c0_20 = arith.constant 0 : index
    %c0_21 = arith.constant 0 : index
    %61 = vector.load %arg12[%60, %c0_20, %c0_21] : memref<8x8x128xf32, #tpu.memory_space<vmem>>, vector<1x8x128xf32>
    %62 = vector.shape_cast %61 : vector<1x8x128xf32> to vector<8x128xf32>
    %63 = vector.shape_cast %59 : vector<8x128xf32> to vector<1x8x128xf32>
    tpu.vector_store %arg12[%60, %c0_20, %c0_21], %63 {strides = array<i32>} : memref<8x8x128xf32, #tpu.memory_space<vmem>>, vector<1x8x128xf32>,
    %c2_i32 = arith.constant 2 : i32
    %64 = arith.index_cast %c2_i32 : i32 to index
    %c0_22 = arith.constant 0 : index
    %c0_23 = arith.constant 0 : index
    %65 = vector.load %arg1[%64, %c0_22, %c0_23] : memref<8x8x512xbf16, #tpu.memory_space<vmem>>, vector<1x8x512xbf16>
    %66 = vector.shape_cast %65 : vector<1x8x512xbf16> to vector<8x512xbf16>
    %67 = arith.extf %66 : vector<8x512xbf16> to vector<8x512xf32>
    %68 = arith.truncf %59 : vector<8x128xf32> to vector<8x128xbf16>
    %cst_24 = arith.constant dense<0.000000e+00> : vector<8x512xf32>
    %69 = tpu.matmul %68, %3, %cst_24 {dimension_numbers = #tpu.dot_dimension_numbers<[1], [0], [0], [1], [0, 0, 1, 1], [], []>} : vector<8x128xbf16>, vector<128x512xbf16>, vector<8x512xf32> -> vector<8x512xf32>
    %70 = arith.addf %67, %69 : vector<8x512xf32>
    %71 = vector.extract_strided_slice %70 {offsets = [0, 0], sizes = [8, 384], strides = [1, 1]} : vector<8x512xf32> to vector<8x384xf32>
    %cst_25 = arith.constant 5.000000e-01 : f32
    %72 = vector.broadcast %cst_25 : f32 to vector<8x384xf32>
    %73 = arith.mulf %72, %71 : vector<8x384xf32>
    %74 = math.tanh %73 : vector<8x384xf32>
    %cst_26 = arith.constant 1.000000e+00 : f32
    %75 = vector.broadcast %cst_26 : f32 to vector<8x384xf32>
    %76 = arith.addf %74, %75 : vector<8x384xf32>
    %cst_27 = arith.constant 5.000000e-01 : f32
    %77 = vector.broadcast %cst_27 : f32 to vector<8x384xf32>
    %78 = arith.mulf %77, %76 : vector<8x384xf32>
    %79 = vector.extract_strided_slice %70 {offsets = [0, 384], sizes = [8, 128], strides = [1, 1]} : vector<8x512xf32> to vector<8x128xf32>
    %80 = math.tanh %79 : vector<8x128xf32>
    %81 = vector.extract_strided_slice %78 {offsets = [0, 0], sizes = [8, 128], strides = [1, 1]} : vector<8x384xf32> to vector<8x128xf32>
    %82 = vector.extract_strided_slice %78 {offsets = [0, 128], sizes = [8, 128], strides = [1, 1]} : vector<8x384xf32> to vector<8x128xf32>
    %83 = vector.extract_strided_slice %78 {offsets = [0, 256], sizes = [8, 128], strides = [1, 1]} : vector<8x384xf32> to vector<8x128xf32>
    %84 = arith.mulf %82, %57 : vector<8x128xf32>
    %85 = arith.mulf %81, %80 : vector<8x128xf32>
    %86 = arith.addf %84, %85 : vector<8x128xf32>
    %87 = math.tanh %86 : vector<8x128xf32>
    %88 = arith.mulf %83, %87 : vector<8x128xf32>
    %89 = arith.index_cast %c2_i32 : i32 to index
    %c0_28 = arith.constant 0 : index
    %c0_29 = arith.constant 0 : index
    %90 = vector.load %arg12[%89, %c0_28, %c0_29] : memref<8x8x128xf32, #tpu.memory_space<vmem>>, vector<1x8x128xf32>
    %91 = vector.shape_cast %90 : vector<1x8x128xf32> to vector<8x128xf32>
    %92 = vector.shape_cast %88 : vector<8x128xf32> to vector<1x8x128xf32>
    tpu.vector_store %arg12[%89, %c0_28, %c0_29], %92 {strides = array<i32>} : memref<8x8x128xf32, #tpu.memory_space<vmem>>, vector<1x8x128xf32>,
    %c3_i32 = arith.constant 3 : i32
    %93 = arith.index_cast %c3_i32 : i32 to index
    %c0_30 = arith.constant 0 : index
    %c0_31 = arith.constant 0 : index
    %94 = vector.load %arg1[%93, %c0_30, %c0_31] : memref<8x8x512xbf16, #tpu.memory_space<vmem>>, vector<1x8x512xbf16>
    %95 = vector.shape_cast %94 : vector<1x8x512xbf16> to vector<8x512xbf16>
    %96 = arith.extf %95 : vector<8x512xbf16> to vector<8x512xf32>
    %97 = arith.truncf %88 : vector<8x128xf32> to vector<8x128xbf16>
    %cst_32 = arith.constant dense<0.000000e+00> : vector<8x512xf32>
    %98 = tpu.matmul %97, %3, %cst_32 {dimension_numbers = #tpu.dot_dimension_numbers<[1], [0], [0], [1], [0, 0, 1, 1], [], []>} : vector<8x128xbf16>, vector<128x512xbf16>, vector<8x512xf32> -> vector<8x512xf32>
    %99 = arith.addf %96, %98 : vector<8x512xf32>
    %100 = vector.extract_strided_slice %99 {offsets = [0, 0], sizes = [8, 384], strides = [1, 1]} : vector<8x512xf32> to vector<8x384xf32>
    %cst_33 = arith.constant 5.000000e-01 : f32
    %101 = vector.broadcast %cst_33 : f32 to vector<8x384xf32>
    %102 = arith.mulf %101, %100 : vector<8x384xf32>
    %103 = math.tanh %102 : vector<8x384xf32>
    %cst_34 = arith.constant 1.000000e+00 : f32
    %104 = vector.broadcast %cst_34 : f32 to vector<8x384xf32>
    %105 = arith.addf %103, %104 : vector<8x384xf32>
    %cst_35 = arith.constant 5.000000e-01 : f32
    %106 = vector.broadcast %cst_35 : f32 to vector<8x384xf32>
    %107 = arith.mulf %106, %105 : vector<8x384xf32>
    %108 = vector.extract_strided_slice %99 {offsets = [0, 384], sizes = [8, 128], strides = [1, 1]} : vector<8x512xf32> to vector<8x128xf32>
    %109 = math.tanh %108 : vector<8x128xf32>
    %110 = vector.extract_strided_slice %107 {offsets = [0, 0], sizes = [8, 128], strides = [1, 1]} : vector<8x384xf32> to vector<8x128xf32>
    %111 = vector.extract_strided_slice %107 {offsets = [0, 128], sizes = [8, 128], strides = [1, 1]} : vector<8x384xf32> to vector<8x128xf32>
    %112 = vector.extract_strided_slice %107 {offsets = [0, 256], sizes = [8, 128], strides = [1, 1]} : vector<8x384xf32> to vector<8x128xf32>
    %113 = arith.mulf %111, %86 : vector<8x128xf32>
    %114 = arith.mulf %110, %109 : vector<8x128xf32>
    %115 = arith.addf %113, %114 : vector<8x128xf32>
    %116 = math.tanh %115 : vector<8x128xf32>
    %117 = arith.mulf %112, %116 : vector<8x128xf32>
    %118 = arith.index_cast %c3_i32 : i32 to index
    %c0_36 = arith.constant 0 : index
    %c0_37 = arith.constant 0 : index
    %119 = vector.load %arg12[%118, %c0_36, %c0_37] : memref<8x8x128xf32, #tpu.memory_space<vmem>>, vector<1x8x128xf32>
    %120 = vector.shape_cast %119 : vector<1x8x128xf32> to vector<8x128xf32>
    %121 = vector.shape_cast %117 : vector<8x128xf32> to vector<1x8x128xf32>
    tpu.vector_store %arg12[%118, %c0_36, %c0_37], %121 {strides = array<i32>} : memref<8x8x128xf32, #tpu.memory_space<vmem>>, vector<1x8x128xf32>,
    %c4_i32 = arith.constant 4 : i32
    %122 = arith.index_cast %c4_i32 : i32 to index
    %c0_38 = arith.constant 0 : index
    %c0_39 = arith.constant 0 : index
    %123 = vector.load %arg1[%122, %c0_38, %c0_39] : memref<8x8x512xbf16, #tpu.memory_space<vmem>>, vector<1x8x512xbf16>
    %124 = vector.shape_cast %123 : vector<1x8x512xbf16> to vector<8x512xbf16>
    %125 = arith.extf %124 : vector<8x512xbf16> to vector<8x512xf32>
    %126 = arith.truncf %117 : vector<8x128xf32> to vector<8x128xbf16>
    %cst_40 = arith.constant dense<0.000000e+00> : vector<8x512xf32>
    %127 = tpu.matmul %126, %3, %cst_40 {dimension_numbers = #tpu.dot_dimension_numbers<[1], [0], [0], [1], [0, 0, 1, 1], [], []>} : vector<8x128xbf16>, vector<128x512xbf16>, vector<8x512xf32> -> vector<8x512xf32>
    %128 = arith.addf %125, %127 : vector<8x512xf32>
    %129 = vector.extract_strided_slice %128 {offsets = [0, 0], sizes = [8, 384], strides = [1, 1]} : vector<8x512xf32> to vector<8x384xf32>
    %cst_41 = arith.constant 5.000000e-01 : f32
    %130 = vector.broadcast %cst_41 : f32 to vector<8x384xf32>
    %131 = arith.mulf %130, %129 : vector<8x384xf32>
    %132 = math.tanh %131 : vector<8x384xf32>
    %cst_42 = arith.constant 1.000000e+00 : f32
    %133 = vector.broadcast %cst_42 : f32 to vector<8x384xf32>
    %134 = arith.addf %132, %133 : vector<8x384xf32>
    %cst_43 = arith.constant 5.000000e-01 : f32
    %135 = vector.broadcast %cst_43 : f32 to vector<8x384xf32>
    %136 = arith.mulf %135, %134 : vector<8x384xf32>
    %137 = vector.extract_strided_slice %128 {offsets = [0, 384], sizes = [8, 128], strides = [1, 1]} : vector<8x512xf32> to vector<8x128xf32>
    %138 = math.tanh %137 : vector<8x128xf32>
    %139 = vector.extract_strided_slice %136 {offsets = [0, 0], sizes = [8, 128], strides = [1, 1]} : vector<8x384xf32> to vector<8x128xf32>
    %140 = vector.extract_strided_slice %136 {offsets = [0, 128], sizes = [8, 128], strides = [1, 1]} : vector<8x384xf32> to vector<8x128xf32>
    %141 = vector.extract_strided_slice %136 {offsets = [0, 256], sizes = [8, 128], strides = [1, 1]} : vector<8x384xf32> to vector<8x128xf32>
    %142 = arith.mulf %140, %115 : vector<8x128xf32>
    %143 = arith.mulf %139, %138 : vector<8x128xf32>
    %144 = arith.addf %142, %143 : vector<8x128xf32>
    %145 = math.tanh %144 : vector<8x128xf32>
    %146 = arith.mulf %141, %145 : vector<8x128xf32>
    %147 = arith.index_cast %c4_i32 : i32 to index
    %c0_44 = arith.constant 0 : index
    %c0_45 = arith.constant 0 : index
    %148 = vector.load %arg12[%147, %c0_44, %c0_45] : memref<8x8x128xf32, #tpu.memory_space<vmem>>, vector<1x8x128xf32>
    %149 = vector.shape_cast %148 : vector<1x8x128xf32> to vector<8x128xf32>
    %150 = vector.shape_cast %146 : vector<8x128xf32> to vector<1x8x128xf32>
    tpu.vector_store %arg12[%147, %c0_44, %c0_45], %150 {strides = array<i32>} : memref<8x8x128xf32, #tpu.memory_space<vmem>>, vector<1x8x128xf32>,
    %c5_i32 = arith.constant 5 : i32
    %151 = arith.index_cast %c5_i32 : i32 to index
    %c0_46 = arith.constant 0 : index
    %c0_47 = arith.constant 0 : index
    %152 = vector.load %arg1[%151, %c0_46, %c0_47] : memref<8x8x512xbf16, #tpu.memory_space<vmem>>, vector<1x8x512xbf16>
    %153 = vector.shape_cast %152 : vector<1x8x512xbf16> to vector<8x512xbf16>
    %154 = arith.extf %153 : vector<8x512xbf16> to vector<8x512xf32>
    %155 = arith.truncf %146 : vector<8x128xf32> to vector<8x128xbf16>
    %cst_48 = arith.constant dense<0.000000e+00> : vector<8x512xf32>
    %156 = tpu.matmul %155, %3, %cst_48 {dimension_numbers = #tpu.dot_dimension_numbers<[1], [0], [0], [1], [0, 0, 1, 1], [], []>} : vector<8x128xbf16>, vector<128x512xbf16>, vector<8x512xf32> -> vector<8x512xf32>
    %157 = arith.addf %154, %156 : vector<8x512xf32>
    %158 = vector.extract_strided_slice %157 {offsets = [0, 0], sizes = [8, 384], strides = [1, 1]} : vector<8x512xf32> to vector<8x384xf32>
    %cst_49 = arith.constant 5.000000e-01 : f32
    %159 = vector.broadcast %cst_49 : f32 to vector<8x384xf32>
    %160 = arith.mulf %159, %158 : vector<8x384xf32>
    %161 = math.tanh %160 : vector<8x384xf32>
    %cst_50 = arith.constant 1.000000e+00 : f32
    %162 = vector.broadcast %cst_50 : f32 to vector<8x384xf32>
    %163 = arith.addf %161, %162 : vector<8x384xf32>
    %cst_51 = arith.constant 5.000000e-01 : f32
    %164 = vector.broadcast %cst_51 : f32 to vector<8x384xf32>
    %165 = arith.mulf %164, %163 : vector<8x384xf32>
    %166 = vector.extract_strided_slice %157 {offsets = [0, 384], sizes = [8, 128], strides = [1, 1]} : vector<8x512xf32> to vector<8x128xf32>
    %167 = math.tanh %166 : vector<8x128xf32>
    %168 = vector.extract_strided_slice %165 {offsets = [0, 0], sizes = [8, 128], strides = [1, 1]} : vector<8x384xf32> to vector<8x128xf32>
    %169 = vector.extract_strided_slice %165 {offsets = [0, 128], sizes = [8, 128], strides = [1, 1]} : vector<8x384xf32> to vector<8x128xf32>
    %170 = vector.extract_strided_slice %165 {offsets = [0, 256], sizes = [8, 128], strides = [1, 1]} : vector<8x384xf32> to vector<8x128xf32>
    %171 = arith.mulf %169, %144 : vector<8x128xf32>
    %172 = arith.mulf %168, %167 : vector<8x128xf32>
    %173 = arith.addf %171, %172 : vector<8x128xf32>
    %174 = math.tanh %173 : vector<8x128xf32>
    %175 = arith.mulf %170, %174 : vector<8x128xf32>
    %176 = arith.index_cast %c5_i32 : i32 to index
    %c0_52 = arith.constant 0 : index
    %c0_53 = arith.constant 0 : index
    %177 = vector.load %arg12[%176, %c0_52, %c0_53] : memref<8x8x128xf32, #tpu.memory_space<vmem>>, vector<1x8x128xf32>
    %178 = vector.shape_cast %177 : vector<1x8x128xf32> to vector<8x128xf32>
    %179 = vector.shape_cast %175 : vector<8x128xf32> to vector<1x8x128xf32>
    tpu.vector_store %arg12[%176, %c0_52, %c0_53], %179 {strides = array<i32>} : memref<8x8x128xf32, #tpu.memory_space<vmem>>, vector<1x8x128xf32>,
    %c6_i32 = arith.constant 6 : i32
    %180 = arith.index_cast %c6_i32 : i32 to index
    %c0_54 = arith.constant 0 : index
    %c0_55 = arith.constant 0 : index
    %181 = vector.load %arg1[%180, %c0_54, %c0_55] : memref<8x8x512xbf16, #tpu.memory_space<vmem>>, vector<1x8x512xbf16>
    %182 = vector.shape_cast %181 : vector<1x8x512xbf16> to vector<8x512xbf16>
    %183 = arith.extf %182 : vector<8x512xbf16> to vector<8x512xf32>
    %184 = arith.truncf %175 : vector<8x128xf32> to vector<8x128xbf16>
    %cst_56 = arith.constant dense<0.000000e+00> : vector<8x512xf32>
    %185 = tpu.matmul %184, %3, %cst_56 {dimension_numbers = #tpu.dot_dimension_numbers<[1], [0], [0], [1], [0, 0, 1, 1], [], []>} : vector<8x128xbf16>, vector<128x512xbf16>, vector<8x512xf32> -> vector<8x512xf32>
    %186 = arith.addf %183, %185 : vector<8x512xf32>
    %187 = vector.extract_strided_slice %186 {offsets = [0, 0], sizes = [8, 384], strides = [1, 1]} : vector<8x512xf32> to vector<8x384xf32>
    %cst_57 = arith.constant 5.000000e-01 : f32
    %188 = vector.broadcast %cst_57 : f32 to vector<8x384xf32>
    %189 = arith.mulf %188, %187 : vector<8x384xf32>
    %190 = math.tanh %189 : vector<8x384xf32>
    %cst_58 = arith.constant 1.000000e+00 : f32
    %191 = vector.broadcast %cst_58 : f32 to vector<8x384xf32>
    %192 = arith.addf %190, %191 : vector<8x384xf32>
    %cst_59 = arith.constant 5.000000e-01 : f32
    %193 = vector.broadcast %cst_59 : f32 to vector<8x384xf32>
    %194 = arith.mulf %193, %192 : vector<8x384xf32>
    %195 = vector.extract_strided_slice %186 {offsets = [0, 384], sizes = [8, 128], strides = [1, 1]} : vector<8x512xf32> to vector<8x128xf32>
    %196 = math.tanh %195 : vector<8x128xf32>
    %197 = vector.extract_strided_slice %194 {offsets = [0, 0], sizes = [8, 128], strides = [1, 1]} : vector<8x384xf32> to vector<8x128xf32>
    %198 = vector.extract_strided_slice %194 {offsets = [0, 128], sizes = [8, 128], strides = [1, 1]} : vector<8x384xf32> to vector<8x128xf32>
    %199 = vector.extract_strided_slice %194 {offsets = [0, 256], sizes = [8, 128], strides = [1, 1]} : vector<8x384xf32> to vector<8x128xf32>
    %200 = arith.mulf %198, %173 : vector<8x128xf32>
    %201 = arith.mulf %197, %196 : vector<8x128xf32>
    %202 = arith.addf %200, %201 : vector<8x128xf32>
    %203 = math.tanh %202 : vector<8x128xf32>
    %204 = arith.mulf %199, %203 : vector<8x128xf32>
    %205 = arith.index_cast %c6_i32 : i32 to index
    %c0_60 = arith.constant 0 : index
    %c0_61 = arith.constant 0 : index
    %206 = vector.load %arg12[%205, %c0_60, %c0_61] : memref<8x8x128xf32, #tpu.memory_space<vmem>>, vector<1x8x128xf32>
    %207 = vector.shape_cast %206 : vector<1x8x128xf32> to vector<8x128xf32>
    %208 = vector.shape_cast %204 : vector<8x128xf32> to vector<1x8x128xf32>
    tpu.vector_store %arg12[%205, %c0_60, %c0_61], %208 {strides = array<i32>} : memref<8x8x128xf32, #tpu.memory_space<vmem>>, vector<1x8x128xf32>,
    %c7_i32 = arith.constant 7 : i32
    %209 = arith.index_cast %c7_i32 : i32 to index
    %c0_62 = arith.constant 0 : index
    %c0_63 = arith.constant 0 : index
    %210 = vector.load %arg1[%209, %c0_62, %c0_63] : memref<8x8x512xbf16, #tpu.memory_space<vmem>>, vector<1x8x512xbf16>
    %211 = vector.shape_cast %210 : vector<1x8x512xbf16> to vector<8x512xbf16>
    %212 = arith.extf %211 : vector<8x512xbf16> to vector<8x512xf32>
    %213 = arith.truncf %204 : vector<8x128xf32> to vector<8x128xbf16>
    %cst_64 = arith.constant dense<0.000000e+00> : vector<8x512xf32>
    %214 = tpu.matmul %213, %3, %cst_64 {dimension_numbers = #tpu.dot_dimension_numbers<[1], [0], [0], [1], [0, 0, 1, 1], [], []>} : vector<8x128xbf16>, vector<128x512xbf16>, vector<8x512xf32> -> vector<8x512xf32>
    %215 = arith.addf %212, %214 : vector<8x512xf32>
    %216 = vector.extract_strided_slice %215 {offsets = [0, 0], sizes = [8, 384], strides = [1, 1]} : vector<8x512xf32> to vector<8x384xf32>
    %cst_65 = arith.constant 5.000000e-01 : f32
    %217 = vector.broadcast %cst_65 : f32 to vector<8x384xf32>
    %218 = arith.mulf %217, %216 : vector<8x384xf32>
    %219 = math.tanh %218 : vector<8x384xf32>
    %cst_66 = arith.constant 1.000000e+00 : f32
    %220 = vector.broadcast %cst_66 : f32 to vector<8x384xf32>
    %221 = arith.addf %219, %220 : vector<8x384xf32>
    %cst_67 = arith.constant 5.000000e-01 : f32
    %222 = vector.broadcast %cst_67 : f32 to vector<8x384xf32>
    %223 = arith.mulf %222, %221 : vector<8x384xf32>
    %224 = vector.extract_strided_slice %215 {offsets = [0, 384], sizes = [8, 128], strides = [1, 1]} : vector<8x512xf32> to vector<8x128xf32>
    %225 = math.tanh %224 : vector<8x128xf32>
    %226 = vector.extract_strided_slice %223 {offsets = [0, 0], sizes = [8, 128], strides = [1, 1]} : vector<8x384xf32> to vector<8x128xf32>
    %227 = vector.extract_strided_slice %223 {offsets = [0, 128], sizes = [8, 128], strides = [1, 1]} : vector<8x384xf32> to vector<8x128xf32>
    %228 = vector.extract_strided_slice %223 {offsets = [0, 256], sizes = [8, 128], strides = [1, 1]} : vector<8x384xf32> to vector<8x128xf32>
    %229 = arith.mulf %227, %202 : vector<8x128xf32>
    %230 = arith.mulf %226, %225 : vector<8x128xf32>
    %231 = arith.addf %229, %230 : vector<8x128xf32>
    %232 = math.tanh %231 : vector<8x128xf32>
    %233 = arith.mulf %228, %232 : vector<8x128xf32>
    %234 = arith.index_cast %c7_i32 : i32 to index
    %c0_68 = arith.constant 0 : index
    %c0_69 = arith.constant 0 : index
    %235 = vector.load %arg12[%234, %c0_68, %c0_69] : memref<8x8x128xf32, #tpu.memory_space<vmem>>, vector<1x8x128xf32>
    %236 = vector.shape_cast %235 : vector<1x8x128xf32> to vector<8x128xf32>
    %237 = vector.shape_cast %233 : vector<8x128xf32> to vector<1x8x128xf32>
    tpu.vector_store %arg12[%234, %c0_68, %c0_69], %237 {strides = array<i32>} : memref<8x8x128xf32, #tpu.memory_space<vmem>>, vector<1x8x128xf32>,
    %c8_i32 = arith.constant 8 : i32
    %c0_70 = arith.constant 0 : index
    %c0_71 = arith.constant 0 : index
    %238 = vector.load %arg10[%c0_70, %c0_71] : memref<8x128xf32, #tpu.memory_space<vmem>>, vector<8x128xf32>
    tpu.vector_store %arg10[%c0_70, %c0_71], %233 {strides = array<i32>} : memref<8x128xf32, #tpu.memory_space<vmem>>, vector<8x128xf32>,
    %c0_72 = arith.constant 0 : index
    %c0_73 = arith.constant 0 : index
    %239 = vector.load %arg11[%c0_72, %c0_73] : memref<8x128xf32, #tpu.memory_space<vmem>>, vector<8x128xf32>
    tpu.vector_store %arg11[%c0_72, %c0_73], %231 {strides = array<i32>} : memref<8x128xf32, #tpu.memory_space<vmem>>, vector<8x128xf32>,
    %c0_74 = arith.constant 0 : index
    %c0_75 = arith.constant 0 : index
    %c0_76 = arith.constant 0 : index
    %240 = vector.load %arg12[%c0_74, %c0_75, %c0_76] : memref<8x8x128xf32, #tpu.memory_space<vmem>>, vector<8x8x128xf32>
    %241 = vector.shape_cast %240 : vector<8x8x128xf32> to vector<64x128xf32>
    %242 = arith.truncf %241 : vector<64x128xf32> to vector<64x128xbf16>
    %c0_77 = arith.constant 0 : index
    %c0_78 = arith.constant 0 : index
    %243 = vector.load %arg5[%c0_77, %c0_78] : memref<128x512xbf16, #tpu.memory_space<vmem>>, vector<128x512xbf16>
    %cst_79 = arith.constant dense<0.000000e+00> : vector<64x512xf32>
    %244 = tpu.matmul %242, %243, %cst_79 {dimension_numbers = #tpu.dot_dimension_numbers<[1], [0], [0], [1], [0, 0, 1, 1], [], []>} : vector<64x128xbf16>, vector<128x512xbf16>, vector<64x512xf32> -> vector<64x512xf32>
    %c0_80 = arith.constant 0 : index
    %c0_81 = arith.constant 0 : index
    %245 = vector.load %arg6[%c0_80, %c0_81] : memref<1x512xf32, #tpu.memory_space<vmem>>, vector<1x512xf32>
    %246 = vector.broadcast %245 : vector<1x512xf32> to vector<64x512xf32>
    %247 = arith.addf %244, %246 : vector<64x512xf32>
    %248 = vector.shape_cast %247 : vector<64x512xf32> to vector<8x8x512xf32>
    %249 = arith.truncf %248 : vector<8x8x512xf32> to vector<8x8x512xbf16>
    %c0_82 = arith.constant 0 : index
    %c0_83 = arith.constant 0 : index
    %c0_84 = arith.constant 0 : index
    %250 = vector.load %arg7[%c0_82, %c0_83, %c0_84] : memref<8x8x512xbf16, #tpu.memory_space<vmem>>, vector<8x8x512xbf16>
    tpu.vector_store %arg7[%c0_82, %c0_83, %c0_84], %249 {strides = array<i32>} : memref<8x8x512xbf16, #tpu.memory_space<vmem>>, vector<8x8x512xbf16>,
    %c0_i32_85 = arith.constant 0 : i32
    %251 = arith.cmpi eq, %arg0, %c0_i32_85 : i32
    %252 = arith.extui %251 : i1 to i32
    %c0_i32_86 = arith.constant 0 : i32
    %253 = arith.cmpi ne, %252, %c0_i32_86 : i32
    scf.if %253 {
      %c0_87 = arith.constant 0 : index
      %c0_88 = arith.constant 0 : index
      %254 = vector.load %arg8[%c0_87, %c0_88] : memref<8x128xf32, #tpu.memory_space<vmem>>, vector<8x128xf32>
      tpu.vector_store %arg8[%c0_87, %c0_88], %233 {strides = array<i32>} : memref<8x128xf32, #tpu.memory_space<vmem>>, vector<8x128xf32>,
      %c0_89 = arith.constant 0 : index
      %c0_90 = arith.constant 0 : index
      %255 = vector.load %arg9[%c0_89, %c0_90] : memref<8x128xf32, #tpu.memory_space<vmem>>, vector<8x128xf32>
      tpu.vector_store %arg9[%c0_89, %c0_90], %231 {strides = array<i32>} : memref<8x128xf32, #tpu.memory_space<vmem>>, vector<8x128xf32>,
    } else {
    }
    return
  }
  func.func @transform_0(%arg0: i32) -> (i32, i32, i32) {
    %c0_i32 = arith.constant 0 : i32
    %c0_i32_0 = arith.constant 0 : i32
    %c0_i32_1 = arith.constant 0 : i32
    return %arg0, %c0_i32, %c0_i32_0 : i32, i32, i32
  }
  func.func @transform_1(%arg0: i32) -> (i32, i32) {
    %c0_i32 = arith.constant 0 : i32
    %c0_i32_0 = arith.constant 0 : i32
    %c0_i32_1 = arith.constant 0 : i32
    return %c0_i32, %c0_i32_0 : i32, i32
  }
  func.func @transform_2(%arg0: i32) -> (i32, i32) {
    %c0_i32 = arith.constant 0 : i32
    %c0_i32_0 = arith.constant 0 : i32
    %c0_i32_1 = arith.constant 0 : i32
    return %c0_i32, %c0_i32_0 : i32, i32
  }
  func.func @transform_3(%arg0: i32) -> (i32, i32) {
    %c0_i32 = arith.constant 0 : i32
    %c0_i32_0 = arith.constant 0 : i32
    %c0_i32_1 = arith.constant 0 : i32
    return %c0_i32, %c0_i32_0 : i32, i32
  }
  func.func @transform_4(%arg0: i32) -> (i32, i32) {
    %c0_i32 = arith.constant 0 : i32
    %c0_i32_0 = arith.constant 0 : i32
    %c0_i32_1 = arith.constant 0 : i32
    return %c0_i32, %c0_i32_0 : i32, i32
  }
  func.func @transform_5(%arg0: i32) -> (i32, i32) {
    %c0_i32 = arith.constant 0 : i32
    %c0_i32_0 = arith.constant 0 : i32
    %c0_i32_1 = arith.constant 0 : i32
    return %c0_i32, %c0_i32_0 : i32, i32
  }
  func.func @transform_6(%arg0: i32) -> (i32, i32, i32) {
    %c0_i32 = arith.constant 0 : i32
    %c0_i32_0 = arith.constant 0 : i32
    %c0_i32_1 = arith.constant 0 : i32
    return %arg0, %c0_i32, %c0_i32_0 : i32, i32, i32
  }
  func.func @transform_7(%arg0: i32) -> (i32, i32) {
    %c0_i32 = arith.constant 0 : i32
    %c0_i32_0 = arith.constant 0 : i32
    %c0_i32_1 = arith.constant 0 : i32
    return %c0_i32, %c0_i32_0 : i32, i32
  }
  func.func @transform_8(%arg0: i32) -> (i32, i32) {
    %c0_i32 = arith.constant 0 : i32
    %c0_i32_0 = arith.constant 0 : i32
    %c0_i32_1 = arith.constant 0 : i32
    return %c0_i32, %c0_i32_0 : i32, i32
  }
}

module attributes {stable_mosaic.version = 11 : i64} {
  func.func @_lstm_recurrent_kernel(%arg0: i32, %arg1: memref<8x8x512xbf16, #tpu.memory_space<vmem>>, %arg2: memref<128x512xbf16, #tpu.memory_space<vmem>>, %arg3: memref<8x128xf32, #tpu.memory_space<vmem>>, %arg4: memref<8x128xf32, #tpu.memory_space<vmem>>, %arg5: memref<8x8x128xf32, #tpu.memory_space<vmem>>, %arg6: memref<8x128xf32, #tpu.memory_space<vmem>>, %arg7: memref<8x128xf32, #tpu.memory_space<vmem>>, %arg8: memref<8x128xf32, #tpu.memory_space<vmem>>, %arg9: memref<8x128xf32, #tpu.memory_space<vmem>>) attributes {dimension_semantics = [#tpu.dimension_semantics<arbitrary>], iteration_bounds = array<i64: 1>, scalar_prefetch = 0 : i64, scratch_operands = 2 : i64, tpu.core_type = #tpu.core_type<tc>, window_params = [{transform_indices = @transform_0, window_bounds = array<i64: 8, 8, 512>}, {pipeline_mode = #tpu.pipeline_mode<synchronous>, transform_indices = @transform_1, window_bounds = array<i64: 128, 512>}, {pipeline_mode = #tpu.pipeline_mode<synchronous>, transform_indices = @transform_2, window_bounds = array<i64: 8, 128>}, {pipeline_mode = #tpu.pipeline_mode<synchronous>, transform_indices = @transform_3, window_bounds = array<i64: 8, 128>}, {transform_indices = @transform_4, window_bounds = array<i64: 8, 8, 128>}, {pipeline_mode = #tpu.pipeline_mode<synchronous>, transform_indices = @transform_5, window_bounds = array<i64: 8, 128>}, {pipeline_mode = #tpu.pipeline_mode<synchronous>, transform_indices = @transform_6, window_bounds = array<i64: 8, 128>}]} {
    %c0_i32 = arith.constant 0 : i32
    %0 = arith.cmpi eq, %arg0, %c0_i32 : i32
    %1 = arith.extui %0 : i1 to i32
    %c0_i32_0 = arith.constant 0 : i32
    %2 = arith.cmpi ne, %1, %c0_i32_0 : i32
    scf.if %2 {
      %c0_76 = arith.constant 0 : index
      %c0_77 = arith.constant 0 : index
      %243 = vector.load %arg3[%c0_76, %c0_77] : memref<8x128xf32, #tpu.memory_space<vmem>>, vector<8x128xf32>
      %c0_78 = arith.constant 0 : index
      %c0_79 = arith.constant 0 : index
      %244 = vector.load %arg8[%c0_78, %c0_79] : memref<8x128xf32, #tpu.memory_space<vmem>>, vector<8x128xf32>
      tpu.vector_store %arg8[%c0_78, %c0_79], %243 {strides = array<i32>} : memref<8x128xf32, #tpu.memory_space<vmem>>, vector<8x128xf32>,
      %c0_80 = arith.constant 0 : index
      %c0_81 = arith.constant 0 : index
      %245 = vector.load %arg4[%c0_80, %c0_81] : memref<8x128xf32, #tpu.memory_space<vmem>>, vector<8x128xf32>
      %c0_82 = arith.constant 0 : index
      %c0_83 = arith.constant 0 : index
      %246 = vector.load %arg9[%c0_82, %c0_83] : memref<8x128xf32, #tpu.memory_space<vmem>>, vector<8x128xf32>
      tpu.vector_store %arg9[%c0_82, %c0_83], %245 {strides = array<i32>} : memref<8x128xf32, #tpu.memory_space<vmem>>, vector<8x128xf32>,
    } else {
    }
    %c0 = arith.constant 0 : index
    %c0_1 = arith.constant 0 : index
    %3 = vector.load %arg2[%c0, %c0_1] : memref<128x512xbf16, #tpu.memory_space<vmem>>, vector<128x512xbf16>
    %c0_2 = arith.constant 0 : index
    %c0_3 = arith.constant 0 : index
    %4 = vector.load %arg8[%c0_2, %c0_3] : memref<8x128xf32, #tpu.memory_space<vmem>>, vector<8x128xf32>
    %c0_4 = arith.constant 0 : index
    %c0_5 = arith.constant 0 : index
    %5 = vector.load %arg9[%c0_4, %c0_5] : memref<8x128xf32, #tpu.memory_space<vmem>>, vector<8x128xf32>
    %c0_i32_6 = arith.constant 0 : i32
    %6 = arith.index_cast %c0_i32_6 : i32 to index
    %c0_7 = arith.constant 0 : index
    %c0_8 = arith.constant 0 : index
    %7 = vector.load %arg1[%6, %c0_7, %c0_8] : memref<8x8x512xbf16, #tpu.memory_space<vmem>>, vector<1x8x512xbf16>
    %8 = vector.shape_cast %7 : vector<1x8x512xbf16> to vector<8x512xbf16>
    %9 = arith.extf %8 : vector<8x512xbf16> to vector<8x512xf32>
    %10 = arith.truncf %4 : vector<8x128xf32> to vector<8x128xbf16>
    %cst = arith.constant dense<0.000000e+00> : vector<8x512xf32>
    %11 = tpu.matmul %10, %3, %cst {dimension_numbers = #tpu.dot_dimension_numbers<[1], [0], [0], [1], [0, 0, 1, 1], [], []>} : vector<8x128xbf16>, vector<128x512xbf16>, vector<8x512xf32> -> vector<8x512xf32>
    %12 = arith.addf %9, %11 : vector<8x512xf32>
    %13 = vector.extract_strided_slice %12 {offsets = [0, 0], sizes = [8, 384], strides = [1, 1]} : vector<8x512xf32> to vector<8x384xf32>
    %cst_9 = arith.constant 5.000000e-01 : f32
    %14 = vector.broadcast %cst_9 : f32 to vector<8x384xf32>
    %15 = arith.mulf %14, %13 : vector<8x384xf32>
    %16 = math.tanh %15 : vector<8x384xf32>
    %cst_10 = arith.constant 1.000000e+00 : f32
    %17 = vector.broadcast %cst_10 : f32 to vector<8x384xf32>
    %18 = arith.addf %16, %17 : vector<8x384xf32>
    %cst_11 = arith.constant 5.000000e-01 : f32
    %19 = vector.broadcast %cst_11 : f32 to vector<8x384xf32>
    %20 = arith.mulf %19, %18 : vector<8x384xf32>
    %21 = vector.extract_strided_slice %12 {offsets = [0, 384], sizes = [8, 128], strides = [1, 1]} : vector<8x512xf32> to vector<8x128xf32>
    %22 = math.tanh %21 : vector<8x128xf32>
    %23 = vector.extract_strided_slice %20 {offsets = [0, 0], sizes = [8, 128], strides = [1, 1]} : vector<8x384xf32> to vector<8x128xf32>
    %24 = vector.extract_strided_slice %20 {offsets = [0, 128], sizes = [8, 128], strides = [1, 1]} : vector<8x384xf32> to vector<8x128xf32>
    %25 = vector.extract_strided_slice %20 {offsets = [0, 256], sizes = [8, 128], strides = [1, 1]} : vector<8x384xf32> to vector<8x128xf32>
    %26 = arith.mulf %24, %5 : vector<8x128xf32>
    %27 = arith.mulf %23, %22 : vector<8x128xf32>
    %28 = arith.addf %26, %27 : vector<8x128xf32>
    %29 = math.tanh %28 : vector<8x128xf32>
    %30 = arith.mulf %25, %29 : vector<8x128xf32>
    %31 = arith.index_cast %c0_i32_6 : i32 to index
    %c0_12 = arith.constant 0 : index
    %c0_13 = arith.constant 0 : index
    %32 = vector.load %arg5[%31, %c0_12, %c0_13] : memref<8x8x128xf32, #tpu.memory_space<vmem>>, vector<1x8x128xf32>
    %33 = vector.shape_cast %32 : vector<1x8x128xf32> to vector<8x128xf32>
    %34 = vector.shape_cast %30 : vector<8x128xf32> to vector<1x8x128xf32>
    tpu.vector_store %arg5[%31, %c0_12, %c0_13], %34 {strides = array<i32>} : memref<8x8x128xf32, #tpu.memory_space<vmem>>, vector<1x8x128xf32>,
    %c1_i32 = arith.constant 1 : i32
    %35 = arith.index_cast %c1_i32 : i32 to index
    %c0_14 = arith.constant 0 : index
    %c0_15 = arith.constant 0 : index
    %36 = vector.load %arg1[%35, %c0_14, %c0_15] : memref<8x8x512xbf16, #tpu.memory_space<vmem>>, vector<1x8x512xbf16>
    %37 = vector.shape_cast %36 : vector<1x8x512xbf16> to vector<8x512xbf16>
    %38 = arith.extf %37 : vector<8x512xbf16> to vector<8x512xf32>
    %39 = arith.truncf %30 : vector<8x128xf32> to vector<8x128xbf16>
    %cst_16 = arith.constant dense<0.000000e+00> : vector<8x512xf32>
    %40 = tpu.matmul %39, %3, %cst_16 {dimension_numbers = #tpu.dot_dimension_numbers<[1], [0], [0], [1], [0, 0, 1, 1], [], []>} : vector<8x128xbf16>, vector<128x512xbf16>, vector<8x512xf32> -> vector<8x512xf32>
    %41 = arith.addf %38, %40 : vector<8x512xf32>
    %42 = vector.extract_strided_slice %41 {offsets = [0, 0], sizes = [8, 384], strides = [1, 1]} : vector<8x512xf32> to vector<8x384xf32>
    %cst_17 = arith.constant 5.000000e-01 : f32
    %43 = vector.broadcast %cst_17 : f32 to vector<8x384xf32>
    %44 = arith.mulf %43, %42 : vector<8x384xf32>
    %45 = math.tanh %44 : vector<8x384xf32>
    %cst_18 = arith.constant 1.000000e+00 : f32
    %46 = vector.broadcast %cst_18 : f32 to vector<8x384xf32>
    %47 = arith.addf %45, %46 : vector<8x384xf32>
    %cst_19 = arith.constant 5.000000e-01 : f32
    %48 = vector.broadcast %cst_19 : f32 to vector<8x384xf32>
    %49 = arith.mulf %48, %47 : vector<8x384xf32>
    %50 = vector.extract_strided_slice %41 {offsets = [0, 384], sizes = [8, 128], strides = [1, 1]} : vector<8x512xf32> to vector<8x128xf32>
    %51 = math.tanh %50 : vector<8x128xf32>
    %52 = vector.extract_strided_slice %49 {offsets = [0, 0], sizes = [8, 128], strides = [1, 1]} : vector<8x384xf32> to vector<8x128xf32>
    %53 = vector.extract_strided_slice %49 {offsets = [0, 128], sizes = [8, 128], strides = [1, 1]} : vector<8x384xf32> to vector<8x128xf32>
    %54 = vector.extract_strided_slice %49 {offsets = [0, 256], sizes = [8, 128], strides = [1, 1]} : vector<8x384xf32> to vector<8x128xf32>
    %55 = arith.mulf %53, %28 : vector<8x128xf32>
    %56 = arith.mulf %52, %51 : vector<8x128xf32>
    %57 = arith.addf %55, %56 : vector<8x128xf32>
    %58 = math.tanh %57 : vector<8x128xf32>
    %59 = arith.mulf %54, %58 : vector<8x128xf32>
    %60 = arith.index_cast %c1_i32 : i32 to index
    %c0_20 = arith.constant 0 : index
    %c0_21 = arith.constant 0 : index
    %61 = vector.load %arg5[%60, %c0_20, %c0_21] : memref<8x8x128xf32, #tpu.memory_space<vmem>>, vector<1x8x128xf32>
    %62 = vector.shape_cast %61 : vector<1x8x128xf32> to vector<8x128xf32>
    %63 = vector.shape_cast %59 : vector<8x128xf32> to vector<1x8x128xf32>
    tpu.vector_store %arg5[%60, %c0_20, %c0_21], %63 {strides = array<i32>} : memref<8x8x128xf32, #tpu.memory_space<vmem>>, vector<1x8x128xf32>,
    %c2_i32 = arith.constant 2 : i32
    %64 = arith.index_cast %c2_i32 : i32 to index
    %c0_22 = arith.constant 0 : index
    %c0_23 = arith.constant 0 : index
    %65 = vector.load %arg1[%64, %c0_22, %c0_23] : memref<8x8x512xbf16, #tpu.memory_space<vmem>>, vector<1x8x512xbf16>
    %66 = vector.shape_cast %65 : vector<1x8x512xbf16> to vector<8x512xbf16>
    %67 = arith.extf %66 : vector<8x512xbf16> to vector<8x512xf32>
    %68 = arith.truncf %59 : vector<8x128xf32> to vector<8x128xbf16>
    %cst_24 = arith.constant dense<0.000000e+00> : vector<8x512xf32>
    %69 = tpu.matmul %68, %3, %cst_24 {dimension_numbers = #tpu.dot_dimension_numbers<[1], [0], [0], [1], [0, 0, 1, 1], [], []>} : vector<8x128xbf16>, vector<128x512xbf16>, vector<8x512xf32> -> vector<8x512xf32>
    %70 = arith.addf %67, %69 : vector<8x512xf32>
    %71 = vector.extract_strided_slice %70 {offsets = [0, 0], sizes = [8, 384], strides = [1, 1]} : vector<8x512xf32> to vector<8x384xf32>
    %cst_25 = arith.constant 5.000000e-01 : f32
    %72 = vector.broadcast %cst_25 : f32 to vector<8x384xf32>
    %73 = arith.mulf %72, %71 : vector<8x384xf32>
    %74 = math.tanh %73 : vector<8x384xf32>
    %cst_26 = arith.constant 1.000000e+00 : f32
    %75 = vector.broadcast %cst_26 : f32 to vector<8x384xf32>
    %76 = arith.addf %74, %75 : vector<8x384xf32>
    %cst_27 = arith.constant 5.000000e-01 : f32
    %77 = vector.broadcast %cst_27 : f32 to vector<8x384xf32>
    %78 = arith.mulf %77, %76 : vector<8x384xf32>
    %79 = vector.extract_strided_slice %70 {offsets = [0, 384], sizes = [8, 128], strides = [1, 1]} : vector<8x512xf32> to vector<8x128xf32>
    %80 = math.tanh %79 : vector<8x128xf32>
    %81 = vector.extract_strided_slice %78 {offsets = [0, 0], sizes = [8, 128], strides = [1, 1]} : vector<8x384xf32> to vector<8x128xf32>
    %82 = vector.extract_strided_slice %78 {offsets = [0, 128], sizes = [8, 128], strides = [1, 1]} : vector<8x384xf32> to vector<8x128xf32>
    %83 = vector.extract_strided_slice %78 {offsets = [0, 256], sizes = [8, 128], strides = [1, 1]} : vector<8x384xf32> to vector<8x128xf32>
    %84 = arith.mulf %82, %57 : vector<8x128xf32>
    %85 = arith.mulf %81, %80 : vector<8x128xf32>
    %86 = arith.addf %84, %85 : vector<8x128xf32>
    %87 = math.tanh %86 : vector<8x128xf32>
    %88 = arith.mulf %83, %87 : vector<8x128xf32>
    %89 = arith.index_cast %c2_i32 : i32 to index
    %c0_28 = arith.constant 0 : index
    %c0_29 = arith.constant 0 : index
    %90 = vector.load %arg5[%89, %c0_28, %c0_29] : memref<8x8x128xf32, #tpu.memory_space<vmem>>, vector<1x8x128xf32>
    %91 = vector.shape_cast %90 : vector<1x8x128xf32> to vector<8x128xf32>
    %92 = vector.shape_cast %88 : vector<8x128xf32> to vector<1x8x128xf32>
    tpu.vector_store %arg5[%89, %c0_28, %c0_29], %92 {strides = array<i32>} : memref<8x8x128xf32, #tpu.memory_space<vmem>>, vector<1x8x128xf32>,
    %c3_i32 = arith.constant 3 : i32
    %93 = arith.index_cast %c3_i32 : i32 to index
    %c0_30 = arith.constant 0 : index
    %c0_31 = arith.constant 0 : index
    %94 = vector.load %arg1[%93, %c0_30, %c0_31] : memref<8x8x512xbf16, #tpu.memory_space<vmem>>, vector<1x8x512xbf16>
    %95 = vector.shape_cast %94 : vector<1x8x512xbf16> to vector<8x512xbf16>
    %96 = arith.extf %95 : vector<8x512xbf16> to vector<8x512xf32>
    %97 = arith.truncf %88 : vector<8x128xf32> to vector<8x128xbf16>
    %cst_32 = arith.constant dense<0.000000e+00> : vector<8x512xf32>
    %98 = tpu.matmul %97, %3, %cst_32 {dimension_numbers = #tpu.dot_dimension_numbers<[1], [0], [0], [1], [0, 0, 1, 1], [], []>} : vector<8x128xbf16>, vector<128x512xbf16>, vector<8x512xf32> -> vector<8x512xf32>
    %99 = arith.addf %96, %98 : vector<8x512xf32>
    %100 = vector.extract_strided_slice %99 {offsets = [0, 0], sizes = [8, 384], strides = [1, 1]} : vector<8x512xf32> to vector<8x384xf32>
    %cst_33 = arith.constant 5.000000e-01 : f32
    %101 = vector.broadcast %cst_33 : f32 to vector<8x384xf32>
    %102 = arith.mulf %101, %100 : vector<8x384xf32>
    %103 = math.tanh %102 : vector<8x384xf32>
    %cst_34 = arith.constant 1.000000e+00 : f32
    %104 = vector.broadcast %cst_34 : f32 to vector<8x384xf32>
    %105 = arith.addf %103, %104 : vector<8x384xf32>
    %cst_35 = arith.constant 5.000000e-01 : f32
    %106 = vector.broadcast %cst_35 : f32 to vector<8x384xf32>
    %107 = arith.mulf %106, %105 : vector<8x384xf32>
    %108 = vector.extract_strided_slice %99 {offsets = [0, 384], sizes = [8, 128], strides = [1, 1]} : vector<8x512xf32> to vector<8x128xf32>
    %109 = math.tanh %108 : vector<8x128xf32>
    %110 = vector.extract_strided_slice %107 {offsets = [0, 0], sizes = [8, 128], strides = [1, 1]} : vector<8x384xf32> to vector<8x128xf32>
    %111 = vector.extract_strided_slice %107 {offsets = [0, 128], sizes = [8, 128], strides = [1, 1]} : vector<8x384xf32> to vector<8x128xf32>
    %112 = vector.extract_strided_slice %107 {offsets = [0, 256], sizes = [8, 128], strides = [1, 1]} : vector<8x384xf32> to vector<8x128xf32>
    %113 = arith.mulf %111, %86 : vector<8x128xf32>
    %114 = arith.mulf %110, %109 : vector<8x128xf32>
    %115 = arith.addf %113, %114 : vector<8x128xf32>
    %116 = math.tanh %115 : vector<8x128xf32>
    %117 = arith.mulf %112, %116 : vector<8x128xf32>
    %118 = arith.index_cast %c3_i32 : i32 to index
    %c0_36 = arith.constant 0 : index
    %c0_37 = arith.constant 0 : index
    %119 = vector.load %arg5[%118, %c0_36, %c0_37] : memref<8x8x128xf32, #tpu.memory_space<vmem>>, vector<1x8x128xf32>
    %120 = vector.shape_cast %119 : vector<1x8x128xf32> to vector<8x128xf32>
    %121 = vector.shape_cast %117 : vector<8x128xf32> to vector<1x8x128xf32>
    tpu.vector_store %arg5[%118, %c0_36, %c0_37], %121 {strides = array<i32>} : memref<8x8x128xf32, #tpu.memory_space<vmem>>, vector<1x8x128xf32>,
    %c4_i32 = arith.constant 4 : i32
    %122 = arith.index_cast %c4_i32 : i32 to index
    %c0_38 = arith.constant 0 : index
    %c0_39 = arith.constant 0 : index
    %123 = vector.load %arg1[%122, %c0_38, %c0_39] : memref<8x8x512xbf16, #tpu.memory_space<vmem>>, vector<1x8x512xbf16>
    %124 = vector.shape_cast %123 : vector<1x8x512xbf16> to vector<8x512xbf16>
    %125 = arith.extf %124 : vector<8x512xbf16> to vector<8x512xf32>
    %126 = arith.truncf %117 : vector<8x128xf32> to vector<8x128xbf16>
    %cst_40 = arith.constant dense<0.000000e+00> : vector<8x512xf32>
    %127 = tpu.matmul %126, %3, %cst_40 {dimension_numbers = #tpu.dot_dimension_numbers<[1], [0], [0], [1], [0, 0, 1, 1], [], []>} : vector<8x128xbf16>, vector<128x512xbf16>, vector<8x512xf32> -> vector<8x512xf32>
    %128 = arith.addf %125, %127 : vector<8x512xf32>
    %129 = vector.extract_strided_slice %128 {offsets = [0, 0], sizes = [8, 384], strides = [1, 1]} : vector<8x512xf32> to vector<8x384xf32>
    %cst_41 = arith.constant 5.000000e-01 : f32
    %130 = vector.broadcast %cst_41 : f32 to vector<8x384xf32>
    %131 = arith.mulf %130, %129 : vector<8x384xf32>
    %132 = math.tanh %131 : vector<8x384xf32>
    %cst_42 = arith.constant 1.000000e+00 : f32
    %133 = vector.broadcast %cst_42 : f32 to vector<8x384xf32>
    %134 = arith.addf %132, %133 : vector<8x384xf32>
    %cst_43 = arith.constant 5.000000e-01 : f32
    %135 = vector.broadcast %cst_43 : f32 to vector<8x384xf32>
    %136 = arith.mulf %135, %134 : vector<8x384xf32>
    %137 = vector.extract_strided_slice %128 {offsets = [0, 384], sizes = [8, 128], strides = [1, 1]} : vector<8x512xf32> to vector<8x128xf32>
    %138 = math.tanh %137 : vector<8x128xf32>
    %139 = vector.extract_strided_slice %136 {offsets = [0, 0], sizes = [8, 128], strides = [1, 1]} : vector<8x384xf32> to vector<8x128xf32>
    %140 = vector.extract_strided_slice %136 {offsets = [0, 128], sizes = [8, 128], strides = [1, 1]} : vector<8x384xf32> to vector<8x128xf32>
    %141 = vector.extract_strided_slice %136 {offsets = [0, 256], sizes = [8, 128], strides = [1, 1]} : vector<8x384xf32> to vector<8x128xf32>
    %142 = arith.mulf %140, %115 : vector<8x128xf32>
    %143 = arith.mulf %139, %138 : vector<8x128xf32>
    %144 = arith.addf %142, %143 : vector<8x128xf32>
    %145 = math.tanh %144 : vector<8x128xf32>
    %146 = arith.mulf %141, %145 : vector<8x128xf32>
    %147 = arith.index_cast %c4_i32 : i32 to index
    %c0_44 = arith.constant 0 : index
    %c0_45 = arith.constant 0 : index
    %148 = vector.load %arg5[%147, %c0_44, %c0_45] : memref<8x8x128xf32, #tpu.memory_space<vmem>>, vector<1x8x128xf32>
    %149 = vector.shape_cast %148 : vector<1x8x128xf32> to vector<8x128xf32>
    %150 = vector.shape_cast %146 : vector<8x128xf32> to vector<1x8x128xf32>
    tpu.vector_store %arg5[%147, %c0_44, %c0_45], %150 {strides = array<i32>} : memref<8x8x128xf32, #tpu.memory_space<vmem>>, vector<1x8x128xf32>,
    %c5_i32 = arith.constant 5 : i32
    %151 = arith.index_cast %c5_i32 : i32 to index
    %c0_46 = arith.constant 0 : index
    %c0_47 = arith.constant 0 : index
    %152 = vector.load %arg1[%151, %c0_46, %c0_47] : memref<8x8x512xbf16, #tpu.memory_space<vmem>>, vector<1x8x512xbf16>
    %153 = vector.shape_cast %152 : vector<1x8x512xbf16> to vector<8x512xbf16>
    %154 = arith.extf %153 : vector<8x512xbf16> to vector<8x512xf32>
    %155 = arith.truncf %146 : vector<8x128xf32> to vector<8x128xbf16>
    %cst_48 = arith.constant dense<0.000000e+00> : vector<8x512xf32>
    %156 = tpu.matmul %155, %3, %cst_48 {dimension_numbers = #tpu.dot_dimension_numbers<[1], [0], [0], [1], [0, 0, 1, 1], [], []>} : vector<8x128xbf16>, vector<128x512xbf16>, vector<8x512xf32> -> vector<8x512xf32>
    %157 = arith.addf %154, %156 : vector<8x512xf32>
    %158 = vector.extract_strided_slice %157 {offsets = [0, 0], sizes = [8, 384], strides = [1, 1]} : vector<8x512xf32> to vector<8x384xf32>
    %cst_49 = arith.constant 5.000000e-01 : f32
    %159 = vector.broadcast %cst_49 : f32 to vector<8x384xf32>
    %160 = arith.mulf %159, %158 : vector<8x384xf32>
    %161 = math.tanh %160 : vector<8x384xf32>
    %cst_50 = arith.constant 1.000000e+00 : f32
    %162 = vector.broadcast %cst_50 : f32 to vector<8x384xf32>
    %163 = arith.addf %161, %162 : vector<8x384xf32>
    %cst_51 = arith.constant 5.000000e-01 : f32
    %164 = vector.broadcast %cst_51 : f32 to vector<8x384xf32>
    %165 = arith.mulf %164, %163 : vector<8x384xf32>
    %166 = vector.extract_strided_slice %157 {offsets = [0, 384], sizes = [8, 128], strides = [1, 1]} : vector<8x512xf32> to vector<8x128xf32>
    %167 = math.tanh %166 : vector<8x128xf32>
    %168 = vector.extract_strided_slice %165 {offsets = [0, 0], sizes = [8, 128], strides = [1, 1]} : vector<8x384xf32> to vector<8x128xf32>
    %169 = vector.extract_strided_slice %165 {offsets = [0, 128], sizes = [8, 128], strides = [1, 1]} : vector<8x384xf32> to vector<8x128xf32>
    %170 = vector.extract_strided_slice %165 {offsets = [0, 256], sizes = [8, 128], strides = [1, 1]} : vector<8x384xf32> to vector<8x128xf32>
    %171 = arith.mulf %169, %144 : vector<8x128xf32>
    %172 = arith.mulf %168, %167 : vector<8x128xf32>
    %173 = arith.addf %171, %172 : vector<8x128xf32>
    %174 = math.tanh %173 : vector<8x128xf32>
    %175 = arith.mulf %170, %174 : vector<8x128xf32>
    %176 = arith.index_cast %c5_i32 : i32 to index
    %c0_52 = arith.constant 0 : index
    %c0_53 = arith.constant 0 : index
    %177 = vector.load %arg5[%176, %c0_52, %c0_53] : memref<8x8x128xf32, #tpu.memory_space<vmem>>, vector<1x8x128xf32>
    %178 = vector.shape_cast %177 : vector<1x8x128xf32> to vector<8x128xf32>
    %179 = vector.shape_cast %175 : vector<8x128xf32> to vector<1x8x128xf32>
    tpu.vector_store %arg5[%176, %c0_52, %c0_53], %179 {strides = array<i32>} : memref<8x8x128xf32, #tpu.memory_space<vmem>>, vector<1x8x128xf32>,
    %c6_i32 = arith.constant 6 : i32
    %180 = arith.index_cast %c6_i32 : i32 to index
    %c0_54 = arith.constant 0 : index
    %c0_55 = arith.constant 0 : index
    %181 = vector.load %arg1[%180, %c0_54, %c0_55] : memref<8x8x512xbf16, #tpu.memory_space<vmem>>, vector<1x8x512xbf16>
    %182 = vector.shape_cast %181 : vector<1x8x512xbf16> to vector<8x512xbf16>
    %183 = arith.extf %182 : vector<8x512xbf16> to vector<8x512xf32>
    %184 = arith.truncf %175 : vector<8x128xf32> to vector<8x128xbf16>
    %cst_56 = arith.constant dense<0.000000e+00> : vector<8x512xf32>
    %185 = tpu.matmul %184, %3, %cst_56 {dimension_numbers = #tpu.dot_dimension_numbers<[1], [0], [0], [1], [0, 0, 1, 1], [], []>} : vector<8x128xbf16>, vector<128x512xbf16>, vector<8x512xf32> -> vector<8x512xf32>
    %186 = arith.addf %183, %185 : vector<8x512xf32>
    %187 = vector.extract_strided_slice %186 {offsets = [0, 0], sizes = [8, 384], strides = [1, 1]} : vector<8x512xf32> to vector<8x384xf32>
    %cst_57 = arith.constant 5.000000e-01 : f32
    %188 = vector.broadcast %cst_57 : f32 to vector<8x384xf32>
    %189 = arith.mulf %188, %187 : vector<8x384xf32>
    %190 = math.tanh %189 : vector<8x384xf32>
    %cst_58 = arith.constant 1.000000e+00 : f32
    %191 = vector.broadcast %cst_58 : f32 to vector<8x384xf32>
    %192 = arith.addf %190, %191 : vector<8x384xf32>
    %cst_59 = arith.constant 5.000000e-01 : f32
    %193 = vector.broadcast %cst_59 : f32 to vector<8x384xf32>
    %194 = arith.mulf %193, %192 : vector<8x384xf32>
    %195 = vector.extract_strided_slice %186 {offsets = [0, 384], sizes = [8, 128], strides = [1, 1]} : vector<8x512xf32> to vector<8x128xf32>
    %196 = math.tanh %195 : vector<8x128xf32>
    %197 = vector.extract_strided_slice %194 {offsets = [0, 0], sizes = [8, 128], strides = [1, 1]} : vector<8x384xf32> to vector<8x128xf32>
    %198 = vector.extract_strided_slice %194 {offsets = [0, 128], sizes = [8, 128], strides = [1, 1]} : vector<8x384xf32> to vector<8x128xf32>
    %199 = vector.extract_strided_slice %194 {offsets = [0, 256], sizes = [8, 128], strides = [1, 1]} : vector<8x384xf32> to vector<8x128xf32>
    %200 = arith.mulf %198, %173 : vector<8x128xf32>
    %201 = arith.mulf %197, %196 : vector<8x128xf32>
    %202 = arith.addf %200, %201 : vector<8x128xf32>
    %203 = math.tanh %202 : vector<8x128xf32>
    %204 = arith.mulf %199, %203 : vector<8x128xf32>
    %205 = arith.index_cast %c6_i32 : i32 to index
    %c0_60 = arith.constant 0 : index
    %c0_61 = arith.constant 0 : index
    %206 = vector.load %arg5[%205, %c0_60, %c0_61] : memref<8x8x128xf32, #tpu.memory_space<vmem>>, vector<1x8x128xf32>
    %207 = vector.shape_cast %206 : vector<1x8x128xf32> to vector<8x128xf32>
    %208 = vector.shape_cast %204 : vector<8x128xf32> to vector<1x8x128xf32>
    tpu.vector_store %arg5[%205, %c0_60, %c0_61], %208 {strides = array<i32>} : memref<8x8x128xf32, #tpu.memory_space<vmem>>, vector<1x8x128xf32>,
    %c7_i32 = arith.constant 7 : i32
    %209 = arith.index_cast %c7_i32 : i32 to index
    %c0_62 = arith.constant 0 : index
    %c0_63 = arith.constant 0 : index
    %210 = vector.load %arg1[%209, %c0_62, %c0_63] : memref<8x8x512xbf16, #tpu.memory_space<vmem>>, vector<1x8x512xbf16>
    %211 = vector.shape_cast %210 : vector<1x8x512xbf16> to vector<8x512xbf16>
    %212 = arith.extf %211 : vector<8x512xbf16> to vector<8x512xf32>
    %213 = arith.truncf %204 : vector<8x128xf32> to vector<8x128xbf16>
    %cst_64 = arith.constant dense<0.000000e+00> : vector<8x512xf32>
    %214 = tpu.matmul %213, %3, %cst_64 {dimension_numbers = #tpu.dot_dimension_numbers<[1], [0], [0], [1], [0, 0, 1, 1], [], []>} : vector<8x128xbf16>, vector<128x512xbf16>, vector<8x512xf32> -> vector<8x512xf32>
    %215 = arith.addf %212, %214 : vector<8x512xf32>
    %216 = vector.extract_strided_slice %215 {offsets = [0, 0], sizes = [8, 384], strides = [1, 1]} : vector<8x512xf32> to vector<8x384xf32>
    %cst_65 = arith.constant 5.000000e-01 : f32
    %217 = vector.broadcast %cst_65 : f32 to vector<8x384xf32>
    %218 = arith.mulf %217, %216 : vector<8x384xf32>
    %219 = math.tanh %218 : vector<8x384xf32>
    %cst_66 = arith.constant 1.000000e+00 : f32
    %220 = vector.broadcast %cst_66 : f32 to vector<8x384xf32>
    %221 = arith.addf %219, %220 : vector<8x384xf32>
    %cst_67 = arith.constant 5.000000e-01 : f32
    %222 = vector.broadcast %cst_67 : f32 to vector<8x384xf32>
    %223 = arith.mulf %222, %221 : vector<8x384xf32>
    %224 = vector.extract_strided_slice %215 {offsets = [0, 384], sizes = [8, 128], strides = [1, 1]} : vector<8x512xf32> to vector<8x128xf32>
    %225 = math.tanh %224 : vector<8x128xf32>
    %226 = vector.extract_strided_slice %223 {offsets = [0, 0], sizes = [8, 128], strides = [1, 1]} : vector<8x384xf32> to vector<8x128xf32>
    %227 = vector.extract_strided_slice %223 {offsets = [0, 128], sizes = [8, 128], strides = [1, 1]} : vector<8x384xf32> to vector<8x128xf32>
    %228 = vector.extract_strided_slice %223 {offsets = [0, 256], sizes = [8, 128], strides = [1, 1]} : vector<8x384xf32> to vector<8x128xf32>
    %229 = arith.mulf %227, %202 : vector<8x128xf32>
    %230 = arith.mulf %226, %225 : vector<8x128xf32>
    %231 = arith.addf %229, %230 : vector<8x128xf32>
    %232 = math.tanh %231 : vector<8x128xf32>
    %233 = arith.mulf %228, %232 : vector<8x128xf32>
    %234 = arith.index_cast %c7_i32 : i32 to index
    %c0_68 = arith.constant 0 : index
    %c0_69 = arith.constant 0 : index
    %235 = vector.load %arg5[%234, %c0_68, %c0_69] : memref<8x8x128xf32, #tpu.memory_space<vmem>>, vector<1x8x128xf32>
    %236 = vector.shape_cast %235 : vector<1x8x128xf32> to vector<8x128xf32>
    %237 = vector.shape_cast %233 : vector<8x128xf32> to vector<1x8x128xf32>
    tpu.vector_store %arg5[%234, %c0_68, %c0_69], %237 {strides = array<i32>} : memref<8x8x128xf32, #tpu.memory_space<vmem>>, vector<1x8x128xf32>,
    %c8_i32 = arith.constant 8 : i32
    %c0_70 = arith.constant 0 : index
    %c0_71 = arith.constant 0 : index
    %238 = vector.load %arg8[%c0_70, %c0_71] : memref<8x128xf32, #tpu.memory_space<vmem>>, vector<8x128xf32>
    tpu.vector_store %arg8[%c0_70, %c0_71], %233 {strides = array<i32>} : memref<8x128xf32, #tpu.memory_space<vmem>>, vector<8x128xf32>,
    %c0_72 = arith.constant 0 : index
    %c0_73 = arith.constant 0 : index
    %239 = vector.load %arg9[%c0_72, %c0_73] : memref<8x128xf32, #tpu.memory_space<vmem>>, vector<8x128xf32>
    tpu.vector_store %arg9[%c0_72, %c0_73], %231 {strides = array<i32>} : memref<8x128xf32, #tpu.memory_space<vmem>>, vector<8x128xf32>,
    %c0_i32_74 = arith.constant 0 : i32
    %240 = arith.cmpi eq, %arg0, %c0_i32_74 : i32
    %241 = arith.extui %240 : i1 to i32
    %c0_i32_75 = arith.constant 0 : i32
    %242 = arith.cmpi ne, %241, %c0_i32_75 : i32
    scf.if %242 {
      %c0_76 = arith.constant 0 : index
      %c0_77 = arith.constant 0 : index
      %243 = vector.load %arg6[%c0_76, %c0_77] : memref<8x128xf32, #tpu.memory_space<vmem>>, vector<8x128xf32>
      tpu.vector_store %arg6[%c0_76, %c0_77], %233 {strides = array<i32>} : memref<8x128xf32, #tpu.memory_space<vmem>>, vector<8x128xf32>,
      %c0_78 = arith.constant 0 : index
      %c0_79 = arith.constant 0 : index
      %244 = vector.load %arg7[%c0_78, %c0_79] : memref<8x128xf32, #tpu.memory_space<vmem>>, vector<8x128xf32>
      tpu.vector_store %arg7[%c0_78, %c0_79], %231 {strides = array<i32>} : memref<8x128xf32, #tpu.memory_space<vmem>>, vector<8x128xf32>,
    } else {
    }
    return
  }
  func.func @transform_0(%arg0: i32) -> (i32, i32, i32) {
    %c0_i32 = arith.constant 0 : i32
    %c0_i32_0 = arith.constant 0 : i32
    %c0_i32_1 = arith.constant 0 : i32
    return %arg0, %c0_i32, %c0_i32_0 : i32, i32, i32
  }
  func.func @transform_1(%arg0: i32) -> (i32, i32) {
    %c0_i32 = arith.constant 0 : i32
    %c0_i32_0 = arith.constant 0 : i32
    %c0_i32_1 = arith.constant 0 : i32
    return %c0_i32, %c0_i32_0 : i32, i32
  }
  func.func @transform_2(%arg0: i32) -> (i32, i32) {
    %c0_i32 = arith.constant 0 : i32
    %c0_i32_0 = arith.constant 0 : i32
    %c0_i32_1 = arith.constant 0 : i32
    return %c0_i32, %c0_i32_0 : i32, i32
  }
  func.func @transform_3(%arg0: i32) -> (i32, i32) {
    %c0_i32 = arith.constant 0 : i32
    %c0_i32_0 = arith.constant 0 : i32
    %c0_i32_1 = arith.constant 0 : i32
    return %c0_i32, %c0_i32_0 : i32, i32
  }
  func.func @transform_4(%arg0: i32) -> (i32, i32, i32) {
    %c0_i32 = arith.constant 0 : i32
    %c0_i32_0 = arith.constant 0 : i32
    %c0_i32_1 = arith.constant 0 : i32
    return %arg0, %c0_i32, %c0_i32_0 : i32, i32, i32
  }
  func.func @transform_5(%arg0: i32) -> (i32, i32) {
    %c0_i32 = arith.constant 0 : i32
    %c0_i32_0 = arith.constant 0 : i32
    %c0_i32_1 = arith.constant 0 : i32
    return %c0_i32, %c0_i32_0 : i32, i32
  }
  func.func @transform_6(%arg0: i32) -> (i32, i32) {
    %c0_i32 = arith.constant 0 : i32
    %c0_i32_0 = arith.constant 0 : i32
    %c0_i32_1 = arith.constant 0 : i32
    return %c0_i32, %c0_i32_0 : i32, i32
  }
}

</mosaic_0001>

<llo_original>
// kernel: lstm_enc_forward.3
$region0: #{lstm_enc_forward.3}
  #allocation0 [shape = 'u32[]', space=smem, size = 0x4, offset = 0x4, fixed_abs, tag = 'smem constant byte address 0x4 - core index']
  #allocation1 [shape = 'u32[144,128]{1,0:T(1,128)}', space=vmem, size = 0x12000, scoped, tag = 'internal scratch']
  #allocation2 [shape = 'f32[8,128]{1,0:T(8,128)}', space=vmem, size = 0x1000, scoped, tag = 'scratch operand']
  #allocation3 [shape = 'f32[8,128]{1,0:T(8,128)}', space=vmem, size = 0x1000, scoped, tag = 'scratch operand']
  %s0 = inlined_call_operand.vmem [shape: bf16[8,8,512], index: 0, kind: input, shape index: {}]
  %s1 = inlined_call_operand.vmem [shape: bf16[128,512], index: 1, kind: input, shape index: {}]
  %s2 = inlined_call_operand.vmem [shape: f32[8,128], index: 2, kind: input, shape index: {}]
  %s3 = inlined_call_operand.vmem [shape: f32[8,128], index: 3, kind: input, shape index: {}]
  %s4 = inlined_call_operand.vmem [shape: f32[8,8,128], index: 4, kind: output, shape index: {0}]
  %s5 = inlined_call_operand.vmem [shape: f32[8,128], index: 5, kind: output, shape index: {1}]
  %s6 = inlined_call_operand.vmem [shape: f32[8,128], index: 6, kind: output, shape index: {2}]
  %7 = xla_tuple %s4, %s5, %s6
  %s8 = sld [smem:[#allocation0]]
  $region50: #{lstm_enc_forward.3} parent=0
    _
  %s10 = ssub.s32 1, %s8
  %s11 = scalar_select 0, %s10, %s8
  // Predicated region
  $region2: #{lstm_enc_forward.3} parent=0 // pred_check
    _
  $region3: #{lstm_enc_forward.3} parent=0 // pred_check_branch
    %13 = sbr.rel (0) target = $region5
  $region4: #{lstm_enc_forward.3} parent=0 // pred_region
    _
  $region5: #{lstm_enc_forward.3} parent=0 // pred_fallthru
    _
  // Predicated region
  $region6: #{lstm_enc_forward.3} parent=0 // pred_check
    _
  $region7: #{lstm_enc_forward.3} parent=0 // pred_check_branch
    %15 = sbr.rel (0) target = $region9
  $region8: #{lstm_enc_forward.3} parent=0 // pred_region
    _
  $region9: #{lstm_enc_forward.3} parent=0 // pred_fallthru
    _
  // Predicated region
  $region10: #{lstm_enc_forward.3} parent=0 // pred_check
    _
  $region11: #{lstm_enc_forward.3} parent=0 // pred_check_branch
    %17 = sbr.rel (0) target = $region13
  $region12: #{lstm_enc_forward.3} parent=0 // pred_region
    _
  $region13: #{lstm_enc_forward.3} parent=0 // pred_fallthru
    _
  // Predicated region
  $region14: #{lstm_enc_forward.3} parent=0 // pred_check
    _
  $region15: #{lstm_enc_forward.3} parent=0 // pred_check_branch
    %19 = sbr.rel (0) target = $region17
  $region16: #{lstm_enc_forward.3} parent=0 // pred_region
    _
  $region17: #{lstm_enc_forward.3} parent=0 // pred_fallthru
    _
  %p21 = scmp.eq.s32.totalorder 0, 0
  // Predicated region
  $region18: #{lstm_enc_forward.3} parent=0 // pred_check
    %p22 = pneg %p21
  $region19: #{lstm_enc_forward.3} parent=0 // pred_check_branch
    %24 = sbr.rel (%p22) target = $region21
  $region20: #{lstm_enc_forward.3} parent=0 // pred_region
    %v25 = vld [vmem:[%s2] sm:$0xff]
    %26 = vst [vmem:[#allocation2] sm:$0xff] %v25
    %v27 = vld [vmem:[%s3] sm:$0xff]
    %28 = vst [vmem:[#allocation3] sm:$0xff] %v27
  $region21: #{lstm_enc_forward.3} parent=0 // pred_fallthru
    _
  %v29 = vld [vmem:[%s1] sm:$0xff]
  %v30 = vld [vmem:[%s1 + $0x8] sm:$0xff]
  %v31 = vld [vmem:[%s1 + $0x10] sm:$0xff]
  %v32 = vld [vmem:[%s1 + $0x18] sm:$0xff]
  %v33 = vld [vmem:[%s1 + $0x20] sm:$0xff]
  %v34 = vld [vmem:[%s1 + $0x28] sm:$0xff]
  %v35 = vld [vmem:[%s1 + $0x30] sm:$0xff]
  %v36 = vld [vmem:[%s1 + $0x38] sm:$0xff]
  %v37 = vld [vmem:[%s1 + $0x40] sm:$0xff]
  %v38 = vld [vmem:[%s1 + $0x48] sm:$0xff]
  %v39 = vld [vmem:[%s1 + $0x50] sm:$0xff]
  %v40 = vld [vmem:[%s1 + $0x58] sm:$0xff]
  %v41 = vld [vmem:[%s1 + $0x60] sm:$0xff]
  %v42 = vld [vmem:[%s1 + $0x68] sm:$0xff]
  %v43 = vld [vmem:[%s1 + $0x70] sm:$0xff]
  %v44 = vld [vmem:[%s1 + $0x78] sm:$0xff]
  %v45 = vld [vmem:[%s1 + $0x80] sm:$0xff]
  %v46 = vld [vmem:[%s1 + $0x88] sm:$0xff]
  %v47 = vld [vmem:[%s1 + $0x90] sm:$0xff]
  %v48 = vld [vmem:[%s1 + $0x98] sm:$0xff]
  %v49 = vld [vmem:[%s1 + $0xa0] sm:$0xff]
  %v50 = vld [vmem:[%s1 + $0xa8] sm:$0xff]
  %v51 = vld [vmem:[%s1 + $0xb0] sm:$0xff]
  %v52 = vld [vmem:[%s1 + $0xb8] sm:$0xff]
  %v53 = vld [vmem:[%s1 + $0xc0] sm:$0xff]
  %v54 = vld [vmem:[%s1 + $0xc8] sm:$0xff]
  %v55 = vld [vmem:[%s1 + $0xd0] sm:$0xff]
  %v56 = vld [vmem:[%s1 + $0xd8] sm:$0xff]
  %v57 = vld [vmem:[%s1 + $0xe0] sm:$0xff]
  %v58 = vld [vmem:[%s1 + $0xe8] sm:$0xff]
  %v59 = vld [vmem:[%s1 + $0xf0] sm:$0xff]
  %v60 = vld [vmem:[%s1 + $0xf8] sm:$0xff]
  %v61 = vld [vmem:[#allocation2] sm:$0xff]
  %v62 = vld [vmem:[#allocation3] sm:$0xff]
  %v63 = vld [vmem:[%s0] sm:$0xff]
  %v64 = vld [vmem:[%s0 + $0x8] sm:$0xff]
  %v65 = vunpack.c.l.bf16 %v63
  %v66 = vunpack.c.h.bf16 %v63
  %v67 = vunpack.c.l.bf16 %v64
  %v68 = vunpack.c.h.bf16 %v64
  %v69 = vpack.c.bf16 %v61, %v61
  %v102 = vunpack.c.l.b16 %v29
  %v103 = vunpack.c.h.b16 %v29
  %v104 = vunpack.c.l.b16 %v30
  %v105 = vunpack.c.h.b16 %v30
  %v106 = vunpack.c.l.b16 %v31
  %v107 = vunpack.c.h.b16 %v31
  %v108 = vunpack.c.l.b16 %v32
  %v109 = vunpack.c.h.b16 %v32
  %v110 = vunpack.c.l.b16 %v33
  %v111 = vunpack.c.h.b16 %v33
  %v112 = vunpack.c.l.b16 %v34
  %v113 = vunpack.c.h.b16 %v34
  %v114 = vunpack.c.l.b16 %v35
  %v115 = vunpack.c.h.b16 %v35
  %v116 = vunpack.c.l.b16 %v36
  %v117 = vunpack.c.h.b16 %v36
  %v118 = vunpack.c.l.b16 %v37
  %v119 = vunpack.c.h.b16 %v37
  %v120 = vunpack.c.l.b16 %v38
  %v121 = vunpack.c.h.b16 %v38
  %v122 = vunpack.c.l.b16 %v39
  %v123 = vunpack.c.h.b16 %v39
  %v124 = vunpack.c.l.b16 %v40
  %v125 = vunpack.c.h.b16 %v40
  %v126 = vunpack.c.l.b16 %v41
  %v127 = vunpack.c.h.b16 %v41
  %v128 = vunpack.c.l.b16 %v42
  %v129 = vunpack.c.h.b16 %v42
  %v130 = vunpack.c.l.b16 %v43
  %v131 = vunpack.c.h.b16 %v43
  %v132 = vunpack.c.l.b16 %v44
  %v133 = vunpack.c.h.b16 %v44
  %v134 = vunpack.c.l.b16 %v45
  %v135 = vunpack.c.h.b16 %v45
  %v136 = vunpack.c.l.b16 %v46
  %v137 = vunpack.c.h.b16 %v46
  %v138 = vunpack.c.l.b16 %v47
  %v139 = vunpack.c.h.b16 %v47
  %v140 = vunpack.c.l.b16 %v48
  %v141 = vunpack.c.h.b16 %v48
  %v142 = vunpack.c.l.b16 %v49
  %v143 = vunpack.c.h.b16 %v49
  %v144 = vunpack.c.l.b16 %v50
  %v145 = vunpack.c.h.b16 %v50
  %v146 = vunpack.c.l.b16 %v51
  %v147 = vunpack.c.h.b16 %v51
  %v148 = vunpack.c.l.b16 %v52
  %v149 = vunpack.c.h.b16 %v52
  %v150 = vunpack.c.l.b16 %v53
  %v151 = vunpack.c.h.b16 %v53
  %v152 = vunpack.c.l.b16 %v54
  %v153 = vunpack.c.h.b16 %v54
  %v154 = vunpack.c.l.b16 %v55
  %v155 = vunpack.c.h.b16 %v55
  %v156 = vunpack.c.l.b16 %v56
  %v157 = vunpack.c.h.b16 %v56
  %v158 = vunpack.c.l.b16 %v57
  %v159 = vunpack.c.h.b16 %v57
  %v160 = vunpack.c.l.b16 %v58
  %v161 = vunpack.c.h.b16 %v58
  %v162 = vunpack.c.l.b16 %v59
  %v163 = vunpack.c.h.b16 %v59
  %v164 = vunpack.c.l.b16 %v60
  %v165 = vunpack.c.h.b16 %v60
  %v166 = vpack.c.b16 %v106, %v102
  %v167 = vpack.c.b16 %v107, %v103
  %v168 = vpack.c.b16 %v108, %v104
  %v169 = vpack.c.b16 %v109, %v105
  %v170 = vpack.c.b16 %v114, %v110
  %v171 = vpack.c.b16 %v115, %v111
  %v172 = vpack.c.b16 %v116, %v112
  %v173 = vpack.c.b16 %v117, %v113
  %v174 = vpack.c.b16 %v122, %v118
  %v175 = vpack.c.b16 %v123, %v119
  %v176 = vpack.c.b16 %v124, %v120
  %v177 = vpack.c.b16 %v125, %v121
  %v178 = vpack.c.b16 %v130, %v126
  %v179 = vpack.c.b16 %v131, %v127
  %v180 = vpack.c.b16 %v132, %v128
  %v181 = vpack.c.b16 %v133, %v129
  %v182 = vpack.c.b16 %v138, %v134
  %v183 = vpack.c.b16 %v139, %v135
  %v184 = vpack.c.b16 %v140, %v136
  %v185 = vpack.c.b16 %v141, %v137
  %v186 = vpack.c.b16 %v146, %v142
  %v187 = vpack.c.b16 %v147, %v143
  %v188 = vpack.c.b16 %v148, %v144
  %v189 = vpack.c.b16 %v149, %v145
  %v190 = vpack.c.b16 %v154, %v150
  %v191 = vpack.c.b16 %v155, %v151
  %v192 = vpack.c.b16 %v156, %v152
  %v193 = vpack.c.b16 %v157, %v153
  %v194 = vpack.c.b16 %v162, %v158
  %v195 = vpack.c.b16 %v163, %v159
  %v196 = vpack.c.b16 %v164, %v160
  %v197 = vpack.c.b16 %v165, %v161
  %230 = vmatprep.subr.bf16.mxu0 %v167
  %231 = vmatpush1.bf16.msra.mxu0 %v166
  %232 = vmatprep.subr.bf16.mxu0 %v171
  %233 = vmatpush1.bf16.msra.mxu0 %v170
  %234 = vmatprep.subr.bf16.mxu0 %v175
  %235 = vmatpush1.bf16.msra.mxu0 %v174
  %236 = vmatprep.subr.bf16.mxu0 %v179
  %237 = vmatpush1.bf16.msra.mxu0 %v178
  %238 = vmatprep.subr.bf16.mxu0 %v183
  %239 = vmatpush1.bf16.msra.mxu0 %v182
  %240 = vmatprep.subr.bf16.mxu0 %v187
  %241 = vmatpush1.bf16.msra.mxu0 %v186
  %242 = vmatprep.subr.bf16.mxu0 %v191
  %243 = vmatpush1.bf16.msra.mxu0 %v190
  %244 = vmatprep.subr.bf16.mxu0 %v195
  %245 = vmatpush1.bf16.msra.mxu0 %v194
  %246 = vmatprep.subr.bf16.mxu0 0
  %247 = vmatpush1.bf16.msra.mxu0 0
  %248 = vmatprep.subr.bf16.mxu0 0
  %249 = vmatpush1.bf16.msra.mxu0 0
  %250 = vmatprep.subr.bf16.mxu0 0
  %251 = vmatpush1.bf16.msra.mxu0 0
  %252 = vmatprep.subr.bf16.mxu0 0
  %253 = vmatpush1.bf16.msra.mxu0 0
  %254 = vmatprep.subr.bf16.mxu0 0
  %255 = vmatpush1.bf16.msra.mxu0 0
  %256 = vmatprep.subr.bf16.mxu0 0
  %257 = vmatpush1.bf16.msra.mxu0 0
  %258 = vmatprep.subr.bf16.mxu0 0
  %259 = vmatpush1.bf16.msra.mxu0 0
  %260 = vmatprep.subr.bf16.mxu0 0
  %261 = vmatpush1.bf16.msra.mxu0 0
  %262 = vmatprep.mubr.bf16.mxu0 0
  %263 = vmatmul.mubr.bf16.gmra.mrb[0].mxu0 %v69
  %v264 = vpop.f32.mrb[0].mxu0
  %v265 = vadd.f32 0.0, %v264
  %v266 = vpop.f32.mrb[0].mxu0
  %v267 = vadd.f32 0.0, %v266
  %v268 = vpop.f32.mrb[0].mxu0
  %v269 = vpop.f32.mrb[0].mxu0
  %270 = vdwg.mxu0
  %271 = vmatprep.subr.bf16.mxu0 %v169
  %272 = vmatpush1.bf16.msra.mxu0 %v168
  %273 = vmatprep.subr.bf16.mxu0 %v173
  %274 = vmatpush1.bf16.msra.mxu0 %v172
  %275 = vmatprep.subr.bf16.mxu0 %v177
  %276 = vmatpush1.bf16.msra.mxu0 %v176
  %277 = vmatprep.subr.bf16.mxu0 %v181
  %278 = vmatpush1.bf16.msra.mxu0 %v180
  %279 = vmatprep.subr.bf16.mxu0 %v185
  %280 = vmatpush1.bf16.msra.mxu0 %v184
  %281 = vmatprep.subr.bf16.mxu0 %v189
  %282 = vmatpush1.bf16.msra.mxu0 %v188
  %283 = vmatprep.subr.bf16.mxu0 %v193
  %284 = vmatpush1.bf16.msra.mxu0 %v192
  %285 = vmatprep.subr.bf16.mxu0 %v197
  %286 = vmatpush1.bf16.msra.mxu0 %v196
  %287 = vmatprep.subr.bf16.mxu0 0
  %288 = vmatpush1.bf16.msra.mxu0 0
  %289 = vmatprep.subr.bf16.mxu0 0
  %290 = vmatpush1.bf16.msra.mxu0 0
  %291 = vmatprep.subr.bf16.mxu0 0
  %292 = vmatpush1.bf16.msra.mxu0 0
  %293 = vmatprep.subr.bf16.mxu0 0
  %294 = vmatpush1.bf16.msra.mxu0 0
  %295 = vmatprep.subr.bf16.mxu0 0
  %296 = vmatpush1.bf16.msra.mxu0 0
  %297 = vmatprep.subr.bf16.mxu0 0
  %298 = vmatpush1.bf16.msra.mxu0 0
  %299 = vmatprep.subr.bf16.mxu0 0
  %300 = vmatpush1.bf16.msra.mxu0 0
  %301 = vmatprep.subr.bf16.mxu0 0
  %302 = vmatpush1.bf16.msra.mxu0 0
  %303 = vmatprep.mubr.bf16.mxu0 0
  %304 = vmatmul.mubr.bf16.gmra.mrb[0].mxu0 %v69
  %v305 = vpop.f32.mrb[0].mxu0
  %v306 = vadd.f32 0.0, %v305
  %v307 = vpop.f32.mrb[0].mxu0
  %v308 = vadd.f32 0.0, %v307
  %v309 = vpop.f32.mrb[0].mxu0
  %v310 = vpop.f32.mrb[0].mxu0
  %311 = vdwg.mxu0
  %v312 = vadd.f32 %v65, %v265
  %v313 = vadd.f32 %v66, %v267
  %v314 = vadd.f32 %v67, %v306
  %v315 = vadd.f32 %v68, %v308
  %v316 = vmul.f32 %v312, 0.5
  %v317 = vmul.f32 %v313, 0.5
  %v318 = vmul.f32 %v314, 0.5
  %v319 = vtanh.pop %v316
  %v320 = vtanh.pop %v317
  %v321 = vtanh.pop %v318
  %v322 = vadd.f32 %v319, 1.0
  %v323 = vadd.f32 %v320, 1.0
  %v324 = vadd.f32 %v321, 1.0
  %v325 = vmul.f32 %v322, 0.5
  %v326 = vmul.f32 %v323, 0.5
  %v327 = vmul.f32 %v324, 0.5
  %v328 = vtanh.pop %v315
  %v329 = vmul.f32 %v326, %v62
  %v330 = vmul.f32 %v325, %v328
  %v331 = vadd.f32 %v329, %v330
  %v332 = vtanh.pop %v331
  %v333 = vmul.f32 %v327, %v332
  %334 = vst [vmem:[%s4] sm:$0xff] %v333
  %s335 = scalar_lea.vmem %s0, 16
  %v336 = vld [vmem:[%s335] sm:$0xff]
  %v337 = vld [vmem:[%s335 + $0x8] sm:$0xff]
  %v338 = vunpack.c.l.bf16 %v336
  %v339 = vunpack.c.h.bf16 %v336
  %v340 = vunpack.c.l.bf16 %v337
  %v341 = vunpack.c.h.bf16 %v337
  %v342 = vpack.c.bf16 %v333, %v333
  %343 = vmatprep.subr.bf16.mxu0 %v167
  %344 = vmatpush1.bf16.msra.mxu0 %v166
  %345 = vmatprep.subr.bf16.mxu0 %v171
  %346 = vmatpush1.bf16.msra.mxu0 %v170
  %347 = vmatprep.subr.bf16.mxu0 %v175
  %348 = vmatpush1.bf16.msra.mxu0 %v174
  %349 = vmatprep.subr.bf16.mxu0 %v179
  %350 = vmatpush1.bf16.msra.mxu0 %v178
  %351 = vmatprep.subr.bf16.mxu0 %v183
  %352 = vmatpush1.bf16.msra.mxu0 %v182
  %353 = vmatprep.subr.bf16.mxu0 %v187
  %354 = vmatpush1.bf16.msra.mxu0 %v186
  %355 = vmatprep.subr.bf16.mxu0 %v191
  %356 = vmatpush1.bf16.msra.mxu0 %v190
  %357 = vmatprep.subr.bf16.mxu0 %v195
  %358 = vmatpush1.bf16.msra.mxu0 %v194
  %359 = vmatprep.subr.bf16.mxu0 0
  %360 = vmatpush1.bf16.msra.mxu0 0
  %361 = vmatprep.subr.bf16.mxu0 0
  %362 = vmatpush1.bf16.msra.mxu0 0
  %363 = vmatprep.subr.bf16.mxu0 0
  %364 = vmatpush1.bf16.msra.mxu0 0
  %365 = vmatprep.subr.bf16.mxu0 0
  %366 = vmatpush1.bf16.msra.mxu0 0
  %367 = vmatprep.subr.bf16.mxu0 0
  %368 = vmatpush1.bf16.msra.mxu0 0
  %369 = vmatprep.subr.bf16.mxu0 0
  %370 = vmatpush1.bf16.msra.mxu0 0
  %371 = vmatprep.subr.bf16.mxu0 0
  %372 = vmatpush1.bf16.msra.mxu0 0
  %373 = vmatprep.subr.bf16.mxu0 0
  %374 = vmatpush1.bf16.msra.mxu0 0
  %375 = vmatprep.mubr.bf16.mxu0 0
  %376 = vmatmul.mubr.bf16.gmra.mrb[0].mxu0 %v342
  %v377 = vpop.f32.mrb[0].mxu0
  %v378 = vadd.f32 0.0, %v377
  %v379 = vpop.f32.mrb[0].mxu0
  %v380 = vadd.f32 0.0, %v379
  %v381 = vpop.f32.mrb[0].mxu0
  %v382 = vpop.f32.mrb[0].mxu0
  %383 = vdwg.mxu0
  %384 = vmatprep.subr.bf16.mxu0 %v169
  %385 = vmatpush1.bf16.msra.mxu0 %v168
  %386 = vmatprep.subr.bf16.mxu0 %v173
  %387 = vmatpush1.bf16.msra.mxu0 %v172
  %388 = vmatprep.subr.bf16.mxu0 %v177
  %389 = vmatpush1.bf16.msra.mxu0 %v176
  %390 = vmatprep.subr.bf16.mxu0 %v181
  %391 = vmatpush1.bf16.msra.mxu0 %v180
  %392 = vmatprep.subr.bf16.mxu0 %v185
  %393 = vmatpush1.bf16.msra.mxu0 %v184
  %394 = vmatprep.subr.bf16.mxu0 %v189
  %395 = vmatpush1.bf16.msra.mxu0 %v188
  %396 = vmatprep.subr.bf16.mxu0 %v193
  %397 = vmatpush1.bf16.msra.mxu0 %v192
  %398 = vmatprep.subr.bf16.mxu0 %v197
  %399 = vmatpush1.bf16.msra.mxu0 %v196
  %400 = vmatprep.subr.bf16.mxu0 0
  %401 = vmatpush1.bf16.msra.mxu0 0
  %402 = vmatprep.subr.bf16.mxu0 0
  %403 = vmatpush1.bf16.msra.mxu0 0
  %404 = vmatprep.subr.bf16.mxu0 0
  %405 = vmatpush1.bf16.msra.mxu0 0
  %406 = vmatprep.subr.bf16.mxu0 0
  %407 = vmatpush1.bf16.msra.mxu0 0
  %408 = vmatprep.subr.bf16.mxu0 0
  %409 = vmatpush1.bf16.msra.mxu0 0
  %410 = vmatprep.subr.bf16.mxu0 0
  %411 = vmatpush1.bf16.msra.mxu0 0
  %412 = vmatprep.subr.bf16.mxu0 0
  %413 = vmatpush1.bf16.msra.mxu0 0
  %414 = vmatprep.subr.bf16.mxu0 0
  %415 = vmatpush1.bf16.msra.mxu0 0
  %416 = vmatprep.mubr.bf16.mxu0 0
  %417 = vmatmul.mubr.bf16.gmra.mrb[0].mxu0 %v342
  %v418 = vpop.f32.mrb[0].mxu0
  %v419 = vadd.f32 0.0, %v418
  %v420 = vpop.f32.mrb[0].mxu0
  %v421 = vadd.f32 0.0, %v420
  %v422 = vpop.f32.mrb[0].mxu0
  %v423 = vpop.f32.mrb[0].mxu0
  %424 = vdwg.mxu0
  %v425 = vadd.f32 %v338, %v378
  %v426 = vadd.f32 %v339, %v380
  %v427 = vadd.f32 %v340, %v419
  %v428 = vadd.f32 %v341, %v421
  %v429 = vmul.f32 %v425, 0.5
  %v430 = vmul.f32 %v426, 0.5
  %v431 = vmul.f32 %v427, 0.5
  %v432 = vtanh.pop %v429
  %v433 = vtanh.pop %v430
  %v434 = vtanh.pop %v431
  %v435 = vadd.f32 %v432, 1.0
  %v436 = vadd.f32 %v433, 1.0
  %v437 = vadd.f32 %v434, 1.0
  %v438 = vmul.f32 %v435, 0.5
  %v439 = vmul.f32 %v436, 0.5
  %v440 = vmul.f32 %v437, 0.5
  %v441 = vtanh.pop %v428
  %v442 = vmul.f32 %v439, %v331
  %v443 = vmul.f32 %v438, %v441
  %v444 = vadd.f32 %v442, %v443
  %v445 = vtanh.pop %v444
  %v446 = vmul.f32 %v440, %v445
  %s447 = scalar_lea.vmem %s4, 8
  %448 = vst [vmem:[%s447] sm:$0xff] %v446
  %s449 = scalar_lea.vmem %s0, 32
  %v450 = vld [vmem:[%s449] sm:$0xff]
  %v451 = vld [vmem:[%s449 + $0x8] sm:$0xff]
  %v452 = vunpack.c.l.bf16 %v450
  %v453 = vunpack.c.h.bf16 %v450
  %v454 = vunpack.c.l.bf16 %v451
  %v455 = vunpack.c.h.bf16 %v451
  %v456 = vpack.c.bf16 %v446, %v446
  %457 = vmatprep.subr.bf16.mxu0 %v167
  %458 = vmatpush1.bf16.msra.mxu0 %v166
  %459 = vmatprep.subr.bf16.mxu0 %v171
  %460 = vmatpush1.bf16.msra.mxu0 %v170
  %461 = vmatprep.subr.bf16.mxu0 %v175
  %462 = vmatpush1.bf16.msra.mxu0 %v174
  %463 = vmatprep.subr.bf16.mxu0 %v179
  %464 = vmatpush1.bf16.msra.mxu0 %v178
  %465 = vmatprep.subr.bf16.mxu0 %v183
  %466 = vmatpush1.bf16.msra.mxu0 %v182
  %467 = vmatprep.subr.bf16.mxu0 %v187
  %468 = vmatpush1.bf16.msra.mxu0 %v186
  %469 = vmatprep.subr.bf16.mxu0 %v191
  %470 = vmatpush1.bf16.msra.mxu0 %v190
  %471 = vmatprep.subr.bf16.mxu0 %v195
  %472 = vmatpush1.bf16.msra.mxu0 %v194
  %473 = vmatprep.subr.bf16.mxu0 0
  %474 = vmatpush1.bf16.msra.mxu0 0
  %475 = vmatprep.subr.bf16.mxu0 0
  %476 = vmatpush1.bf16.msra.mxu0 0
  %477 = vmatprep.subr.bf16.mxu0 0
  %478 = vmatpush1.bf16.msra.mxu0 0
  %479 = vmatprep.subr.bf16.mxu0 0
  %480 = vmatpush1.bf16.msra.mxu0 0
  %481 = vmatprep.subr.bf16.mxu0 0
  %482 = vmatpush1.bf16.msra.mxu0 0
  %483 = vmatprep.subr.bf16.mxu0 0
  %484 = vmatpush1.bf16.msra.mxu0 0
  %485 = vmatprep.subr.bf16.mxu0 0
  %486 = vmatpush1.bf16.msra.mxu0 0
  %487 = vmatprep.subr.bf16.mxu0 0
  %488 = vmatpush1.bf16.msra.mxu0 0
  %489 = vmatprep.mubr.bf16.mxu0 0
  %490 = vmatmul.mubr.bf16.gmra.mrb[0].mxu0 %v456
  %v491 = vpop.f32.mrb[0].mxu0
  %v492 = vadd.f32 0.0, %v491
  %v493 = vpop.f32.mrb[0].mxu0
  %v494 = vadd.f32 0.0, %v493
  %v495 = vpop.f32.mrb[0].mxu0
  %v496 = vpop.f32.mrb[0].mxu0
  %497 = vdwg.mxu0
  %498 = vmatprep.subr.bf16.mxu0 %v169
  %499 = vmatpush1.bf16.msra.mxu0 %v168
  %500 = vmatprep.subr.bf16.mxu0 %v173
  %501 = vmatpush1.bf16.msra.mxu0 %v172
  %502 = vmatprep.subr.bf16.mxu0 %v177
  %503 = vmatpush1.bf16.msra.mxu0 %v176
  %504 = vmatprep.subr.bf16.mxu0 %v181
  %505 = vmatpush1.bf16.msra.mxu0 %v180
  %506 = vmatprep.subr.bf16.mxu0 %v185
  %507 = vmatpush1.bf16.msra.mxu0 %v184
  %508 = vmatprep.subr.bf16.mxu0 %v189
  %509 = vmatpush1.bf16.msra.mxu0 %v188
  %510 = vmatprep.subr.bf16.mxu0 %v193
  %511 = vmatpush1.bf16.msra.mxu0 %v192
  %512 = vmatprep.subr.bf16.mxu0 %v197
  %513 = vmatpush1.bf16.msra.mxu0 %v196
  %514 = vmatprep.subr.bf16.mxu0 0
  %515 = vmatpush1.bf16.msra.mxu0 0
  %516 = vmatprep.subr.bf16.mxu0 0
  %517 = vmatpush1.bf16.msra.mxu0 0
  %518 = vmatprep.subr.bf16.mxu0 0
  %519 = vmatpush1.bf16.msra.mxu0 0
  %520 = vmatprep.subr.bf16.mxu0 0
  %521 = vmatpush1.bf16.msra.mxu0 0
  %522 = vmatprep.subr.bf16.mxu0 0
  %523 = vmatpush1.bf16.msra.mxu0 0
  %524 = vmatprep.subr.bf16.mxu0 0
  %525 = vmatpush1.bf16.msra.mxu0 0
  %526 = vmatprep.subr.bf16.mxu0 0
  %527 = vmatpush1.bf16.msra.mxu0 0
  %528 = vmatprep.subr.bf16.mxu0 0
  %529 = vmatpush1.bf16.msra.mxu0 0
  %530 = vmatprep.mubr.bf16.mxu0 0
  %531 = vmatmul.mubr.bf16.gmra.mrb[0].mxu0 %v456
  %v532 = vpop.f32.mrb[0].mxu0
  %v533 = vadd.f32 0.0, %v532
  %v534 = vpop.f32.mrb[0].mxu0
  %v535 = vadd.f32 0.0, %v534
  %v536 = vpop.f32.mrb[0].mxu0
  %v537 = vpop.f32.mrb[0].mxu0
  %538 = vdwg.mxu0
  %v539 = vadd.f32 %v452, %v492
  %v540 = vadd.f32 %v453, %v494
  %v541 = vadd.f32 %v454, %v533
  %v542 = vadd.f32 %v455, %v535
  %v543 = vmul.f32 %v539, 0.5
  %v544 = vmul.f32 %v540, 0.5
  %v545 = vmul.f32 %v541, 0.5
  %v546 = vtanh.pop %v543
  %v547 = vtanh.pop %v544
  %v548 = vtanh.pop %v545
  %v549 = vadd.f32 %v546, 1.0
  %v550 = vadd.f32 %v547, 1.0
  %v551 = vadd.f32 %v548, 1.0
  %v552 = vmul.f32 %v549, 0.5
  %v553 = vmul.f32 %v550, 0.5
  %v554 = vmul.f32 %v551, 0.5
  %v555 = vtanh.pop %v542
  %v556 = vmul.f32 %v553, %v444
  %v557 = vmul.f32 %v552, %v555
  %v558 = vadd.f32 %v556, %v557
  %v559 = vtanh.pop %v558
  %v560 = vmul.f32 %v554, %v559
  %s561 = scalar_lea.vmem %s4, 16
  %562 = vst [vmem:[%s561] sm:$0xff] %v560
  %s563 = scalar_lea.vmem %s0, 48
  %v564 = vld [vmem:[%s563] sm:$0xff]
  %v565 = vld [vmem:[%s563 + $0x8] sm:$0xff]
  %v566 = vunpack.c.l.bf16 %v564
  %v567 = vunpack.c.h.bf16 %v564
  %v568 = vunpack.c.l.bf16 %v565
  %v569 = vunpack.c.h.bf16 %v565
  %v570 = vpack.c.bf16 %v560, %v560
  %571 = vmatprep.subr.bf16.mxu0 %v167
  %572 = vmatpush1.bf16.msra.mxu0 %v166
  %573 = vmatprep.subr.bf16.mxu0 %v171
  %574 = vmatpush1.bf16.msra.mxu0 %v170
  %575 = vmatprep.subr.bf16.mxu0 %v175
  %576 = vmatpush1.bf16.msra.mxu0 %v174
  %577 = vmatprep.subr.bf16.mxu0 %v179
  %578 = vmatpush1.bf16.msra.mxu0 %v178
  %579 = vmatprep.subr.bf16.mxu0 %v183
  %580 = vmatpush1.bf16.msra.mxu0 %v182
  %581 = vmatprep.subr.bf16.mxu0 %v187
  %582 = vmatpush1.bf16.msra.mxu0 %v186
  %583 = vmatprep.subr.bf16.mxu0 %v191
  %584 = vmatpush1.bf16.msra.mxu0 %v190
  %585 = vmatprep.subr.bf16.mxu0 %v195
  %586 = vmatpush1.bf16.msra.mxu0 %v194
  %587 = vmatprep.subr.bf16.mxu0 0
  %588 = vmatpush1.bf16.msra.mxu0 0
  %589 = vmatprep.subr.bf16.mxu0 0
  %590 = vmatpush1.bf16.msra.mxu0 0
  %591 = vmatprep.subr.bf16.mxu0 0
  %592 = vmatpush1.bf16.msra.mxu0 0
  %593 = vmatprep.subr.bf16.mxu0 0
  %594 = vmatpush1.bf16.msra.mxu0 0
  %595 = vmatprep.subr.bf16.mxu0 0
  %596 = vmatpush1.bf16.msra.mxu0 0
  %597 = vmatprep.subr.bf16.mxu0 0
  %598 = vmatpush1.bf16.msra.mxu0 0
  %599 = vmatprep.subr.bf16.mxu0 0
  %600 = vmatpush1.bf16.msra.mxu0 0
  %601 = vmatprep.subr.bf16.mxu0 0
  %602 = vmatpush1.bf16.msra.mxu0 0
  %603 = vmatprep.mubr.bf16.mxu0 0
  %604 = vmatmul.mubr.bf16.gmra.mrb[0].mxu0 %v570
  %v605 = vpop.f32.mrb[0].mxu0
  %v606 = vadd.f32 0.0, %v605
  %v607 = vpop.f32.mrb[0].mxu0
  %v608 = vadd.f32 0.0, %v607
  %v609 = vpop.f32.mrb[0].mxu0
  %v610 = vpop.f32.mrb[0].mxu0
  %611 = vdwg.mxu0
  %612 = vmatprep.subr.bf16.mxu0 %v169
  %613 = vmatpush1.bf16.msra.mxu0 %v168
  %614 = vmatprep.subr.bf16.mxu0 %v173
  %615 = vmatpush1.bf16.msra.mxu0 %v172
  %616 = vmatprep.subr.bf16.mxu0 %v177
  %617 = vmatpush1.bf16.msra.mxu0 %v176
  %618 = vmatprep.subr.bf16.mxu0 %v181
  %619 = vmatpush1.bf16.msra.mxu0 %v180
  %620 = vmatprep.subr.bf16.mxu0 %v185
  %621 = vmatpush1.bf16.msra.mxu0 %v184
  %622 = vmatprep.subr.bf16.mxu0 %v189
  %623 = vmatpush1.bf16.msra.mxu0 %v188
  %624 = vmatprep.subr.bf16.mxu0 %v193
  %625 = vmatpush1.bf16.msra.mxu0 %v192
  %626 = vmatprep.subr.bf16.mxu0 %v197
  %627 = vmatpush1.bf16.msra.mxu0 %v196
  %628 = vmatprep.subr.bf16.mxu0 0
  %629 = vmatpush1.bf16.msra.mxu0 0
  %630 = vmatprep.subr.bf16.mxu0 0
  %631 = vmatpush1.bf16.msra.mxu0 0
  %632 = vmatprep.subr.bf16.mxu0 0
  %633 = vmatpush1.bf16.msra.mxu0 0
  %634 = vmatprep.subr.bf16.mxu0 0
  %635 = vmatpush1.bf16.msra.mxu0 0
  %636 = vmatprep.subr.bf16.mxu0 0
  %637 = vmatpush1.bf16.msra.mxu0 0
  %638 = vmatprep.subr.bf16.mxu0 0
  %639 = vmatpush1.bf16.msra.mxu0 0
  %640 = vmatprep.subr.bf16.mxu0 0
  %641 = vmatpush1.bf16.msra.mxu0 0
  %642 = vmatprep.subr.bf16.mxu0 0
  %643 = vmatpush1.bf16.msra.mxu0 0
  %644 = vmatprep.mubr.bf16.mxu0 0
  %645 = vmatmul.mubr.bf16.gmra.mrb[0].mxu0 %v570
  %v646 = vpop.f32.mrb[0].mxu0
  %v647 = vadd.f32 0.0, %v646
  %v648 = vpop.f32.mrb[0].mxu0
  %v649 = vadd.f32 0.0, %v648
  %v650 = vpop.f32.mrb[0].mxu0
  %v651 = vpop.f32.mrb[0].mxu0
  %652 = vdwg.mxu0
  %v653 = vadd.f32 %v566, %v606
  %v654 = vadd.f32 %v567, %v608
  %v655 = vadd.f32 %v568, %v647
  %v656 = vadd.f32 %v569, %v649
  %v657 = vmul.f32 %v653, 0.5
  %v658 = vmul.f32 %v654, 0.5
  %v659 = vmul.f32 %v655, 0.5
  %v660 = vtanh.pop %v657
  %v661 = vtanh.pop %v658
  %v662 = vtanh.pop %v659
  %v663 = vadd.f32 %v660, 1.0
  %v664 = vadd.f32 %v661, 1.0
  %v665 = vadd.f32 %v662, 1.0
  %v666 = vmul.f32 %v663, 0.5
  %v667 = vmul.f32 %v664, 0.5
  %v668 = vmul.f32 %v665, 0.5
  %v669 = vtanh.pop %v656
  %v670 = vmul.f32 %v667, %v558
  %v671 = vmul.f32 %v666, %v669
  %v672 = vadd.f32 %v670, %v671
  %v673 = vtanh.pop %v672
  %v674 = vmul.f32 %v668, %v673
  %s675 = scalar_lea.vmem %s4, 24
  %676 = vst [vmem:[%s675] sm:$0xff] %v674
  %s677 = scalar_lea.vmem %s0, 64
  %v678 = vld [vmem:[%s677] sm:$0xff]
  %v679 = vld [vmem:[%s677 + $0x8] sm:$0xff]
  %v680 = vunpack.c.l.bf16 %v678
  %v681 = vunpack.c.h.bf16 %v678
  %v682 = vunpack.c.l.bf16 %v679
  %v683 = vunpack.c.h.bf16 %v679
  %v684 = vpack.c.bf16 %v674, %v674
  %685 = vmatprep.subr.bf16.mxu0 %v167
  %686 = vmatpush1.bf16.msra.mxu0 %v166
  %687 = vmatprep.subr.bf16.mxu0 %v171
  %688 = vmatpush1.bf16.msra.mxu0 %v170
  %689 = vmatprep.subr.bf16.mxu0 %v175
  %690 = vmatpush1.bf16.msra.mxu0 %v174
  %691 = vmatprep.subr.bf16.mxu0 %v179
  %692 = vmatpush1.bf16.msra.mxu0 %v178
  %693 = vmatprep.subr.bf16.mxu0 %v183
  %694 = vmatpush1.bf16.msra.mxu0 %v182
  %695 = vmatprep.subr.bf16.mxu0 %v187
  %696 = vmatpush1.bf16.msra.mxu0 %v186
  %697 = vmatprep.subr.bf16.mxu0 %v191
  %698 = vmatpush1.bf16.msra.mxu0 %v190
  %699 = vmatprep.subr.bf16.mxu0 %v195
  %700 = vmatpush1.bf16.msra.mxu0 %v194
  %701 = vmatprep.subr.bf16.mxu0 0
  %702 = vmatpush1.bf16.msra.mxu0 0
  %703 = vmatprep.subr.bf16.mxu0 0
  %704 = vmatpush1.bf16.msra.mxu0 0
  %705 = vmatprep.subr.bf16.mxu0 0
  %706 = vmatpush1.bf16.msra.mxu0 0
  %707 = vmatprep.subr.bf16.mxu0 0
  %708 = vmatpush1.bf16.msra.mxu0 0
  %709 = vmatprep.subr.bf16.mxu0 0
  %710 = vmatpush1.bf16.msra.mxu0 0
  %711 = vmatprep.subr.bf16.mxu0 0
  %712 = vmatpush1.bf16.msra.mxu0 0
  %713 = vmatprep.subr.bf16.mxu0 0
  %714 = vmatpush1.bf16.msra.mxu0 0
  %715 = vmatprep.subr.bf16.mxu0 0
  %716 = vmatpush1.bf16.msra.mxu0 0
  %717 = vmatprep.mubr.bf16.mxu0 0
  %718 = vmatmul.mubr.bf16.gmra.mrb[0].mxu0 %v684
  %v719 = vpop.f32.mrb[0].mxu0
  %v720 = vadd.f32 0.0, %v719
  %v721 = vpop.f32.mrb[0].mxu0
  %v722 = vadd.f32 0.0, %v721
  %v723 = vpop.f32.mrb[0].mxu0
  %v724 = vpop.f32.mrb[0].mxu0
  %725 = vdwg.mxu0
  %726 = vmatprep.subr.bf16.mxu0 %v169
  %727 = vmatpush1.bf16.msra.mxu0 %v168
  %728 = vmatprep.subr.bf16.mxu0 %v173
  %729 = vmatpush1.bf16.msra.mxu0 %v172
  %730 = vmatprep.subr.bf16.mxu0 %v177
  %731 = vmatpush1.bf16.msra.mxu0 %v176
  %732 = vmatprep.subr.bf16.mxu0 %v181
  %733 = vmatpush1.bf16.msra.mxu0 %v180
  %734 = vmatprep.subr.bf16.mxu0 %v185
  %735 = vmatpush1.bf16.msra.mxu0 %v184
  %736 = vmatprep.subr.bf16.mxu0 %v189
  %737 = vmatpush1.bf16.msra.mxu0 %v188
  %738 = vmatprep.subr.bf16.mxu0 %v193
  %739 = vmatpush1.bf16.msra.mxu0 %v192
  %740 = vmatprep.subr.bf16.mxu0 %v197
  %741 = vmatpush1.bf16.msra.mxu0 %v196
  %742 = vmatprep.subr.bf16.mxu0 0
  %743 = vmatpush1.bf16.msra.mxu0 0
  %744 = vmatprep.subr.bf16.mxu0 0
  %745 = vmatpush1.bf16.msra.mxu0 0
  %746 = vmatprep.subr.bf16.mxu0 0
  %747 = vmatpush1.bf16.msra.mxu0 0
  %748 = vmatprep.subr.bf16.mxu0 0
  %749 = vmatpush1.bf16.msra.mxu0 0
  %750 = vmatprep.subr.bf16.mxu0 0
  %751 = vmatpush1.bf16.msra.mxu0 0
  %752 = vmatprep.subr.bf16.mxu0 0
  %753 = vmatpush1.bf16.msra.mxu0 0
  %754 = vmatprep.subr.bf16.mxu0 0
  %755 = vmatpush1.bf16.msra.mxu0 0
  %756 = vmatprep.subr.bf16.mxu0 0
  %757 = vmatpush1.bf16.msra.mxu0 0
  %758 = vmatprep.mubr.bf16.mxu0 0
  %759 = vmatmul.mubr.bf16.gmra.mrb[0].mxu0 %v684
  %v760 = vpop.f32.mrb[0].mxu0
  %v761 = vadd.f32 0.0, %v760
  %v762 = vpop.f32.mrb[0].mxu0
  %v763 = vadd.f32 0.0, %v762
  %v764 = vpop.f32.mrb[0].mxu0
  %v765 = vpop.f32.mrb[0].mxu0
  %766 = vdwg.mxu0
  %v767 = vadd.f32 %v680, %v720
  %v768 = vadd.f32 %v681, %v722
  %v769 = vadd.f32 %v682, %v761
  %v770 = vadd.f32 %v683, %v763
  %v771 = vmul.f32 %v767, 0.5
  %v772 = vmul.f32 %v768, 0.5
  %v773 = vmul.f32 %v769, 0.5
  %v774 = vtanh.pop %v771
  %v775 = vtanh.pop %v772
  %v776 = vtanh.pop %v773
  %v777 = vadd.f32 %v774, 1.0
  %v778 = vadd.f32 %v775, 1.0
  %v779 = vadd.f32 %v776, 1.0
  %v780 = vmul.f32 %v777, 0.5
  %v781 = vmul.f32 %v778, 0.5
  %v782 = vmul.f32 %v779, 0.5
  %v783 = vtanh.pop %v770
  %v784 = vmul.f32 %v781, %v672
  %v785 = vmul.f32 %v780, %v783
  %v786 = vadd.f32 %v784, %v785
  %v787 = vtanh.pop %v786
  %v788 = vmul.f32 %v782, %v787
  %s789 = scalar_lea.vmem %s4, 32
  %790 = vst [vmem:[%s789] sm:$0xff] %v788
  %s791 = scalar_lea.vmem %s0, 80
  %v792 = vld [vmem:[%s791] sm:$0xff]
  %v793 = vld [vmem:[%s791 + $0x8] sm:$0xff]
  %v794 = vunpack.c.l.bf16 %v792
  %v795 = vunpack.c.h.bf16 %v792
  %v796 = vunpack.c.l.bf16 %v793
  %v797 = vunpack.c.h.bf16 %v793
  %v798 = vpack.c.bf16 %v788, %v788
  %799 = vmatprep.subr.bf16.mxu0 %v167
  %800 = vmatpush1.bf16.msra.mxu0 %v166
  %801 = vmatprep.subr.bf16.mxu0 %v171
  %802 = vmatpush1.bf16.msra.mxu0 %v170
  %803 = vmatprep.subr.bf16.mxu0 %v175
  %804 = vmatpush1.bf16.msra.mxu0 %v174
  %805 = vmatprep.subr.bf16.mxu0 %v179
  %806 = vmatpush1.bf16.msra.mxu0 %v178
  %807 = vmatprep.subr.bf16.mxu0 %v183
  %808 = vmatpush1.bf16.msra.mxu0 %v182
  %809 = vmatprep.subr.bf16.mxu0 %v187
  %810 = vmatpush1.bf16.msra.mxu0 %v186
  %811 = vmatprep.subr.bf16.mxu0 %v191
  %812 = vmatpush1.bf16.msra.mxu0 %v190
  %813 = vmatprep.subr.bf16.mxu0 %v195
  %814 = vmatpush1.bf16.msra.mxu0 %v194
  %815 = vmatprep.subr.bf16.mxu0 0
  %816 = vmatpush1.bf16.msra.mxu0 0
  %817 = vmatprep.subr.bf16.mxu0 0
  %818 = vmatpush1.bf16.msra.mxu0 0
  %819 = vmatprep.subr.bf16.mxu0 0
  %820 = vmatpush1.bf16.msra.mxu0 0
  %821 = vmatprep.subr.bf16.mxu0 0
  %822 = vmatpush1.bf16.msra.mxu0 0
  %823 = vmatprep.subr.bf16.mxu0 0
  %824 = vmatpush1.bf16.msra.mxu0 0
  %825 = vmatprep.subr.bf16.mxu0 0
  %826 = vmatpush1.bf16.msra.mxu0 0
  %827 = vmatprep.subr.bf16.mxu0 0
  %828 = vmatpush1.bf16.msra.mxu0 0
  %829 = vmatprep.subr.bf16.mxu0 0
  %830 = vmatpush1.bf16.msra.mxu0 0
  %831 = vmatprep.mubr.bf16.mxu0 0
  %832 = vmatmul.mubr.bf16.gmra.mrb[0].mxu0 %v798
  %v833 = vpop.f32.mrb[0].mxu0
  %v834 = vadd.f32 0.0, %v833
  %v835 = vpop.f32.mrb[0].mxu0
  %v836 = vadd.f32 0.0, %v835
  %v837 = vpop.f32.mrb[0].mxu0
  %v838 = vpop.f32.mrb[0].mxu0
  %839 = vdwg.mxu0
  %840 = vmatprep.subr.bf16.mxu0 %v169
  %841 = vmatpush1.bf16.msra.mxu0 %v168
  %842 = vmatprep.subr.bf16.mxu0 %v173
  %843 = vmatpush1.bf16.msra.mxu0 %v172
  %844 = vmatprep.subr.bf16.mxu0 %v177
  %845 = vmatpush1.bf16.msra.mxu0 %v176
  %846 = vmatprep.subr.bf16.mxu0 %v181
  %847 = vmatpush1.bf16.msra.mxu0 %v180
  %848 = vmatprep.subr.bf16.mxu0 %v185
  %849 = vmatpush1.bf16.msra.mxu0 %v184
  %850 = vmatprep.subr.bf16.mxu0 %v189
  %851 = vmatpush1.bf16.msra.mxu0 %v188
  %852 = vmatprep.subr.bf16.mxu0 %v193
  %853 = vmatpush1.bf16.msra.mxu0 %v192
  %854 = vmatprep.subr.bf16.mxu0 %v197
  %855 = vmatpush1.bf16.msra.mxu0 %v196
  %856 = vmatprep.subr.bf16.mxu0 0
  %857 = vmatpush1.bf16.msra.mxu0 0
  %858 = vmatprep.subr.bf16.mxu0 0
  %859 = vmatpush1.bf16.msra.mxu0 0
  %860 = vmatprep.subr.bf16.mxu0 0
  %861 = vmatpush1.bf16.msra.mxu0 0
  %862 = vmatprep.subr.bf16.mxu0 0
  %863 = vmatpush1.bf16.msra.mxu0 0
  %864 = vmatprep.subr.bf16.mxu0 0
  %865 = vmatpush1.bf16.msra.mxu0 0
  %866 = vmatprep.subr.bf16.mxu0 0
  %867 = vmatpush1.bf16.msra.mxu0 0
  %868 = vmatprep.subr.bf16.mxu0 0
  %869 = vmatpush1.bf16.msra.mxu0 0
  %870 = vmatprep.subr.bf16.mxu0 0
  %871 = vmatpush1.bf16.msra.mxu0 0
  %872 = vmatprep.mubr.bf16.mxu0 0
  %873 = vmatmul.mubr.bf16.gmra.mrb[0].mxu0 %v798
  %v874 = vpop.f32.mrb[0].mxu0
  %v875 = vadd.f32 0.0, %v874
  %v876 = vpop.f32.mrb[0].mxu0
  %v877 = vadd.f32 0.0, %v876
  %v878 = vpop.f32.mrb[0].mxu0
  %v879 = vpop.f32.mrb[0].mxu0
  %880 = vdwg.mxu0
  %v881 = vadd.f32 %v794, %v834
  %v882 = vadd.f32 %v795, %v836
  %v883 = vadd.f32 %v796, %v875
  %v884 = vadd.f32 %v797, %v877
  %v885 = vmul.f32 %v881, 0.5
  %v886 = vmul.f32 %v882, 0.5
  %v887 = vmul.f32 %v883, 0.5
  %v888 = vtanh.pop %v885
  %v889 = vtanh.pop %v886
  %v890 = vtanh.pop %v887
  %v891 = vadd.f32 %v888, 1.0
  %v892 = vadd.f32 %v889, 1.0
  %v893 = vadd.f32 %v890, 1.0
  %v894 = vmul.f32 %v891, 0.5
  %v895 = vmul.f32 %v892, 0.5
  %v896 = vmul.f32 %v893, 0.5
  %v897 = vtanh.pop %v884
  %v898 = vmul.f32 %v895, %v786
  %v899 = vmul.f32 %v894, %v897
  %v900 = vadd.f32 %v898, %v899
  %v901 = vtanh.pop %v900
  %v902 = vmul.f32 %v896, %v901
  %s903 = scalar_lea.vmem %s4, 40
  %904 = vst [vmem:[%s903] sm:$0xff] %v902
  %s905 = scalar_lea.vmem %s0, 96
  %v906 = vld [vmem:[%s905] sm:$0xff]
  %v907 = vld [vmem:[%s905 + $0x8] sm:$0xff]
  %v908 = vunpack.c.l.bf16 %v906
  %v909 = vunpack.c.h.bf16 %v906
  %v910 = vunpack.c.l.bf16 %v907
  %v911 = vunpack.c.h.bf16 %v907
  %v912 = vpack.c.bf16 %v902, %v902
  %913 = vmatprep.subr.bf16.mxu0 %v167
  %914 = vmatpush1.bf16.msra.mxu0 %v166
  %915 = vmatprep.subr.bf16.mxu0 %v171
  %916 = vmatpush1.bf16.msra.mxu0 %v170
  %917 = vmatprep.subr.bf16.mxu0 %v175
  %918 = vmatpush1.bf16.msra.mxu0 %v174
  %919 = vmatprep.subr.bf16.mxu0 %v179
  %920 = vmatpush1.bf16.msra.mxu0 %v178
  %921 = vmatprep.subr.bf16.mxu0 %v183
  %922 = vmatpush1.bf16.msra.mxu0 %v182
  %923 = vmatprep.subr.bf16.mxu0 %v187
  %924 = vmatpush1.bf16.msra.mxu0 %v186
  %925 = vmatprep.subr.bf16.mxu0 %v191
  %926 = vmatpush1.bf16.msra.mxu0 %v190
  %927 = vmatprep.subr.bf16.mxu0 %v195
  %928 = vmatpush1.bf16.msra.mxu0 %v194
  %929 = vmatprep.subr.bf16.mxu0 0
  %930 = vmatpush1.bf16.msra.mxu0 0
  %931 = vmatprep.subr.bf16.mxu0 0
  %932 = vmatpush1.bf16.msra.mxu0 0
  %933 = vmatprep.subr.bf16.mxu0 0
  %934 = vmatpush1.bf16.msra.mxu0 0
  %935 = vmatprep.subr.bf16.mxu0 0
  %936 = vmatpush1.bf16.msra.mxu0 0
  %937 = vmatprep.subr.bf16.mxu0 0
  %938 = vmatpush1.bf16.msra.mxu0 0
  %939 = vmatprep.subr.bf16.mxu0 0
  %940 = vmatpush1.bf16.msra.mxu0 0
  %941 = vmatprep.subr.bf16.mxu0 0
  %942 = vmatpush1.bf16.msra.mxu0 0
  %943 = vmatprep.subr.bf16.mxu0 0
  %944 = vmatpush1.bf16.msra.mxu0 0
  %945 = vmatprep.mubr.bf16.mxu0 0
  %946 = vmatmul.mubr.bf16.gmra.mrb[0].mxu0 %v912
  %v947 = vpop.f32.mrb[0].mxu0
  %v948 = vadd.f32 0.0, %v947
  %v949 = vpop.f32.mrb[0].mxu0
  %v950 = vadd.f32 0.0, %v949
  %v951 = vpop.f32.mrb[0].mxu0
  %v952 = vpop.f32.mrb[0].mxu0
  %953 = vdwg.mxu0
  %954 = vmatprep.subr.bf16.mxu0 %v169
  %955 = vmatpush1.bf16.msra.mxu0 %v168
  %956 = vmatprep.subr.bf16.mxu0 %v173
  %957 = vmatpush1.bf16.msra.mxu0 %v172
  %958 = vmatprep.subr.bf16.mxu0 %v177
  %959 = vmatpush1.bf16.msra.mxu0 %v176
  %960 = vmatprep.subr.bf16.mxu0 %v181
  %961 = vmatpush1.bf16.msra.mxu0 %v180
  %962 = vmatprep.subr.bf16.mxu0 %v185
  %963 = vmatpush1.bf16.msra.mxu0 %v184
  %964 = vmatprep.subr.bf16.mxu0 %v189
  %965 = vmatpush1.bf16.msra.mxu0 %v188
  %966 = vmatprep.subr.bf16.mxu0 %v193
  %967 = vmatpush1.bf16.msra.mxu0 %v192
  %968 = vmatprep.subr.bf16.mxu0 %v197
  %969 = vmatpush1.bf16.msra.mxu0 %v196
  %970 = vmatprep.subr.bf16.mxu0 0
  %971 = vmatpush1.bf16.msra.mxu0 0
  %972 = vmatprep.subr.bf16.mxu0 0
  %973 = vmatpush1.bf16.msra.mxu0 0
  %974 = vmatprep.subr.bf16.mxu0 0
  %975 = vmatpush1.bf16.msra.mxu0 0
  %976 = vmatprep.subr.bf16.mxu0 0
  %977 = vmatpush1.bf16.msra.mxu0 0
  %978 = vmatprep.subr.bf16.mxu0 0
  %979 = vmatpush1.bf16.msra.mxu0 0
  %980 = vmatprep.subr.bf16.mxu0 0
  %981 = vmatpush1.bf16.msra.mxu0 0
  %982 = vmatprep.subr.bf16.mxu0 0
  %983 = vmatpush1.bf16.msra.mxu0 0
  %984 = vmatprep.subr.bf16.mxu0 0
  %985 = vmatpush1.bf16.msra.mxu0 0
  %986 = vmatprep.mubr.bf16.mxu0 0
  %987 = vmatmul.mubr.bf16.gmra.mrb[0].mxu0 %v912
  %v988 = vpop.f32.mrb[0].mxu0
  %v989 = vadd.f32 0.0, %v988
  %v990 = vpop.f32.mrb[0].mxu0
  %v991 = vadd.f32 0.0, %v990
  %v992 = vpop.f32.mrb[0].mxu0
  %v993 = vpop.f32.mrb[0].mxu0
  %994 = vdwg.mxu0
  %v995 = vadd.f32 %v908, %v948
  %v996 = vadd.f32 %v909, %v950
  %v997 = vadd.f32 %v910, %v989
  %v998 = vadd.f32 %v911, %v991
  %v999 = vmul.f32 %v995, 0.5
  %v1000 = vmul.f32 %v996, 0.5
  %v1001 = vmul.f32 %v997, 0.5
  %v1002 = vtanh.pop %v999
  %v1003 = vtanh.pop %v1000
  %v1004 = vtanh.pop %v1001
  %v1005 = vadd.f32 %v1002, 1.0
  %v1006 = vadd.f32 %v1003, 1.0
  %v1007 = vadd.f32 %v1004, 1.0
  %v1008 = vmul.f32 %v1005, 0.5
  %v1009 = vmul.f32 %v1006, 0.5
  %v1010 = vmul.f32 %v1007, 0.5
  %v1011 = vtanh.pop %v998
  %v1012 = vmul.f32 %v1009, %v900
  %v1013 = vmul.f32 %v1008, %v1011
  %v1014 = vadd.f32 %v1012, %v1013
  %v1015 = vtanh.pop %v1014
  %v1016 = vmul.f32 %v1010, %v1015
  %s1017 = scalar_lea.vmem %s4, 48
  %1018 = vst [vmem:[%s1017] sm:$0xff] %v1016
  %s1019 = scalar_lea.vmem %s0, 112
  %v1020 = vld [vmem:[%s1019] sm:$0xff]
  %v1021 = vld [vmem:[%s1019 + $0x8] sm:$0xff]
  %v1022 = vunpack.c.l.bf16 %v1020
  %v1023 = vunpack.c.h.bf16 %v1020
  %v1024 = vunpack.c.l.bf16 %v1021
  %v1025 = vunpack.c.h.bf16 %v1021
  %v1026 = vpack.c.bf16 %v1016, %v1016
  %1027 = vmatprep.subr.bf16.mxu0 %v167
  %1028 = vmatpush1.bf16.msra.mxu0 %v166
  %1029 = vmatprep.subr.bf16.mxu0 %v171
  %1030 = vmatpush1.bf16.msra.mxu0 %v170
  %1031 = vmatprep.subr.bf16.mxu0 %v175
  %1032 = vmatpush1.bf16.msra.mxu0 %v174
  %1033 = vmatprep.subr.bf16.mxu0 %v179
  %1034 = vmatpush1.bf16.msra.mxu0 %v178
  %1035 = vmatprep.subr.bf16.mxu0 %v183
  %1036 = vmatpush1.bf16.msra.mxu0 %v182
  %1037 = vmatprep.subr.bf16.mxu0 %v187
  %1038 = vmatpush1.bf16.msra.mxu0 %v186
  %1039 = vmatprep.subr.bf16.mxu0 %v191
  %1040 = vmatpush1.bf16.msra.mxu0 %v190
  %1041 = vmatprep.subr.bf16.mxu0 %v195
  %1042 = vmatpush1.bf16.msra.mxu0 %v194
  %1043 = vmatprep.subr.bf16.mxu0 0
  %1044 = vmatpush1.bf16.msra.mxu0 0
  %1045 = vmatprep.subr.bf16.mxu0 0
  %1046 = vmatpush1.bf16.msra.mxu0 0
  %1047 = vmatprep.subr.bf16.mxu0 0
  %1048 = vmatpush1.bf16.msra.mxu0 0
  %1049 = vmatprep.subr.bf16.mxu0 0
  %1050 = vmatpush1.bf16.msra.mxu0 0
  %1051 = vmatprep.subr.bf16.mxu0 0
  %1052 = vmatpush1.bf16.msra.mxu0 0
  %1053 = vmatprep.subr.bf16.mxu0 0
  %1054 = vmatpush1.bf16.msra.mxu0 0
  %1055 = vmatprep.subr.bf16.mxu0 0
  %1056 = vmatpush1.bf16.msra.mxu0 0
  %1057 = vmatprep.subr.bf16.mxu0 0
  %1058 = vmatpush1.bf16.msra.mxu0 0
  %1059 = vmatprep.mubr.bf16.mxu0 0
  %1060 = vmatmul.mubr.bf16.gmra.mrb[0].mxu0 %v1026
  %v1061 = vpop.f32.mrb[0].mxu0
  %v1062 = vadd.f32 0.0, %v1061
  %v1063 = vpop.f32.mrb[0].mxu0
  %v1064 = vadd.f32 0.0, %v1063
  %v1065 = vpop.f32.mrb[0].mxu0
  %v1066 = vpop.f32.mrb[0].mxu0
  %1067 = vdwg.mxu0
  %1068 = vmatprep.subr.bf16.mxu0 %v169
  %1069 = vmatpush1.bf16.msra.mxu0 %v168
  %1070 = vmatprep.subr.bf16.mxu0 %v173
  %1071 = vmatpush1.bf16.msra.mxu0 %v172
  %1072 = vmatprep.subr.bf16.mxu0 %v177
  %1073 = vmatpush1.bf16.msra.mxu0 %v176
  %1074 = vmatprep.subr.bf16.mxu0 %v181
  %1075 = vmatpush1.bf16.msra.mxu0 %v180
  %1076 = vmatprep.subr.bf16.mxu0 %v185
  %1077 = vmatpush1.bf16.msra.mxu0 %v184
  %1078 = vmatprep.subr.bf16.mxu0 %v189
  %1079 = vmatpush1.bf16.msra.mxu0 %v188
  %1080 = vmatprep.subr.bf16.mxu0 %v193
  %1081 = vmatpush1.bf16.msra.mxu0 %v192
  %1082 = vmatprep.subr.bf16.mxu0 %v197
  %1083 = vmatpush1.bf16.msra.mxu0 %v196
  %1084 = vmatprep.subr.bf16.mxu0 0
  %1085 = vmatpush1.bf16.msra.mxu0 0
  %1086 = vmatprep.subr.bf16.mxu0 0
  %1087 = vmatpush1.bf16.msra.mxu0 0
  %1088 = vmatprep.subr.bf16.mxu0 0
  %1089 = vmatpush1.bf16.msra.mxu0 0
  %1090 = vmatprep.subr.bf16.mxu0 0
  %1091 = vmatpush1.bf16.msra.mxu0 0
  %1092 = vmatprep.subr.bf16.mxu0 0
  %1093 = vmatpush1.bf16.msra.mxu0 0
  %1094 = vmatprep.subr.bf16.mxu0 0
  %1095 = vmatpush1.bf16.msra.mxu0 0
  %1096 = vmatprep.subr.bf16.mxu0 0
  %1097 = vmatpush1.bf16.msra.mxu0 0
  %1098 = vmatprep.subr.bf16.mxu0 0
  %1099 = vmatpush1.bf16.msra.mxu0 0
  %1100 = vmatprep.mubr.bf16.mxu0 0
  %1101 = vmatmul.mubr.bf16.gmra.mrb[0].mxu0 %v1026
  %v1102 = vpop.f32.mrb[0].mxu0
  %v1103 = vadd.f32 0.0, %v1102
  %v1104 = vpop.f32.mrb[0].mxu0
  %v1105 = vadd.f32 0.0, %v1104
  %v1106 = vpop.f32.mrb[0].mxu0
  %v1107 = vpop.f32.mrb[0].mxu0
  %1108 = vdwg.mxu0
  %v1109 = vadd.f32 %v1022, %v1062
  %v1110 = vadd.f32 %v1023, %v1064
  %v1111 = vadd.f32 %v1024, %v1103
  %v1112 = vadd.f32 %v1025, %v1105
  %v1113 = vmul.f32 %v1109, 0.5
  %v1114 = vmul.f32 %v1110, 0.5
  %v1115 = vmul.f32 %v1111, 0.5
  %v1116 = vtanh.pop %v1113
  %v1117 = vtanh.pop %v1114
  %v1118 = vtanh.pop %v1115
  %v1119 = vadd.f32 %v1116, 1.0
  %v1120 = vadd.f32 %v1117, 1.0
  %v1121 = vadd.f32 %v1118, 1.0
  %v1122 = vmul.f32 %v1119, 0.5
  %v1123 = vmul.f32 %v1120, 0.5
  %v1124 = vmul.f32 %v1121, 0.5
  %v1125 = vtanh.pop %v1112
  %v1126 = vmul.f32 %v1123, %v1014
  %v1127 = vmul.f32 %v1122, %v1125
  %v1128 = vadd.f32 %v1126, %v1127
  %v1129 = vtanh.pop %v1128
  %v1130 = vmul.f32 %v1124, %v1129
  %s1131 = scalar_lea.vmem %s4, 56
  %1132 = vst [vmem:[%s1131] sm:$0xff] %v1130
  %1133 = vst [vmem:[#allocation2] sm:$0xff] %v1130
  %1134 = vst [vmem:[#allocation3] sm:$0xff] %v1128
  // Predicated region
  $region22: #{lstm_enc_forward.3} parent=0 // pred_check
    %p1135 = pneg %p21
  $region23: #{lstm_enc_forward.3} parent=0 // pred_check_branch
    %1137 = sbr.rel (%p1135) target = $region25
  $region24: #{lstm_enc_forward.3} parent=0 // pred_region
    %1138 = vst [vmem:[%s5] sm:$0xff] %v1130
    %1139 = vst [vmem:[%s6] sm:$0xff] %v1128
  $region25: #{lstm_enc_forward.3} parent=0 // pred_fallthru
    _
  // Predicated region
  $region26: #{lstm_enc_forward.3} parent=0 // pred_check
    _
  $region27: #{lstm_enc_forward.3} parent=0 // pred_check_branch
    %1141 = sbr.rel (0) target = $region29
  $region28: #{lstm_enc_forward.3} parent=0 // pred_region
    _
  $region29: #{lstm_enc_forward.3} parent=0 // pred_fallthru
    _
  // Predicated region
  $region30: #{lstm_enc_forward.3} parent=0 // pred_check
    _
  $region31: #{lstm_enc_forward.3} parent=0 // pred_check_branch
    %1143 = sbr.rel (0) target = $region33
  $region32: #{lstm_enc_forward.3} parent=0 // pred_region
    _
  $region33: #{lstm_enc_forward.3} parent=0 // pred_fallthru
    _
  // Predicated region
  $region34: #{lstm_enc_forward.3} parent=0 // pred_check
    _
  $region35: #{lstm_enc_forward.3} parent=0 // pred_check_branch
    %1145 = sbr.rel (0) target = $region37
  $region36: #{lstm_enc_forward.3} parent=0 // pred_region
    _
  $region37: #{lstm_enc_forward.3} parent=0 // pred_fallthru
    _
  // Predicated region
  $region38: #{lstm_enc_forward.3} parent=0 // pred_check
    _
  $region39: #{lstm_enc_forward.3} parent=0 // pred_check_branch
    %1147 = sbr.rel (0) target = $region41
  $region40: #{lstm_enc_forward.3} parent=0 // pred_region
    _
  $region41: #{lstm_enc_forward.3} parent=0 // pred_fallthru
    _
  // Predicated region
  $region42: #{lstm_enc_forward.3} parent=0 // pred_check
    _
  $region43: #{lstm_enc_forward.3} parent=0 // pred_check_branch
    %1149 = sbr.rel (0) target = $region45
  $region44: #{lstm_enc_forward.3} parent=0 // pred_region
    _
  $region45: #{lstm_enc_forward.3} parent=0 // pred_fallthru
    _
  // Predicated region
  $region46: #{lstm_enc_forward.3} parent=0 // pred_check
    _
  $region47: #{lstm_enc_forward.3} parent=0 // pred_check_branch
    %1151 = sbr.rel (0) target = $region49
  $region48: #{lstm_enc_forward.3} parent=0 // pred_region
    _
  $region49: #{lstm_enc_forward.3} parent=0 // pred_fallthru
    _

// kernel: lstm_enc_forward.2
$region0: #{lstm_enc_forward.2}
  #allocation0 [shape = 'u32[]', space=smem, size = 0x4, offset = 0x4, fixed_abs, tag = 'smem constant byte address 0x4 - core index']
  #allocation1 [shape = 'u32[144,128]{1,0:T(1,128)}', space=vmem, size = 0x12000, scoped, tag = 'internal scratch']
  #allocation2 [shape = 'f32[8,128]{1,0:T(8,128)}', space=vmem, size = 0x1000, scoped, tag = 'scratch operand']
  #allocation3 [shape = 'f32[8,128]{1,0:T(8,128)}', space=vmem, size = 0x1000, scoped, tag = 'scratch operand']
  #allocation4 [shape = 'f32[8,8,128]{2,1,0:T(8,128)}', space=vmem, size = 0x8000, scoped, tag = 'scratch operand']
  %s0 = inlined_call_operand.vmem [shape: bf16[8,8,512], index: 0, kind: input, shape index: {}]
  %s1 = inlined_call_operand.vmem [shape: bf16[128,512], index: 1, kind: input, shape index: {}]
  %s2 = inlined_call_operand.vmem [shape: f32[8,128], index: 2, kind: input, shape index: {}]
  %s3 = inlined_call_operand.vmem [shape: f32[8,128], index: 3, kind: input, shape index: {}]
  %s4 = inlined_call_operand.vmem [shape: bf16[128,512], index: 4, kind: input, shape index: {}]
  %s5 = inlined_call_operand.vmem [shape: f32[1,512], index: 5, kind: input, shape index: {}]
  %s6 = inlined_call_operand.vmem [shape: bf16[8,8,512], index: 6, kind: output, shape index: {0}]
  %s7 = inlined_call_operand.vmem [shape: f32[8,128], index: 7, kind: output, shape index: {1}]
  %s8 = inlined_call_operand.vmem [shape: f32[8,128], index: 8, kind: output, shape index: {2}]
  %9 = xla_tuple %s6, %s7, %s8
  %s10 = sld [smem:[#allocation0]]
  $region58: #{lstm_enc_forward.2} parent=0
    _
  %s12 = ssub.s32 1, %s10
  %s13 = scalar_select 0, %s12, %s10
  // Predicated region
  $region2: #{lstm_enc_forward.2} parent=0 // pred_check
    _
  $region3: #{lstm_enc_forward.2} parent=0 // pred_check_branch
    %15 = sbr.rel (0) target = $region5
  $region4: #{lstm_enc_forward.2} parent=0 // pred_region
    _
  $region5: #{lstm_enc_forward.2} parent=0 // pred_fallthru
    _
  // Predicated region
  $region6: #{lstm_enc_forward.2} parent=0 // pred_check
    _
  $region7: #{lstm_enc_forward.2} parent=0 // pred_check_branch
    %17 = sbr.rel (0) target = $region9
  $region8: #{lstm_enc_forward.2} parent=0 // pred_region
    _
  $region9: #{lstm_enc_forward.2} parent=0 // pred_fallthru
    _
  // Predicated region
  $region10: #{lstm_enc_forward.2} parent=0 // pred_check
    _
  $region11: #{lstm_enc_forward.2} parent=0 // pred_check_branch
    %19 = sbr.rel (0) target = $region13
  $region12: #{lstm_enc_forward.2} parent=0 // pred_region
    _
  $region13: #{lstm_enc_forward.2} parent=0 // pred_fallthru
    _
  // Predicated region
  $region14: #{lstm_enc_forward.2} parent=0 // pred_check
    _
  $region15: #{lstm_enc_forward.2} parent=0 // pred_check_branch
    %21 = sbr.rel (0) target = $region17
  $region16: #{lstm_enc_forward.2} parent=0 // pred_region
    _
  $region17: #{lstm_enc_forward.2} parent=0 // pred_fallthru
    _
  // Predicated region
  $region18: #{lstm_enc_forward.2} parent=0 // pred_check
    _
  $region19: #{lstm_enc_forward.2} parent=0 // pred_check_branch
    %23 = sbr.rel (0) target = $region21
  $region20: #{lstm_enc_forward.2} parent=0 // pred_region
    _
  $region21: #{lstm_enc_forward.2} parent=0 // pred_fallthru
    _
  // Predicated region
  $region22: #{lstm_enc_forward.2} parent=0 // pred_check
    _
  $region23: #{lstm_enc_forward.2} parent=0 // pred_check_branch
    %25 = sbr.rel (0) target = $region25
  $region24: #{lstm_enc_forward.2} parent=0 // pred_region
    _
  $region25: #{lstm_enc_forward.2} parent=0 // pred_fallthru
    _
  %p27 = scmp.eq.s32.totalorder 0, 0
  // Predicated region
  $region26: #{lstm_enc_forward.2} parent=0 // pred_check
    %p28 = pneg %p27
  $region27: #{lstm_enc_forward.2} parent=0 // pred_check_branch
    %30 = sbr.rel (%p28) target = $region29
  $region28: #{lstm_enc_forward.2} parent=0 // pred_region
    %v31 = vld [vmem:[%s2] sm:$0xff]
    %32 = vst [vmem:[#allocation2] sm:$0xff] %v31
    %v33 = vld [vmem:[%s3] sm:$0xff]
    %34 = vst [vmem:[#allocation3] sm:$0xff] %v33
  $region29: #{lstm_enc_forward.2} parent=0 // pred_fallthru
    _
  %v35 = vld [vmem:[%s1] sm:$0xff]
  %v36 = vld [vmem:[%s1 + $0x8] sm:$0xff]
  %v37 = vld [vmem:[%s1 + $0x10] sm:$0xff]
  %v38 = vld [vmem:[%s1 + $0x18] sm:$0xff]
  %v39 = vld [vmem:[%s1 + $0x20] sm:$0xff]
  %v40 = vld [vmem:[%s1 + $0x28] sm:$0xff]
  %v41 = vld [vmem:[%s1 + $0x30] sm:$0xff]
  %v42 = vld [vmem:[%s1 + $0x38] sm:$0xff]
  %v43 = vld [vmem:[%s1 + $0x40] sm:$0xff]
  %v44 = vld [vmem:[%s1 + $0x48] sm:$0xff]
  %v45 = vld [vmem:[%s1 + $0x50] sm:$0xff]
  %v46 = vld [vmem:[%s1 + $0x58] sm:$0xff]
  %v47 = vld [vmem:[%s1 + $0x60] sm:$0xff]
  %v48 = vld [vmem:[%s1 + $0x68] sm:$0xff]
  %v49 = vld [vmem:[%s1 + $0x70] sm:$0xff]
  %v50 = vld [vmem:[%s1 + $0x78] sm:$0xff]
  %v51 = vld [vmem:[%s1 + $0x80] sm:$0xff]
  %v52 = vld [vmem:[%s1 + $0x88] sm:$0xff]
  %v53 = vld [vmem:[%s1 + $0x90] sm:$0xff]
  %v54 = vld [vmem:[%s1 + $0x98] sm:$0xff]
  %v55 = vld [vmem:[%s1 + $0xa0] sm:$0xff]
  %v56 = vld [vmem:[%s1 + $0xa8] sm:$0xff]
  %v57 = vld [vmem:[%s1 + $0xb0] sm:$0xff]
  %v58 = vld [vmem:[%s1 + $0xb8] sm:$0xff]
  %v59 = vld [vmem:[%s1 + $0xc0] sm:$0xff]
  %v60 = vld [vmem:[%s1 + $0xc8] sm:$0xff]
  %v61 = vld [vmem:[%s1 + $0xd0] sm:$0xff]
  %v62 = vld [vmem:[%s1 + $0xd8] sm:$0xff]
  %v63 = vld [vmem:[%s1 + $0xe0] sm:$0xff]
  %v64 = vld [vmem:[%s1 + $0xe8] sm:$0xff]
  %v65 = vld [vmem:[%s1 + $0xf0] sm:$0xff]
  %v66 = vld [vmem:[%s1 + $0xf8] sm:$0xff]
  %v67 = vld [vmem:[#allocation2] sm:$0xff]
  %v68 = vld [vmem:[#allocation3] sm:$0xff]
  %v69 = vld [vmem:[%s0] sm:$0xff]
  %v70 = vld [vmem:[%s0 + $0x8] sm:$0xff]
  %v71 = vunpack.c.l.bf16 %v69
  %v72 = vunpack.c.h.bf16 %v69
  %v73 = vunpack.c.l.bf16 %v70
  %v74 = vunpack.c.h.bf16 %v70
  %v75 = vpack.c.bf16 %v67, %v67
  %v108 = vunpack.c.l.b16 %v35
  %v109 = vunpack.c.h.b16 %v35
  %v110 = vunpack.c.l.b16 %v36
  %v111 = vunpack.c.h.b16 %v36
  %v112 = vunpack.c.l.b16 %v37
  %v113 = vunpack.c.h.b16 %v37
  %v114 = vunpack.c.l.b16 %v38
  %v115 = vunpack.c.h.b16 %v38
  %v116 = vunpack.c.l.b16 %v39
  %v117 = vunpack.c.h.b16 %v39
  %v118 = vunpack.c.l.b16 %v40
  %v119 = vunpack.c.h.b16 %v40
  %v120 = vunpack.c.l.b16 %v41
  %v121 = vunpack.c.h.b16 %v41
  %v122 = vunpack.c.l.b16 %v42
  %v123 = vunpack.c.h.b16 %v42
  %v124 = vunpack.c.l.b16 %v43
  %v125 = vunpack.c.h.b16 %v43
  %v126 = vunpack.c.l.b16 %v44
  %v127 = vunpack.c.h.b16 %v44
  %v128 = vunpack.c.l.b16 %v45
  %v129 = vunpack.c.h.b16 %v45
  %v130 = vunpack.c.l.b16 %v46
  %v131 = vunpack.c.h.b16 %v46
  %v132 = vunpack.c.l.b16 %v47
  %v133 = vunpack.c.h.b16 %v47
  %v134 = vunpack.c.l.b16 %v48
  %v135 = vunpack.c.h.b16 %v48
  %v136 = vunpack.c.l.b16 %v49
  %v137 = vunpack.c.h.b16 %v49
  %v138 = vunpack.c.l.b16 %v50
  %v139 = vunpack.c.h.b16 %v50
  %v140 = vunpack.c.l.b16 %v51
  %v141 = vunpack.c.h.b16 %v51
  %v142 = vunpack.c.l.b16 %v52
  %v143 = vunpack.c.h.b16 %v52
  %v144 = vunpack.c.l.b16 %v53
  %v145 = vunpack.c.h.b16 %v53
  %v146 = vunpack.c.l.b16 %v54
  %v147 = vunpack.c.h.b16 %v54
  %v148 = vunpack.c.l.b16 %v55
  %v149 = vunpack.c.h.b16 %v55
  %v150 = vunpack.c.l.b16 %v56
  %v151 = vunpack.c.h.b16 %v56
  %v152 = vunpack.c.l.b16 %v57
  %v153 = vunpack.c.h.b16 %v57
  %v154 = vunpack.c.l.b16 %v58
  %v155 = vunpack.c.h.b16 %v58
  %v156 = vunpack.c.l.b16 %v59
  %v157 = vunpack.c.h.b16 %v59
  %v158 = vunpack.c.l.b16 %v60
  %v159 = vunpack.c.h.b16 %v60
  %v160 = vunpack.c.l.b16 %v61
  %v161 = vunpack.c.h.b16 %v61
  %v162 = vunpack.c.l.b16 %v62
  %v163 = vunpack.c.h.b16 %v62
  %v164 = vunpack.c.l.b16 %v63
  %v165 = vunpack.c.h.b16 %v63
  %v166 = vunpack.c.l.b16 %v64
  %v167 = vunpack.c.h.b16 %v64
  %v168 = vunpack.c.l.b16 %v65
  %v169 = vunpack.c.h.b16 %v65
  %v170 = vunpack.c.l.b16 %v66
  %v171 = vunpack.c.h.b16 %v66
  %v172 = vpack.c.b16 %v112, %v108
  %v173 = vpack.c.b16 %v113, %v109
  %v174 = vpack.c.b16 %v114, %v110
  %v175 = vpack.c.b16 %v115, %v111
  %v176 = vpack.c.b16 %v120, %v116
  %v177 = vpack.c.b16 %v121, %v117
  %v178 = vpack.c.b16 %v122, %v118
  %v179 = vpack.c.b16 %v123, %v119
  %v180 = vpack.c.b16 %v128, %v124
  %v181 = vpack.c.b16 %v129, %v125
  %v182 = vpack.c.b16 %v130, %v126
  %v183 = vpack.c.b16 %v131, %v127
  %v184 = vpack.c.b16 %v136, %v132
  %v185 = vpack.c.b16 %v137, %v133
  %v186 = vpack.c.b16 %v138, %v134
  %v187 = vpack.c.b16 %v139, %v135
  %v188 = vpack.c.b16 %v144, %v140
  %v189 = vpack.c.b16 %v145, %v141
  %v190 = vpack.c.b16 %v146, %v142
  %v191 = vpack.c.b16 %v147, %v143
  %v192 = vpack.c.b16 %v152, %v148
  %v193 = vpack.c.b16 %v153, %v149
  %v194 = vpack.c.b16 %v154, %v150
  %v195 = vpack.c.b16 %v155, %v151
  %v196 = vpack.c.b16 %v160, %v156
  %v197 = vpack.c.b16 %v161, %v157
  %v198 = vpack.c.b16 %v162, %v158
  %v199 = vpack.c.b16 %v163, %v159
  %v200 = vpack.c.b16 %v168, %v164
  %v201 = vpack.c.b16 %v169, %v165
  %v202 = vpack.c.b16 %v170, %v166
  %v203 = vpack.c.b16 %v171, %v167
  %236 = vmatprep.subr.bf16.mxu0 %v173
  %237 = vmatpush1.bf16.msra.mxu0 %v172
  %238 = vmatprep.subr.bf16.mxu0 %v177
  %239 = vmatpush1.bf16.msra.mxu0 %v176
  %240 = vmatprep.subr.bf16.mxu0 %v181
  %241 = vmatpush1.bf16.msra.mxu0 %v180
  %242 = vmatprep.subr.bf16.mxu0 %v185
  %243 = vmatpush1.bf16.msra.mxu0 %v184
  %244 = vmatprep.subr.bf16.mxu0 %v189
  %245 = vmatpush1.bf16.msra.mxu0 %v188
  %246 = vmatprep.subr.bf16.mxu0 %v193
  %247 = vmatpush1.bf16.msra.mxu0 %v192
  %248 = vmatprep.subr.bf16.mxu0 %v197
  %249 = vmatpush1.bf16.msra.mxu0 %v196
  %250 = vmatprep.subr.bf16.mxu0 %v201
  %251 = vmatpush1.bf16.msra.mxu0 %v200
  %252 = vmatprep.subr.bf16.mxu0 0
  %253 = vmatpush1.bf16.msra.mxu0 0
  %254 = vmatprep.subr.bf16.mxu0 0
  %255 = vmatpush1.bf16.msra.mxu0 0
  %256 = vmatprep.subr.bf16.mxu0 0
  %257 = vmatpush1.bf16.msra.mxu0 0
  %258 = vmatprep.subr.bf16.mxu0 0
  %259 = vmatpush1.bf16.msra.mxu0 0
  %260 = vmatprep.subr.bf16.mxu0 0
  %261 = vmatpush1.bf16.msra.mxu0 0
  %262 = vmatprep.subr.bf16.mxu0 0
  %263 = vmatpush1.bf16.msra.mxu0 0
  %264 = vmatprep.subr.bf16.mxu0 0
  %265 = vmatpush1.bf16.msra.mxu0 0
  %266 = vmatprep.subr.bf16.mxu0 0
  %267 = vmatpush1.bf16.msra.mxu0 0
  %268 = vmatprep.mubr.bf16.mxu0 0
  %269 = vmatmul.mubr.bf16.gmra.mrb[0].mxu0 %v75
  %v270 = vpop.f32.mrb[0].mxu0
  %v271 = vadd.f32 0.0, %v270
  %v272 = vpop.f32.mrb[0].mxu0
  %v273 = vadd.f32 0.0, %v272
  %v274 = vpop.f32.mrb[0].mxu0
  %v275 = vpop.f32.mrb[0].mxu0
  %276 = vdwg.mxu0
  %277 = vmatprep.subr.bf16.mxu0 %v175
  %278 = vmatpush1.bf16.msra.mxu0 %v174
  %279 = vmatprep.subr.bf16.mxu0 %v179
  %280 = vmatpush1.bf16.msra.mxu0 %v178
  %281 = vmatprep.subr.bf16.mxu0 %v183
  %282 = vmatpush1.bf16.msra.mxu0 %v182
  %283 = vmatprep.subr.bf16.mxu0 %v187
  %284 = vmatpush1.bf16.msra.mxu0 %v186
  %285 = vmatprep.subr.bf16.mxu0 %v191
  %286 = vmatpush1.bf16.msra.mxu0 %v190
  %287 = vmatprep.subr.bf16.mxu0 %v195
  %288 = vmatpush1.bf16.msra.mxu0 %v194
  %289 = vmatprep.subr.bf16.mxu0 %v199
  %290 = vmatpush1.bf16.msra.mxu0 %v198
  %291 = vmatprep.subr.bf16.mxu0 %v203
  %292 = vmatpush1.bf16.msra.mxu0 %v202
  %293 = vmatprep.subr.bf16.mxu0 0
  %294 = vmatpush1.bf16.msra.mxu0 0
  %295 = vmatprep.subr.bf16.mxu0 0
  %296 = vmatpush1.bf16.msra.mxu0 0
  %297 = vmatprep.subr.bf16.mxu0 0
  %298 = vmatpush1.bf16.msra.mxu0 0
  %299 = vmatprep.subr.bf16.mxu0 0
  %300 = vmatpush1.bf16.msra.mxu0 0
  %301 = vmatprep.subr.bf16.mxu0 0
  %302 = vmatpush1.bf16.msra.mxu0 0
  %303 = vmatprep.subr.bf16.mxu0 0
  %304 = vmatpush1.bf16.msra.mxu0 0
  %305 = vmatprep.subr.bf16.mxu0 0
  %306 = vmatpush1.bf16.msra.mxu0 0
  %307 = vmatprep.subr.bf16.mxu0 0
  %308 = vmatpush1.bf16.msra.mxu0 0
  %309 = vmatprep.mubr.bf16.mxu0 0
  %310 = vmatmul.mubr.bf16.gmra.mrb[0].mxu0 %v75
  %v311 = vpop.f32.mrb[0].mxu0
  %v312 = vadd.f32 0.0, %v311
  %v313 = vpop.f32.mrb[0].mxu0
  %v314 = vadd.f32 0.0, %v313
  %v315 = vpop.f32.mrb[0].mxu0
  %v316 = vpop.f32.mrb[0].mxu0
  %317 = vdwg.mxu0
  %v318 = vadd.f32 %v71, %v271
  %v319 = vadd.f32 %v72, %v273
  %v320 = vadd.f32 %v73, %v312
  %v321 = vadd.f32 %v74, %v314
  %v322 = vmul.f32 %v318, 0.5
  %v323 = vmul.f32 %v319, 0.5
  %v324 = vmul.f32 %v320, 0.5
  %v325 = vtanh.pop %v322
  %v326 = vtanh.pop %v323
  %v327 = vtanh.pop %v324
  %v328 = vadd.f32 %v325, 1.0
  %v329 = vadd.f32 %v326, 1.0
  %v330 = vadd.f32 %v327, 1.0
  %v331 = vmul.f32 %v328, 0.5
  %v332 = vmul.f32 %v329, 0.5
  %v333 = vmul.f32 %v330, 0.5
  %v334 = vtanh.pop %v321
  %v335 = vmul.f32 %v332, %v68
  %v336 = vmul.f32 %v331, %v334
  %v337 = vadd.f32 %v335, %v336
  %v338 = vtanh.pop %v337
  %v339 = vmul.f32 %v333, %v338
  %340 = vst [vmem:[#allocation4] sm:$0xff] %v339
  %s341 = scalar_lea.vmem %s0, 16
  %v342 = vld [vmem:[%s341] sm:$0xff]
  %v343 = vld [vmem:[%s341 + $0x8] sm:$0xff]
  %v344 = vunpack.c.l.bf16 %v342
  %v345 = vunpack.c.h.bf16 %v342
  %v346 = vunpack.c.l.bf16 %v343
  %v347 = vunpack.c.h.bf16 %v343
  %v348 = vpack.c.bf16 %v339, %v339
  %349 = vmatprep.subr.bf16.mxu0 %v173
  %350 = vmatpush1.bf16.msra.mxu0 %v172
  %351 = vmatprep.subr.bf16.mxu0 %v177
  %352 = vmatpush1.bf16.msra.mxu0 %v176
  %353 = vmatprep.subr.bf16.mxu0 %v181
  %354 = vmatpush1.bf16.msra.mxu0 %v180
  %355 = vmatprep.subr.bf16.mxu0 %v185
  %356 = vmatpush1.bf16.msra.mxu0 %v184
  %357 = vmatprep.subr.bf16.mxu0 %v189
  %358 = vmatpush1.bf16.msra.mxu0 %v188
  %359 = vmatprep.subr.bf16.mxu0 %v193
  %360 = vmatpush1.bf16.msra.mxu0 %v192
  %361 = vmatprep.subr.bf16.mxu0 %v197
  %362 = vmatpush1.bf16.msra.mxu0 %v196
  %363 = vmatprep.subr.bf16.mxu0 %v201
  %364 = vmatpush1.bf16.msra.mxu0 %v200
  %365 = vmatprep.subr.bf16.mxu0 0
  %366 = vmatpush1.bf16.msra.mxu0 0
  %367 = vmatprep.subr.bf16.mxu0 0
  %368 = vmatpush1.bf16.msra.mxu0 0
  %369 = vmatprep.subr.bf16.mxu0 0
  %370 = vmatpush1.bf16.msra.mxu0 0
  %371 = vmatprep.subr.bf16.mxu0 0
  %372 = vmatpush1.bf16.msra.mxu0 0
  %373 = vmatprep.subr.bf16.mxu0 0
  %374 = vmatpush1.bf16.msra.mxu0 0
  %375 = vmatprep.subr.bf16.mxu0 0
  %376 = vmatpush1.bf16.msra.mxu0 0
  %377 = vmatprep.subr.bf16.mxu0 0
  %378 = vmatpush1.bf16.msra.mxu0 0
  %379 = vmatprep.subr.bf16.mxu0 0
  %380 = vmatpush1.bf16.msra.mxu0 0
  %381 = vmatprep.mubr.bf16.mxu0 0
  %382 = vmatmul.mubr.bf16.gmra.mrb[0].mxu0 %v348
  %v383 = vpop.f32.mrb[0].mxu0
  %v384 = vadd.f32 0.0, %v383
  %v385 = vpop.f32.mrb[0].mxu0
  %v386 = vadd.f32 0.0, %v385
  %v387 = vpop.f32.mrb[0].mxu0
  %v388 = vpop.f32.mrb[0].mxu0
  %389 = vdwg.mxu0
  %390 = vmatprep.subr.bf16.mxu0 %v175
  %391 = vmatpush1.bf16.msra.mxu0 %v174
  %392 = vmatprep.subr.bf16.mxu0 %v179
  %393 = vmatpush1.bf16.msra.mxu0 %v178
  %394 = vmatprep.subr.bf16.mxu0 %v183
  %395 = vmatpush1.bf16.msra.mxu0 %v182
  %396 = vmatprep.subr.bf16.mxu0 %v187
  %397 = vmatpush1.bf16.msra.mxu0 %v186
  %398 = vmatprep.subr.bf16.mxu0 %v191
  %399 = vmatpush1.bf16.msra.mxu0 %v190
  %400 = vmatprep.subr.bf16.mxu0 %v195
  %401 = vmatpush1.bf16.msra.mxu0 %v194
  %402 = vmatprep.subr.bf16.mxu0 %v199
  %403 = vmatpush1.bf16.msra.mxu0 %v198
  %404 = vmatprep.subr.bf16.mxu0 %v203
  %405 = vmatpush1.bf16.msra.mxu0 %v202
  %406 = vmatprep.subr.bf16.mxu0 0
  %407 = vmatpush1.bf16.msra.mxu0 0
  %408 = vmatprep.subr.bf16.mxu0 0
  %409 = vmatpush1.bf16.msra.mxu0 0
  %410 = vmatprep.subr.bf16.mxu0 0
  %411 = vmatpush1.bf16.msra.mxu0 0
  %412 = vmatprep.subr.bf16.mxu0 0
  %413 = vmatpush1.bf16.msra.mxu0 0
  %414 = vmatprep.subr.bf16.mxu0 0
  %415 = vmatpush1.bf16.msra.mxu0 0
  %416 = vmatprep.subr.bf16.mxu0 0
  %417 = vmatpush1.bf16.msra.mxu0 0
  %418 = vmatprep.subr.bf16.mxu0 0
  %419 = vmatpush1.bf16.msra.mxu0 0
  %420 = vmatprep.subr.bf16.mxu0 0
  %421 = vmatpush1.bf16.msra.mxu0 0
  %422 = vmatprep.mubr.bf16.mxu0 0
  %423 = vmatmul.mubr.bf16.gmra.mrb[0].mxu0 %v348
  %v424 = vpop.f32.mrb[0].mxu0
  %v425 = vadd.f32 0.0, %v424
  %v426 = vpop.f32.mrb[0].mxu0
  %v427 = vadd.f32 0.0, %v426
  %v428 = vpop.f32.mrb[0].mxu0
  %v429 = vpop.f32.mrb[0].mxu0
  %430 = vdwg.mxu0
  %v431 = vadd.f32 %v344, %v384
  %v432 = vadd.f32 %v345, %v386
  %v433 = vadd.f32 %v346, %v425
  %v434 = vadd.f32 %v347, %v427
  %v435 = vmul.f32 %v431, 0.5
  %v436 = vmul.f32 %v432, 0.5
  %v437 = vmul.f32 %v433, 0.5
  %v438 = vtanh.pop %v435
  %v439 = vtanh.pop %v436
  %v440 = vtanh.pop %v437
  %v441 = vadd.f32 %v438, 1.0
  %v442 = vadd.f32 %v439, 1.0
  %v443 = vadd.f32 %v440, 1.0
  %v444 = vmul.f32 %v441, 0.5
  %v445 = vmul.f32 %v442, 0.5
  %v446 = vmul.f32 %v443, 0.5
  %v447 = vtanh.pop %v434
  %v448 = vmul.f32 %v445, %v337
  %v449 = vmul.f32 %v444, %v447
  %v450 = vadd.f32 %v448, %v449
  %v451 = vtanh.pop %v450
  %v452 = vmul.f32 %v446, %v451
  %s453 = scalar_lea.vmem [#allocation4], 8
  %454 = vst [vmem:[%s453] sm:$0xff] %v452
  %s455 = scalar_lea.vmem %s0, 32
  %v456 = vld [vmem:[%s455] sm:$0xff]
  %v457 = vld [vmem:[%s455 + $0x8] sm:$0xff]
  %v458 = vunpack.c.l.bf16 %v456
  %v459 = vunpack.c.h.bf16 %v456
  %v460 = vunpack.c.l.bf16 %v457
  %v461 = vunpack.c.h.bf16 %v457
  %v462 = vpack.c.bf16 %v452, %v452
  %463 = vmatprep.subr.bf16.mxu0 %v173
  %464 = vmatpush1.bf16.msra.mxu0 %v172
  %465 = vmatprep.subr.bf16.mxu0 %v177
  %466 = vmatpush1.bf16.msra.mxu0 %v176
  %467 = vmatprep.subr.bf16.mxu0 %v181
  %468 = vmatpush1.bf16.msra.mxu0 %v180
  %469 = vmatprep.subr.bf16.mxu0 %v185
  %470 = vmatpush1.bf16.msra.mxu0 %v184
  %471 = vmatprep.subr.bf16.mxu0 %v189
  %472 = vmatpush1.bf16.msra.mxu0 %v188
  %473 = vmatprep.subr.bf16.mxu0 %v193
  %474 = vmatpush1.bf16.msra.mxu0 %v192
  %475 = vmatprep.subr.bf16.mxu0 %v197
  %476 = vmatpush1.bf16.msra.mxu0 %v196
  %477 = vmatprep.subr.bf16.mxu0 %v201
  %478 = vmatpush1.bf16.msra.mxu0 %v200
  %479 = vmatprep.subr.bf16.mxu0 0
  %480 = vmatpush1.bf16.msra.mxu0 0
  %481 = vmatprep.subr.bf16.mxu0 0
  %482 = vmatpush1.bf16.msra.mxu0 0
  %483 = vmatprep.subr.bf16.mxu0 0
  %484 = vmatpush1.bf16.msra.mxu0 0
  %485 = vmatprep.subr.bf16.mxu0 0
  %486 = vmatpush1.bf16.msra.mxu0 0
  %487 = vmatprep.subr.bf16.mxu0 0
  %488 = vmatpush1.bf16.msra.mxu0 0
  %489 = vmatprep.subr.bf16.mxu0 0
  %490 = vmatpush1.bf16.msra.mxu0 0
  %491 = vmatprep.subr.bf16.mxu0 0
  %492 = vmatpush1.bf16.msra.mxu0 0
  %493 = vmatprep.subr.bf16.mxu0 0
  %494 = vmatpush1.bf16.msra.mxu0 0
  %495 = vmatprep.mubr.bf16.mxu0 0
  %496 = vmatmul.mubr.bf16.gmra.mrb[0].mxu0 %v462
  %v497 = vpop.f32.mrb[0].mxu0
  %v498 = vadd.f32 0.0, %v497
  %v499 = vpop.f32.mrb[0].mxu0
  %v500 = vadd.f32 0.0, %v499
  %v501 = vpop.f32.mrb[0].mxu0
  %v502 = vpop.f32.mrb[0].mxu0
  %503 = vdwg.mxu0
  %504 = vmatprep.subr.bf16.mxu0 %v175
  %505 = vmatpush1.bf16.msra.mxu0 %v174
  %506 = vmatprep.subr.bf16.mxu0 %v179
  %507 = vmatpush1.bf16.msra.mxu0 %v178
  %508 = vmatprep.subr.bf16.mxu0 %v183
  %509 = vmatpush1.bf16.msra.mxu0 %v182
  %510 = vmatprep.subr.bf16.mxu0 %v187
  %511 = vmatpush1.bf16.msra.mxu0 %v186
  %512 = vmatprep.subr.bf16.mxu0 %v191
  %513 = vmatpush1.bf16.msra.mxu0 %v190
  %514 = vmatprep.subr.bf16.mxu0 %v195
  %515 = vmatpush1.bf16.msra.mxu0 %v194
  %516 = vmatprep.subr.bf16.mxu0 %v199
  %517 = vmatpush1.bf16.msra.mxu0 %v198
  %518 = vmatprep.subr.bf16.mxu0 %v203
  %519 = vmatpush1.bf16.msra.mxu0 %v202
  %520 = vmatprep.subr.bf16.mxu0 0
  %521 = vmatpush1.bf16.msra.mxu0 0
  %522 = vmatprep.subr.bf16.mxu0 0
  %523 = vmatpush1.bf16.msra.mxu0 0
  %524 = vmatprep.subr.bf16.mxu0 0
  %525 = vmatpush1.bf16.msra.mxu0 0
  %526 = vmatprep.subr.bf16.mxu0 0
  %527 = vmatpush1.bf16.msra.mxu0 0
  %528 = vmatprep.subr.bf16.mxu0 0
  %529 = vmatpush1.bf16.msra.mxu0 0
  %530 = vmatprep.subr.bf16.mxu0 0
  %531 = vmatpush1.bf16.msra.mxu0 0
  %532 = vmatprep.subr.bf16.mxu0 0
  %533 = vmatpush1.bf16.msra.mxu0 0
  %534 = vmatprep.subr.bf16.mxu0 0
  %535 = vmatpush1.bf16.msra.mxu0 0
  %536 = vmatprep.mubr.bf16.mxu0 0
  %537 = vmatmul.mubr.bf16.gmra.mrb[0].mxu0 %v462
  %v538 = vpop.f32.mrb[0].mxu0
  %v539 = vadd.f32 0.0, %v538
  %v540 = vpop.f32.mrb[0].mxu0
  %v541 = vadd.f32 0.0, %v540
  %v542 = vpop.f32.mrb[0].mxu0
  %v543 = vpop.f32.mrb[0].mxu0
  %544 = vdwg.mxu0
  %v545 = vadd.f32 %v458, %v498
  %v546 = vadd.f32 %v459, %v500
  %v547 = vadd.f32 %v460, %v539
  %v548 = vadd.f32 %v461, %v541
  %v549 = vmul.f32 %v545, 0.5
  %v550 = vmul.f32 %v546, 0.5
  %v551 = vmul.f32 %v547, 0.5
  %v552 = vtanh.pop %v549
  %v553 = vtanh.pop %v550
  %v554 = vtanh.pop %v551
  %v555 = vadd.f32 %v552, 1.0
  %v556 = vadd.f32 %v553, 1.0
  %v557 = vadd.f32 %v554, 1.0
  %v558 = vmul.f32 %v555, 0.5
  %v559 = vmul.f32 %v556, 0.5
  %v560 = vmul.f32 %v557, 0.5
  %v561 = vtanh.pop %v548
  %v562 = vmul.f32 %v559, %v450
  %v563 = vmul.f32 %v558, %v561
  %v564 = vadd.f32 %v562, %v563
  %v565 = vtanh.pop %v564
  %v566 = vmul.f32 %v560, %v565
  %s567 = scalar_lea.vmem [#allocation4], 16
  %568 = vst [vmem:[%s567] sm:$0xff] %v566
  %s569 = scalar_lea.vmem %s0, 48
  %v570 = vld [vmem:[%s569] sm:$0xff]
  %v571 = vld [vmem:[%s569 + $0x8] sm:$0xff]
  %v572 = vunpack.c.l.bf16 %v570
  %v573 = vunpack.c.h.bf16 %v570
  %v574 = vunpack.c.l.bf16 %v571
  %v575 = vunpack.c.h.bf16 %v571
  %v576 = vpack.c.bf16 %v566, %v566
  %577 = vmatprep.subr.bf16.mxu0 %v173
  %578 = vmatpush1.bf16.msra.mxu0 %v172
  %579 = vmatprep.subr.bf16.mxu0 %v177
  %580 = vmatpush1.bf16.msra.mxu0 %v176
  %581 = vmatprep.subr.bf16.mxu0 %v181
  %582 = vmatpush1.bf16.msra.mxu0 %v180
  %583 = vmatprep.subr.bf16.mxu0 %v185
  %584 = vmatpush1.bf16.msra.mxu0 %v184
  %585 = vmatprep.subr.bf16.mxu0 %v189
  %586 = vmatpush1.bf16.msra.mxu0 %v188
  %587 = vmatprep.subr.bf16.mxu0 %v193
  %588 = vmatpush1.bf16.msra.mxu0 %v192
  %589 = vmatprep.subr.bf16.mxu0 %v197
  %590 = vmatpush1.bf16.msra.mxu0 %v196
  %591 = vmatprep.subr.bf16.mxu0 %v201
  %592 = vmatpush1.bf16.msra.mxu0 %v200
  %593 = vmatprep.subr.bf16.mxu0 0
  %594 = vmatpush1.bf16.msra.mxu0 0
  %595 = vmatprep.subr.bf16.mxu0 0
  %596 = vmatpush1.bf16.msra.mxu0 0
  %597 = vmatprep.subr.bf16.mxu0 0
  %598 = vmatpush1.bf16.msra.mxu0 0
  %599 = vmatprep.subr.bf16.mxu0 0
  %600 = vmatpush1.bf16.msra.mxu0 0
  %601 = vmatprep.subr.bf16.mxu0 0
  %602 = vmatpush1.bf16.msra.mxu0 0
  %603 = vmatprep.subr.bf16.mxu0 0
  %604 = vmatpush1.bf16.msra.mxu0 0
  %605 = vmatprep.subr.bf16.mxu0 0
  %606 = vmatpush1.bf16.msra.mxu0 0
  %607 = vmatprep.subr.bf16.mxu0 0
  %608 = vmatpush1.bf16.msra.mxu0 0
  %609 = vmatprep.mubr.bf16.mxu0 0
  %610 = vmatmul.mubr.bf16.gmra.mrb[0].mxu0 %v576
  %v611 = vpop.f32.mrb[0].mxu0
  %v612 = vadd.f32 0.0, %v611
  %v613 = vpop.f32.mrb[0].mxu0
  %v614 = vadd.f32 0.0, %v613
  %v615 = vpop.f32.mrb[0].mxu0
  %v616 = vpop.f32.mrb[0].mxu0
  %617 = vdwg.mxu0
  %618 = vmatprep.subr.bf16.mxu0 %v175
  %619 = vmatpush1.bf16.msra.mxu0 %v174
  %620 = vmatprep.subr.bf16.mxu0 %v179
  %621 = vmatpush1.bf16.msra.mxu0 %v178
  %622 = vmatprep.subr.bf16.mxu0 %v183
  %623 = vmatpush1.bf16.msra.mxu0 %v182
  %624 = vmatprep.subr.bf16.mxu0 %v187
  %625 = vmatpush1.bf16.msra.mxu0 %v186
  %626 = vmatprep.subr.bf16.mxu0 %v191
  %627 = vmatpush1.bf16.msra.mxu0 %v190
  %628 = vmatprep.subr.bf16.mxu0 %v195
  %629 = vmatpush1.bf16.msra.mxu0 %v194
  %630 = vmatprep.subr.bf16.mxu0 %v199
  %631 = vmatpush1.bf16.msra.mxu0 %v198
  %632 = vmatprep.subr.bf16.mxu0 %v203
  %633 = vmatpush1.bf16.msra.mxu0 %v202
  %634 = vmatprep.subr.bf16.mxu0 0
  %635 = vmatpush1.bf16.msra.mxu0 0
  %636 = vmatprep.subr.bf16.mxu0 0
  %637 = vmatpush1.bf16.msra.mxu0 0
  %638 = vmatprep.subr.bf16.mxu0 0
  %639 = vmatpush1.bf16.msra.mxu0 0
  %640 = vmatprep.subr.bf16.mxu0 0
  %641 = vmatpush1.bf16.msra.mxu0 0
  %642 = vmatprep.subr.bf16.mxu0 0
  %643 = vmatpush1.bf16.msra.mxu0 0
  %644 = vmatprep.subr.bf16.mxu0 0
  %645 = vmatpush1.bf16.msra.mxu0 0
  %646 = vmatprep.subr.bf16.mxu0 0
  %647 = vmatpush1.bf16.msra.mxu0 0
  %648 = vmatprep.subr.bf16.mxu0 0
  %649 = vmatpush1.bf16.msra.mxu0 0
  %650 = vmatprep.mubr.bf16.mxu0 0
  %651 = vmatmul.mubr.bf16.gmra.mrb[0].mxu0 %v576
  %v652 = vpop.f32.mrb[0].mxu0
  %v653 = vadd.f32 0.0, %v652
  %v654 = vpop.f32.mrb[0].mxu0
  %v655 = vadd.f32 0.0, %v654
  %v656 = vpop.f32.mrb[0].mxu0
  %v657 = vpop.f32.mrb[0].mxu0
  %658 = vdwg.mxu0
  %v659 = vadd.f32 %v572, %v612
  %v660 = vadd.f32 %v573, %v614
  %v661 = vadd.f32 %v574, %v653
  %v662 = vadd.f32 %v575, %v655
  %v663 = vmul.f32 %v659, 0.5
  %v664 = vmul.f32 %v660, 0.5
  %v665 = vmul.f32 %v661, 0.5
  %v666 = vtanh.pop %v663
  %v667 = vtanh.pop %v664
  %v668 = vtanh.pop %v665
  %v669 = vadd.f32 %v666, 1.0
  %v670 = vadd.f32 %v667, 1.0
  %v671 = vadd.f32 %v668, 1.0
  %v672 = vmul.f32 %v669, 0.5
  %v673 = vmul.f32 %v670, 0.5
  %v674 = vmul.f32 %v671, 0.5
  %v675 = vtanh.pop %v662
  %v676 = vmul.f32 %v673, %v564
  %v677 = vmul.f32 %v672, %v675
  %v678 = vadd.f32 %v676, %v677
  %v679 = vtanh.pop %v678
  %v680 = vmul.f32 %v674, %v679
  %s681 = scalar_lea.vmem [#allocation4], 24
  %682 = vst [vmem:[%s681] sm:$0xff] %v680
  %s683 = scalar_lea.vmem %s0, 64
  %v684 = vld [vmem:[%s683] sm:$0xff]
  %v685 = vld [vmem:[%s683 + $0x8] sm:$0xff]
  %v686 = vunpack.c.l.bf16 %v684
  %v687 = vunpack.c.h.bf16 %v684
  %v688 = vunpack.c.l.bf16 %v685
  %v689 = vunpack.c.h.bf16 %v685
  %v690 = vpack.c.bf16 %v680, %v680
  %691 = vmatprep.subr.bf16.mxu0 %v173
  %692 = vmatpush1.bf16.msra.mxu0 %v172
  %693 = vmatprep.subr.bf16.mxu0 %v177
  %694 = vmatpush1.bf16.msra.mxu0 %v176
  %695 = vmatprep.subr.bf16.mxu0 %v181
  %696 = vmatpush1.bf16.msra.mxu0 %v180
  %697 = vmatprep.subr.bf16.mxu0 %v185
  %698 = vmatpush1.bf16.msra.mxu0 %v184
  %699 = vmatprep.subr.bf16.mxu0 %v189
  %700 = vmatpush1.bf16.msra.mxu0 %v188
  %701 = vmatprep.subr.bf16.mxu0 %v193
  %702 = vmatpush1.bf16.msra.mxu0 %v192
  %703 = vmatprep.subr.bf16.mxu0 %v197
  %704 = vmatpush1.bf16.msra.mxu0 %v196
  %705 = vmatprep.subr.bf16.mxu0 %v201
  %706 = vmatpush1.bf16.msra.mxu0 %v200
  %707 = vmatprep.subr.bf16.mxu0 0
  %708 = vmatpush1.bf16.msra.mxu0 0
  %709 = vmatprep.subr.bf16.mxu0 0
  %710 = vmatpush1.bf16.msra.mxu0 0
  %711 = vmatprep.subr.bf16.mxu0 0
  %712 = vmatpush1.bf16.msra.mxu0 0
  %713 = vmatprep.subr.bf16.mxu0 0
  %714 = vmatpush1.bf16.msra.mxu0 0
  %715 = vmatprep.subr.bf16.mxu0 0
  %716 = vmatpush1.bf16.msra.mxu0 0
  %717 = vmatprep.subr.bf16.mxu0 0
  %718 = vmatpush1.bf16.msra.mxu0 0
  %719 = vmatprep.subr.bf16.mxu0 0
  %720 = vmatpush1.bf16.msra.mxu0 0
  %721 = vmatprep.subr.bf16.mxu0 0
  %722 = vmatpush1.bf16.msra.mxu0 0
  %723 = vmatprep.mubr.bf16.mxu0 0
  %724 = vmatmul.mubr.bf16.gmra.mrb[0].mxu0 %v690
  %v725 = vpop.f32.mrb[0].mxu0
  %v726 = vadd.f32 0.0, %v725
  %v727 = vpop.f32.mrb[0].mxu0
  %v728 = vadd.f32 0.0, %v727
  %v729 = vpop.f32.mrb[0].mxu0
  %v730 = vpop.f32.mrb[0].mxu0
  %731 = vdwg.mxu0
  %732 = vmatprep.subr.bf16.mxu0 %v175
  %733 = vmatpush1.bf16.msra.mxu0 %v174
  %734 = vmatprep.subr.bf16.mxu0 %v179
  %735 = vmatpush1.bf16.msra.mxu0 %v178
  %736 = vmatprep.subr.bf16.mxu0 %v183
  %737 = vmatpush1.bf16.msra.mxu0 %v182
  %738 = vmatprep.subr.bf16.mxu0 %v187
  %739 = vmatpush1.bf16.msra.mxu0 %v186
  %740 = vmatprep.subr.bf16.mxu0 %v191
  %741 = vmatpush1.bf16.msra.mxu0 %v190
  %742 = vmatprep.subr.bf16.mxu0 %v195
  %743 = vmatpush1.bf16.msra.mxu0 %v194
  %744 = vmatprep.subr.bf16.mxu0 %v199
  %745 = vmatpush1.bf16.msra.mxu0 %v198
  %746 = vmatprep.subr.bf16.mxu0 %v203
  %747 = vmatpush1.bf16.msra.mxu0 %v202
  %748 = vmatprep.subr.bf16.mxu0 0
  %749 = vmatpush1.bf16.msra.mxu0 0
  %750 = vmatprep.subr.bf16.mxu0 0
  %751 = vmatpush1.bf16.msra.mxu0 0
  %752 = vmatprep.subr.bf16.mxu0 0
  %753 = vmatpush1.bf16.msra.mxu0 0
  %754 = vmatprep.subr.bf16.mxu0 0
  %755 = vmatpush1.bf16.msra.mxu0 0
  %756 = vmatprep.subr.bf16.mxu0 0
  %757 = vmatpush1.bf16.msra.mxu0 0
  %758 = vmatprep.subr.bf16.mxu0 0
  %759 = vmatpush1.bf16.msra.mxu0 0
  %760 = vmatprep.subr.bf16.mxu0 0
  %761 = vmatpush1.bf16.msra.mxu0 0
  %762 = vmatprep.subr.bf16.mxu0 0
  %763 = vmatpush1.bf16.msra.mxu0 0
  %764 = vmatprep.mubr.bf16.mxu0 0
  %765 = vmatmul.mubr.bf16.gmra.mrb[0].mxu0 %v690
  %v766 = vpop.f32.mrb[0].mxu0
  %v767 = vadd.f32 0.0, %v766
  %v768 = vpop.f32.mrb[0].mxu0
  %v769 = vadd.f32 0.0, %v768
  %v770 = vpop.f32.mrb[0].mxu0
  %v771 = vpop.f32.mrb[0].mxu0
  %772 = vdwg.mxu0
  %v773 = vadd.f32 %v686, %v726
  %v774 = vadd.f32 %v687, %v728
  %v775 = vadd.f32 %v688, %v767
  %v776 = vadd.f32 %v689, %v769
  %v777 = vmul.f32 %v773, 0.5
  %v778 = vmul.f32 %v774, 0.5
  %v779 = vmul.f32 %v775, 0.5
  %v780 = vtanh.pop %v777
  %v781 = vtanh.pop %v778
  %v782 = vtanh.pop %v779
  %v783 = vadd.f32 %v780, 1.0
  %v784 = vadd.f32 %v781, 1.0
  %v785 = vadd.f32 %v782, 1.0
  %v786 = vmul.f32 %v783, 0.5
  %v787 = vmul.f32 %v784, 0.5
  %v788 = vmul.f32 %v785, 0.5
  %v789 = vtanh.pop %v776
  %v790 = vmul.f32 %v787, %v678
  %v791 = vmul.f32 %v786, %v789
  %v792 = vadd.f32 %v790, %v791
  %v793 = vtanh.pop %v792
  %v794 = vmul.f32 %v788, %v793
  %s795 = scalar_lea.vmem [#allocation4], 32
  %796 = vst [vmem:[%s795] sm:$0xff] %v794
  %s797 = scalar_lea.vmem %s0, 80
  %v798 = vld [vmem:[%s797] sm:$0xff]
  %v799 = vld [vmem:[%s797 + $0x8] sm:$0xff]
  %v800 = vunpack.c.l.bf16 %v798
  %v801 = vunpack.c.h.bf16 %v798
  %v802 = vunpack.c.l.bf16 %v799
  %v803 = vunpack.c.h.bf16 %v799
  %v804 = vpack.c.bf16 %v794, %v794
  %805 = vmatprep.subr.bf16.mxu0 %v173
  %806 = vmatpush1.bf16.msra.mxu0 %v172
  %807 = vmatprep.subr.bf16.mxu0 %v177
  %808 = vmatpush1.bf16.msra.mxu0 %v176
  %809 = vmatprep.subr.bf16.mxu0 %v181
  %810 = vmatpush1.bf16.msra.mxu0 %v180
  %811 = vmatprep.subr.bf16.mxu0 %v185
  %812 = vmatpush1.bf16.msra.mxu0 %v184
  %813 = vmatprep.subr.bf16.mxu0 %v189
  %814 = vmatpush1.bf16.msra.mxu0 %v188
  %815 = vmatprep.subr.bf16.mxu0 %v193
  %816 = vmatpush1.bf16.msra.mxu0 %v192
  %817 = vmatprep.subr.bf16.mxu0 %v197
  %818 = vmatpush1.bf16.msra.mxu0 %v196
  %819 = vmatprep.subr.bf16.mxu0 %v201
  %820 = vmatpush1.bf16.msra.mxu0 %v200
  %821 = vmatprep.subr.bf16.mxu0 0
  %822 = vmatpush1.bf16.msra.mxu0 0
  %823 = vmatprep.subr.bf16.mxu0 0
  %824 = vmatpush1.bf16.msra.mxu0 0
  %825 = vmatprep.subr.bf16.mxu0 0
  %826 = vmatpush1.bf16.msra.mxu0 0
  %827 = vmatprep.subr.bf16.mxu0 0
  %828 = vmatpush1.bf16.msra.mxu0 0
  %829 = vmatprep.subr.bf16.mxu0 0
  %830 = vmatpush1.bf16.msra.mxu0 0
  %831 = vmatprep.subr.bf16.mxu0 0
  %832 = vmatpush1.bf16.msra.mxu0 0
  %833 = vmatprep.subr.bf16.mxu0 0
  %834 = vmatpush1.bf16.msra.mxu0 0
  %835 = vmatprep.subr.bf16.mxu0 0
  %836 = vmatpush1.bf16.msra.mxu0 0
  %837 = vmatprep.mubr.bf16.mxu0 0
  %838 = vmatmul.mubr.bf16.gmra.mrb[0].mxu0 %v804
  %v839 = vpop.f32.mrb[0].mxu0
  %v840 = vadd.f32 0.0, %v839
  %v841 = vpop.f32.mrb[0].mxu0
  %v842 = vadd.f32 0.0, %v841
  %v843 = vpop.f32.mrb[0].mxu0
  %v844 = vpop.f32.mrb[0].mxu0
  %845 = vdwg.mxu0
  %846 = vmatprep.subr.bf16.mxu0 %v175
  %847 = vmatpush1.bf16.msra.mxu0 %v174
  %848 = vmatprep.subr.bf16.mxu0 %v179
  %849 = vmatpush1.bf16.msra.mxu0 %v178
  %850 = vmatprep.subr.bf16.mxu0 %v183
  %851 = vmatpush1.bf16.msra.mxu0 %v182
  %852 = vmatprep.subr.bf16.mxu0 %v187
  %853 = vmatpush1.bf16.msra.mxu0 %v186
  %854 = vmatprep.subr.bf16.mxu0 %v191
  %855 = vmatpush1.bf16.msra.mxu0 %v190
  %856 = vmatprep.subr.bf16.mxu0 %v195
  %857 = vmatpush1.bf16.msra.mxu0 %v194
  %858 = vmatprep.subr.bf16.mxu0 %v199
  %859 = vmatpush1.bf16.msra.mxu0 %v198
  %860 = vmatprep.subr.bf16.mxu0 %v203
  %861 = vmatpush1.bf16.msra.mxu0 %v202
  %862 = vmatprep.subr.bf16.mxu0 0
  %863 = vmatpush1.bf16.msra.mxu0 0
  %864 = vmatprep.subr.bf16.mxu0 0
  %865 = vmatpush1.bf16.msra.mxu0 0
  %866 = vmatprep.subr.bf16.mxu0 0
  %867 = vmatpush1.bf16.msra.mxu0 0
  %868 = vmatprep.subr.bf16.mxu0 0
  %869 = vmatpush1.bf16.msra.mxu0 0
  %870 = vmatprep.subr.bf16.mxu0 0
  %871 = vmatpush1.bf16.msra.mxu0 0
  %872 = vmatprep.subr.bf16.mxu0 0
  %873 = vmatpush1.bf16.msra.mxu0 0
  %874 = vmatprep.subr.bf16.mxu0 0
  %875 = vmatpush1.bf16.msra.mxu0 0
  %876 = vmatprep.subr.bf16.mxu0 0
  %877 = vmatpush1.bf16.msra.mxu0 0
  %878 = vmatprep.mubr.bf16.mxu0 0
  %879 = vmatmul.mubr.bf16.gmra.mrb[0].mxu0 %v804
  %v880 = vpop.f32.mrb[0].mxu0
  %v881 = vadd.f32 0.0, %v880
  %v882 = vpop.f32.mrb[0].mxu0
  %v883 = vadd.f32 0.0, %v882
  %v884 = vpop.f32.mrb[0].mxu0
  %v885 = vpop.f32.mrb[0].mxu0
  %886 = vdwg.mxu0
  %v887 = vadd.f32 %v800, %v840
  %v888 = vadd.f32 %v801, %v842
  %v889 = vadd.f32 %v802, %v881
  %v890 = vadd.f32 %v803, %v883
  %v891 = vmul.f32 %v887, 0.5
  %v892 = vmul.f32 %v888, 0.5
  %v893 = vmul.f32 %v889, 0.5
  %v894 = vtanh.pop %v891
  %v895 = vtanh.pop %v892
  %v896 = vtanh.pop %v893
  %v897 = vadd.f32 %v894, 1.0
  %v898 = vadd.f32 %v895, 1.0
  %v899 = vadd.f32 %v896, 1.0
  %v900 = vmul.f32 %v897, 0.5
  %v901 = vmul.f32 %v898, 0.5
  %v902 = vmul.f32 %v899, 0.5
  %v903 = vtanh.pop %v890
  %v904 = vmul.f32 %v901, %v792
  %v905 = vmul.f32 %v900, %v903
  %v906 = vadd.f32 %v904, %v905
  %v907 = vtanh.pop %v906
  %v908 = vmul.f32 %v902, %v907
  %s909 = scalar_lea.vmem [#allocation4], 40
  %910 = vst [vmem:[%s909] sm:$0xff] %v908
  %s911 = scalar_lea.vmem %s0, 96
  %v912 = vld [vmem:[%s911] sm:$0xff]
  %v913 = vld [vmem:[%s911 + $0x8] sm:$0xff]
  %v914 = vunpack.c.l.bf16 %v912
  %v915 = vunpack.c.h.bf16 %v912
  %v916 = vunpack.c.l.bf16 %v913
  %v917 = vunpack.c.h.bf16 %v913
  %v918 = vpack.c.bf16 %v908, %v908
  %919 = vmatprep.subr.bf16.mxu0 %v173
  %920 = vmatpush1.bf16.msra.mxu0 %v172
  %921 = vmatprep.subr.bf16.mxu0 %v177
  %922 = vmatpush1.bf16.msra.mxu0 %v176
  %923 = vmatprep.subr.bf16.mxu0 %v181
  %924 = vmatpush1.bf16.msra.mxu0 %v180
  %925 = vmatprep.subr.bf16.mxu0 %v185
  %926 = vmatpush1.bf16.msra.mxu0 %v184
  %927 = vmatprep.subr.bf16.mxu0 %v189
  %928 = vmatpush1.bf16.msra.mxu0 %v188
  %929 = vmatprep.subr.bf16.mxu0 %v193
  %930 = vmatpush1.bf16.msra.mxu0 %v192
  %931 = vmatprep.subr.bf16.mxu0 %v197
  %932 = vmatpush1.bf16.msra.mxu0 %v196
  %933 = vmatprep.subr.bf16.mxu0 %v201
  %934 = vmatpush1.bf16.msra.mxu0 %v200
  %935 = vmatprep.subr.bf16.mxu0 0
  %936 = vmatpush1.bf16.msra.mxu0 0
  %937 = vmatprep.subr.bf16.mxu0 0
  %938 = vmatpush1.bf16.msra.mxu0 0
  %939 = vmatprep.subr.bf16.mxu0 0
  %940 = vmatpush1.bf16.msra.mxu0 0
  %941 = vmatprep.subr.bf16.mxu0 0
  %942 = vmatpush1.bf16.msra.mxu0 0
  %943 = vmatprep.subr.bf16.mxu0 0
  %944 = vmatpush1.bf16.msra.mxu0 0
  %945 = vmatprep.subr.bf16.mxu0 0
  %946 = vmatpush1.bf16.msra.mxu0 0
  %947 = vmatprep.subr.bf16.mxu0 0
  %948 = vmatpush1.bf16.msra.mxu0 0
  %949 = vmatprep.subr.bf16.mxu0 0
  %950 = vmatpush1.bf16.msra.mxu0 0
  %951 = vmatprep.mubr.bf16.mxu0 0
  %952 = vmatmul.mubr.bf16.gmra.mrb[0].mxu0 %v918
  %v953 = vpop.f32.mrb[0].mxu0
  %v954 = vadd.f32 0.0, %v953
  %v955 = vpop.f32.mrb[0].mxu0
  %v956 = vadd.f32 0.0, %v955
  %v957 = vpop.f32.mrb[0].mxu0
  %v958 = vpop.f32.mrb[0].mxu0
  %959 = vdwg.mxu0
  %960 = vmatprep.subr.bf16.mxu0 %v175
  %961 = vmatpush1.bf16.msra.mxu0 %v174
  %962 = vmatprep.subr.bf16.mxu0 %v179
  %963 = vmatpush1.bf16.msra.mxu0 %v178
  %964 = vmatprep.subr.bf16.mxu0 %v183
  %965 = vmatpush1.bf16.msra.mxu0 %v182
  %966 = vmatprep.subr.bf16.mxu0 %v187
  %967 = vmatpush1.bf16.msra.mxu0 %v186
  %968 = vmatprep.subr.bf16.mxu0 %v191
  %969 = vmatpush1.bf16.msra.mxu0 %v190
  %970 = vmatprep.subr.bf16.mxu0 %v195
  %971 = vmatpush1.bf16.msra.mxu0 %v194
  %972 = vmatprep.subr.bf16.mxu0 %v199
  %973 = vmatpush1.bf16.msra.mxu0 %v198
  %974 = vmatprep.subr.bf16.mxu0 %v203
  %975 = vmatpush1.bf16.msra.mxu0 %v202
  %976 = vmatprep.subr.bf16.mxu0 0
  %977 = vmatpush1.bf16.msra.mxu0 0
  %978 = vmatprep.subr.bf16.mxu0 0
  %979 = vmatpush1.bf16.msra.mxu0 0
  %980 = vmatprep.subr.bf16.mxu0 0
  %981 = vmatpush1.bf16.msra.mxu0 0
  %982 = vmatprep.subr.bf16.mxu0 0
  %983 = vmatpush1.bf16.msra.mxu0 0
  %984 = vmatprep.subr.bf16.mxu0 0
  %985 = vmatpush1.bf16.msra.mxu0 0
  %986 = vmatprep.subr.bf16.mxu0 0
  %987 = vmatpush1.bf16.msra.mxu0 0
  %988 = vmatprep.subr.bf16.mxu0 0
  %989 = vmatpush1.bf16.msra.mxu0 0
  %990 = vmatprep.subr.bf16.mxu0 0
  %991 = vmatpush1.bf16.msra.mxu0 0
  %992 = vmatprep.mubr.bf16.mxu0 0
  %993 = vmatmul.mubr.bf16.gmra.mrb[0].mxu0 %v918
  %v994 = vpop.f32.mrb[0].mxu0
  %v995 = vadd.f32 0.0, %v994
  %v996 = vpop.f32.mrb[0].mxu0
  %v997 = vadd.f32 0.0, %v996
  %v998 = vpop.f32.mrb[0].mxu0
  %v999 = vpop.f32.mrb[0].mxu0
  %1000 = vdwg.mxu0
  %v1001 = vadd.f32 %v914, %v954
  %v1002 = vadd.f32 %v915, %v956
  %v1003 = vadd.f32 %v916, %v995
  %v1004 = vadd.f32 %v917, %v997
  %v1005 = vmul.f32 %v1001, 0.5
  %v1006 = vmul.f32 %v1002, 0.5
  %v1007 = vmul.f32 %v1003, 0.5
  %v1008 = vtanh.pop %v1005
  %v1009 = vtanh.pop %v1006
  %v1010 = vtanh.pop %v1007
  %v1011 = vadd.f32 %v1008, 1.0
  %v1012 = vadd.f32 %v1009, 1.0
  %v1013 = vadd.f32 %v1010, 1.0
  %v1014 = vmul.f32 %v1011, 0.5
  %v1015 = vmul.f32 %v1012, 0.5
  %v1016 = vmul.f32 %v1013, 0.5
  %v1017 = vtanh.pop %v1004
  %v1018 = vmul.f32 %v1015, %v906
  %v1019 = vmul.f32 %v1014, %v1017
  %v1020 = vadd.f32 %v1018, %v1019
  %v1021 = vtanh.pop %v1020
  %v1022 = vmul.f32 %v1016, %v1021
  %s1023 = scalar_lea.vmem [#allocation4], 48
  %1024 = vst [vmem:[%s1023] sm:$0xff] %v1022
  %s1025 = scalar_lea.vmem %s0, 112
  %v1026 = vld [vmem:[%s1025] sm:$0xff]
  %v1027 = vld [vmem:[%s1025 + $0x8] sm:$0xff]
  %v1028 = vunpack.c.l.bf16 %v1026
  %v1029 = vunpack.c.h.bf16 %v1026
  %v1030 = vunpack.c.l.bf16 %v1027
  %v1031 = vunpack.c.h.bf16 %v1027
  %v1032 = vpack.c.bf16 %v1022, %v1022
  %1033 = vmatprep.subr.bf16.mxu0 %v173
  %1034 = vmatpush1.bf16.msra.mxu0 %v172
  %1035 = vmatprep.subr.bf16.mxu0 %v177
  %1036 = vmatpush1.bf16.msra.mxu0 %v176
  %1037 = vmatprep.subr.bf16.mxu0 %v181
  %1038 = vmatpush1.bf16.msra.mxu0 %v180
  %1039 = vmatprep.subr.bf16.mxu0 %v185
  %1040 = vmatpush1.bf16.msra.mxu0 %v184
  %1041 = vmatprep.subr.bf16.mxu0 %v189
  %1042 = vmatpush1.bf16.msra.mxu0 %v188
  %1043 = vmatprep.subr.bf16.mxu0 %v193
  %1044 = vmatpush1.bf16.msra.mxu0 %v192
  %1045 = vmatprep.subr.bf16.mxu0 %v197
  %1046 = vmatpush1.bf16.msra.mxu0 %v196
  %1047 = vmatprep.subr.bf16.mxu0 %v201
  %1048 = vmatpush1.bf16.msra.mxu0 %v200
  %1049 = vmatprep.subr.bf16.mxu0 0
  %1050 = vmatpush1.bf16.msra.mxu0 0
  %1051 = vmatprep.subr.bf16.mxu0 0
  %1052 = vmatpush1.bf16.msra.mxu0 0
  %1053 = vmatprep.subr.bf16.mxu0 0
  %1054 = vmatpush1.bf16.msra.mxu0 0
  %1055 = vmatprep.subr.bf16.mxu0 0
  %1056 = vmatpush1.bf16.msra.mxu0 0
  %1057 = vmatprep.subr.bf16.mxu0 0
  %1058 = vmatpush1.bf16.msra.mxu0 0
  %1059 = vmatprep.subr.bf16.mxu0 0
  %1060 = vmatpush1.bf16.msra.mxu0 0
  %1061 = vmatprep.subr.bf16.mxu0 0
  %1062 = vmatpush1.bf16.msra.mxu0 0
  %1063 = vmatprep.subr.bf16.mxu0 0
  %1064 = vmatpush1.bf16.msra.mxu0 0
  %1065 = vmatprep.mubr.bf16.mxu0 0
  %1066 = vmatmul.mubr.bf16.gmra.mrb[0].mxu0 %v1032
  %v1067 = vpop.f32.mrb[0].mxu0
  %v1068 = vadd.f32 0.0, %v1067
  %v1069 = vpop.f32.mrb[0].mxu0
  %v1070 = vadd.f32 0.0, %v1069
  %v1071 = vpop.f32.mrb[0].mxu0
  %v1072 = vpop.f32.mrb[0].mxu0
  %1073 = vdwg.mxu0
  %1074 = vmatprep.subr.bf16.mxu0 %v175
  %1075 = vmatpush1.bf16.msra.mxu0 %v174
  %1076 = vmatprep.subr.bf16.mxu0 %v179
  %1077 = vmatpush1.bf16.msra.mxu0 %v178
  %1078 = vmatprep.subr.bf16.mxu0 %v183
  %1079 = vmatpush1.bf16.msra.mxu0 %v182
  %1080 = vmatprep.subr.bf16.mxu0 %v187
  %1081 = vmatpush1.bf16.msra.mxu0 %v186
  %1082 = vmatprep.subr.bf16.mxu0 %v191
  %1083 = vmatpush1.bf16.msra.mxu0 %v190
  %1084 = vmatprep.subr.bf16.mxu0 %v195
  %1085 = vmatpush1.bf16.msra.mxu0 %v194
  %1086 = vmatprep.subr.bf16.mxu0 %v199
  %1087 = vmatpush1.bf16.msra.mxu0 %v198
  %1088 = vmatprep.subr.bf16.mxu0 %v203
  %1089 = vmatpush1.bf16.msra.mxu0 %v202
  %1090 = vmatprep.subr.bf16.mxu0 0
  %1091 = vmatpush1.bf16.msra.mxu0 0
  %1092 = vmatprep.subr.bf16.mxu0 0
  %1093 = vmatpush1.bf16.msra.mxu0 0
  %1094 = vmatprep.subr.bf16.mxu0 0
  %1095 = vmatpush1.bf16.msra.mxu0 0
  %1096 = vmatprep.subr.bf16.mxu0 0
  %1097 = vmatpush1.bf16.msra.mxu0 0
  %1098 = vmatprep.subr.bf16.mxu0 0
  %1099 = vmatpush1.bf16.msra.mxu0 0
  %1100 = vmatprep.subr.bf16.mxu0 0
  %1101 = vmatpush1.bf16.msra.mxu0 0
  %1102 = vmatprep.subr.bf16.mxu0 0
  %1103 = vmatpush1.bf16.msra.mxu0 0
  %1104 = vmatprep.subr.bf16.mxu0 0
  %1105 = vmatpush1.bf16.msra.mxu0 0
  %1106 = vmatprep.mubr.bf16.mxu0 0
  %1107 = vmatmul.mubr.bf16.gmra.mrb[0].mxu0 %v1032
  %v1108 = vpop.f32.mrb[0].mxu0
  %v1109 = vadd.f32 0.0, %v1108
  %v1110 = vpop.f32.mrb[0].mxu0
  %v1111 = vadd.f32 0.0, %v1110
  %v1112 = vpop.f32.mrb[0].mxu0
  %v1113 = vpop.f32.mrb[0].mxu0
  %1114 = vdwg.mxu0
  %v1115 = vadd.f32 %v1028, %v1068
  %v1116 = vadd.f32 %v1029, %v1070
  %v1117 = vadd.f32 %v1030, %v1109
  %v1118 = vadd.f32 %v1031, %v1111
  %v1119 = vmul.f32 %v1115, 0.5
  %v1120 = vmul.f32 %v1116, 0.5
  %v1121 = vmul.f32 %v1117, 0.5
  %v1122 = vtanh.pop %v1119
  %v1123 = vtanh.pop %v1120
  %v1124 = vtanh.pop %v1121
  %v1125 = vadd.f32 %v1122, 1.0
  %v1126 = vadd.f32 %v1123, 1.0
  %v1127 = vadd.f32 %v1124, 1.0
  %v1128 = vmul.f32 %v1125, 0.5
  %v1129 = vmul.f32 %v1126, 0.5
  %v1130 = vmul.f32 %v1127, 0.5
  %v1131 = vtanh.pop %v1118
  %v1132 = vmul.f32 %v1129, %v1020
  %v1133 = vmul.f32 %v1128, %v1131
  %v1134 = vadd.f32 %v1132, %v1133
  %v1135 = vtanh.pop %v1134
  %v1136 = vmul.f32 %v1130, %v1135
  %s1137 = scalar_lea.vmem [#allocation4], 56
  %1138 = vst [vmem:[%s1137] sm:$0xff] %v1136
  %1139 = vst [vmem:[#allocation2] sm:$0xff] %v1136
  %1140 = vst [vmem:[#allocation3] sm:$0xff] %v1134
  %v1141 = vld [vmem:[#allocation4] sm:$0xff]
  %v1142 = vld [vmem:[#allocation4 + $0x8] sm:$0xff]
  %v1143 = vld [vmem:[#allocation4 + $0x10] sm:$0xff]
  %v1144 = vld [vmem:[#allocation4 + $0x18] sm:$0xff]
  %v1145 = vld [vmem:[#allocation4 + $0x20] sm:$0xff]
  %v1146 = vld [vmem:[#allocation4 + $0x28] sm:$0xff]
  %v1147 = vld [vmem:[#allocation4 + $0x30] sm:$0xff]
  %v1148 = vld [vmem:[#allocation4 + $0x38] sm:$0xff]
  %v1149 = vpack.c.bf16 %v1142, %v1141
  %v1150 = vpack.c.bf16 %v1144, %v1143
  %v1151 = vpack.c.bf16 %v1146, %v1145
  %v1152 = vpack.c.bf16 %v1148, %v1147
  %v1153 = vld [vmem:[%s4] sm:$0xff]
  %v1154 = vld [vmem:[%s4 + $0x8] sm:$0xff]
  %v1155 = vld [vmem:[%s4 + $0x10] sm:$0xff]
  %v1156 = vld [vmem:[%s4 + $0x18] sm:$0xff]
  %v1157 = vld [vmem:[%s4 + $0x20] sm:$0xff]
  %v1158 = vld [vmem:[%s4 + $0x28] sm:$0xff]
  %v1159 = vld [vmem:[%s4 + $0x30] sm:$0xff]
  %v1160 = vld [vmem:[%s4 + $0x38] sm:$0xff]
  %v1161 = vld [vmem:[%s4 + $0x40] sm:$0xff]
  %v1162 = vld [vmem:[%s4 + $0x48] sm:$0xff]
  %v1163 = vld [vmem:[%s4 + $0x50] sm:$0xff]
  %v1164 = vld [vmem:[%s4 + $0x58] sm:$0xff]
  %v1165 = vld [vmem:[%s4 + $0x60] sm:$0xff]
  %v1166 = vld [vmem:[%s4 + $0x68] sm:$0xff]
  %v1167 = vld [vmem:[%s4 + $0x70] sm:$0xff]
  %v1168 = vld [vmem:[%s4 + $0x78] sm:$0xff]
  %v1169 = vld [vmem:[%s4 + $0x80] sm:$0xff]
  %v1170 = vld [vmem:[%s4 + $0x88] sm:$0xff]
  %v1171 = vld [vmem:[%s4 + $0x90] sm:$0xff]
  %v1172 = vld [vmem:[%s4 + $0x98] sm:$0xff]
  %v1173 = vld [vmem:[%s4 + $0xa0] sm:$0xff]
  %v1174 = vld [vmem:[%s4 + $0xa8] sm:$0xff]
  %v1175 = vld [vmem:[%s4 + $0xb0] sm:$0xff]
  %v1176 = vld [vmem:[%s4 + $0xb8] sm:$0xff]
  %v1177 = vld [vmem:[%s4 + $0xc0] sm:$0xff]
  %v1178 = vld [vmem:[%s4 + $0xc8] sm:$0xff]
  %v1179 = vld [vmem:[%s4 + $0xd0] sm:$0xff]
  %v1180 = vld [vmem:[%s4 + $0xd8] sm:$0xff]
  %v1181 = vld [vmem:[%s4 + $0xe0] sm:$0xff]
  %v1182 = vld [vmem:[%s4 + $0xe8] sm:$0xff]
  %v1183 = vld [vmem:[%s4 + $0xf0] sm:$0xff]
  %v1184 = vld [vmem:[%s4 + $0xf8] sm:$0xff]
  %v1185 = vld [vmem:[%s5] sm:$0xf]
  %v1187 = vlaneseq
  %v1188 = vshrl.u32 %v1187, 7
  %v1189 = vsub.s32 0, %v1188
  %v1190 = vrot.slane %v1185, %v1189
  %v1191 = vlaneseq
  %v1192 = vshrl.u32 %v1191, 7
  %v1193 = vsub.s32 1, %v1192
  %v1194 = vrot.slane %v1185, %v1193
  %v1195 = vlaneseq
  %v1196 = vshrl.u32 %v1195, 7
  %v1197 = vsub.s32 2, %v1196
  %v1198 = vrot.slane %v1185, %v1197
  %v1199 = vlaneseq
  %v1200 = vshrl.u32 %v1199, 7
  %v1201 = vsub.s32 3, %v1200
  %v1202 = vrot.slane %v1185, %v1201
  %v1239 = vunpack.c.l.b16 %v1153
  %v1240 = vunpack.c.h.b16 %v1153
  %v1241 = vunpack.c.l.b16 %v1154
  %v1242 = vunpack.c.h.b16 %v1154
  %v1243 = vunpack.c.l.b16 %v1155
  %v1244 = vunpack.c.h.b16 %v1155
  %v1245 = vunpack.c.l.b16 %v1156
  %v1246 = vunpack.c.h.b16 %v1156
  %v1247 = vunpack.c.l.b16 %v1157
  %v1248 = vunpack.c.h.b16 %v1157
  %v1249 = vunpack.c.l.b16 %v1158
  %v1250 = vunpack.c.h.b16 %v1158
  %v1251 = vunpack.c.l.b16 %v1159
  %v1252 = vunpack.c.h.b16 %v1159
  %v1253 = vunpack.c.l.b16 %v1160
  %v1254 = vunpack.c.h.b16 %v1160
  %v1255 = vunpack.c.l.b16 %v1161
  %v1256 = vunpack.c.h.b16 %v1161
  %v1257 = vunpack.c.l.b16 %v1162
  %v1258 = vunpack.c.h.b16 %v1162
  %v1259 = vunpack.c.l.b16 %v1163
  %v1260 = vunpack.c.h.b16 %v1163
  %v1261 = vunpack.c.l.b16 %v1164
  %v1262 = vunpack.c.h.b16 %v1164
  %v1263 = vunpack.c.l.b16 %v1165
  %v1264 = vunpack.c.h.b16 %v1165
  %v1265 = vunpack.c.l.b16 %v1166
  %v1266 = vunpack.c.h.b16 %v1166
  %v1267 = vunpack.c.l.b16 %v1167
  %v1268 = vunpack.c.h.b16 %v1167
  %v1269 = vunpack.c.l.b16 %v1168
  %v1270 = vunpack.c.h.b16 %v1168
  %v1271 = vunpack.c.l.b16 %v1169
  %v1272 = vunpack.c.h.b16 %v1169
  %v1273 = vunpack.c.l.b16 %v1170
  %v1274 = vunpack.c.h.b16 %v1170
  %v1275 = vunpack.c.l.b16 %v1171
  %v1276 = vunpack.c.h.b16 %v1171
  %v1277 = vunpack.c.l.b16 %v1172
  %v1278 = vunpack.c.h.b16 %v1172
  %v1279 = vunpack.c.l.b16 %v1173
  %v1280 = vunpack.c.h.b16 %v1173
  %v1281 = vunpack.c.l.b16 %v1174
  %v1282 = vunpack.c.h.b16 %v1174
  %v1283 = vunpack.c.l.b16 %v1175
  %v1284 = vunpack.c.h.b16 %v1175
  %v1285 = vunpack.c.l.b16 %v1176
  %v1286 = vunpack.c.h.b16 %v1176
  %v1287 = vunpack.c.l.b16 %v1177
  %v1288 = vunpack.c.h.b16 %v1177
  %v1289 = vunpack.c.l.b16 %v1178
  %v1290 = vunpack.c.h.b16 %v1178
  %v1291 = vunpack.c.l.b16 %v1179
  %v1292 = vunpack.c.h.b16 %v1179
  %v1293 = vunpack.c.l.b16 %v1180
  %v1294 = vunpack.c.h.b16 %v1180
  %v1295 = vunpack.c.l.b16 %v1181
  %v1296 = vunpack.c.h.b16 %v1181
  %v1297 = vunpack.c.l.b16 %v1182
  %v1298 = vunpack.c.h.b16 %v1182
  %v1299 = vunpack.c.l.b16 %v1183
  %v1300 = vunpack.c.h.b16 %v1183
  %v1301 = vunpack.c.l.b16 %v1184
  %v1302 = vunpack.c.h.b16 %v1184
  %v1303 = vpack.c.b16 %v1243, %v1239
  %v1304 = vpack.c.b16 %v1244, %v1240
  %v1305 = vpack.c.b16 %v1245, %v1241
  %v1306 = vpack.c.b16 %v1246, %v1242
  %v1307 = vpack.c.b16 %v1251, %v1247
  %v1308 = vpack.c.b16 %v1252, %v1248
  %v1309 = vpack.c.b16 %v1253, %v1249
  %v1310 = vpack.c.b16 %v1254, %v1250
  %v1311 = vpack.c.b16 %v1259, %v1255
  %v1312 = vpack.c.b16 %v1260, %v1256
  %v1313 = vpack.c.b16 %v1261, %v1257
  %v1314 = vpack.c.b16 %v1262, %v1258
  %v1315 = vpack.c.b16 %v1267, %v1263
  %v1316 = vpack.c.b16 %v1268, %v1264
  %v1317 = vpack.c.b16 %v1269, %v1265
  %v1318 = vpack.c.b16 %v1270, %v1266
  %v1319 = vpack.c.b16 %v1275, %v1271
  %v1320 = vpack.c.b16 %v1276, %v1272
  %v1321 = vpack.c.b16 %v1277, %v1273
  %v1322 = vpack.c.b16 %v1278, %v1274
  %v1323 = vpack.c.b16 %v1283, %v1279
  %v1324 = vpack.c.b16 %v1284, %v1280
  %v1325 = vpack.c.b16 %v1285, %v1281
  %v1326 = vpack.c.b16 %v1286, %v1282
  %v1327 = vpack.c.b16 %v1291, %v1287
  %v1328 = vpack.c.b16 %v1292, %v1288
  %v1329 = vpack.c.b16 %v1293, %v1289
  %v1330 = vpack.c.b16 %v1294, %v1290
  %v1331 = vpack.c.b16 %v1299, %v1295
  %v1332 = vpack.c.b16 %v1300, %v1296
  %v1333 = vpack.c.b16 %v1301, %v1297
  %v1334 = vpack.c.b16 %v1302, %v1298
  %1367 = vmatprep.subr.bf16.mxu0 %v1304
  %1368 = vmatpush1.bf16.msra.mxu0 %v1303
  %1369 = vmatprep.subr.bf16.mxu0 %v1308
  %1370 = vmatpush1.bf16.msra.mxu0 %v1307
  %1371 = vmatprep.subr.bf16.mxu0 %v1312
  %1372 = vmatpush1.bf16.msra.mxu0 %v1311
  %1373 = vmatprep.subr.bf16.mxu0 %v1316
  %1374 = vmatpush1.bf16.msra.mxu0 %v1315
  %1375 = vmatprep.subr.bf16.mxu0 %v1320
  %1376 = vmatpush1.bf16.msra.mxu0 %v1319
  %1377 = vmatprep.subr.bf16.mxu0 %v1324
  %1378 = vmatpush1.bf16.msra.mxu0 %v1323
  %1379 = vmatprep.subr.bf16.mxu0 %v1328
  %1380 = vmatpush1.bf16.msra.mxu0 %v1327
  %1381 = vmatprep.subr.bf16.mxu0 %v1332
  %1382 = vmatpush1.bf16.msra.mxu0 %v1331
  %1383 = vmatprep.subr.bf16.mxu0 0
  %1384 = vmatpush1.bf16.msra.mxu0 0
  %1385 = vmatprep.subr.bf16.mxu0 0
  %1386 = vmatpush1.bf16.msra.mxu0 0
  %1387 = vmatprep.subr.bf16.mxu0 0
  %1388 = vmatpush1.bf16.msra.mxu0 0
  %1389 = vmatprep.subr.bf16.mxu0 0
  %1390 = vmatpush1.bf16.msra.mxu0 0
  %1391 = vmatprep.subr.bf16.mxu0 0
  %1392 = vmatpush1.bf16.msra.mxu0 0
  %1393 = vmatprep.subr.bf16.mxu0 0
  %1394 = vmatpush1.bf16.msra.mxu0 0
  %1395 = vmatprep.subr.bf16.mxu0 0
  %1396 = vmatpush1.bf16.msra.mxu0 0
  %1397 = vmatprep.subr.bf16.mxu0 0
  %1398 = vmatpush1.bf16.msra.mxu0 0
  %1399 = vmatprep.mubr.bf16.mxu0 0
  %1400 = vmatmul.mubr.bf16.gmra.mrb[0].mxu0 %v1149
  %v1401 = vpop.f32.mrb[0].mxu0
  %v1402 = vadd.f32 %v1190, %v1401
  %v1403 = vpop.f32.mrb[0].mxu0
  %v1404 = vadd.f32 %v1194, %v1403
  %v1405 = vpop.f32.mrb[0].mxu0
  %v1406 = vadd.f32 %v1190, %v1405
  %v1407 = vpop.f32.mrb[0].mxu0
  %v1408 = vadd.f32 %v1194, %v1407
  %1409 = vmatprep.mubr.bf16.mxu0 0
  %1410 = vmatmul.mubr.bf16.gmra.mrb[0].mxu0 %v1150
  %v1411 = vpop.f32.mrb[0].mxu0
  %v1412 = vadd.f32 %v1190, %v1411
  %v1413 = vpop.f32.mrb[0].mxu0
  %v1414 = vadd.f32 %v1194, %v1413
  %v1415 = vpop.f32.mrb[0].mxu0
  %v1416 = vadd.f32 %v1190, %v1415
  %v1417 = vpop.f32.mrb[0].mxu0
  %v1418 = vadd.f32 %v1194, %v1417
  %1419 = vmatprep.mubr.bf16.mxu0 0
  %1420 = vmatmul.mubr.bf16.gmra.mrb[0].mxu0 %v1151
  %v1421 = vpop.f32.mrb[0].mxu0
  %v1422 = vadd.f32 %v1190, %v1421
  %v1423 = vpop.f32.mrb[0].mxu0
  %v1424 = vadd.f32 %v1194, %v1423
  %v1425 = vpop.f32.mrb[0].mxu0
  %v1426 = vadd.f32 %v1190, %v1425
  %v1427 = vpop.f32.mrb[0].mxu0
  %v1428 = vadd.f32 %v1194, %v1427
  %1429 = vmatprep.mubr.bf16.mxu0 0
  %1430 = vmatmul.mubr.bf16.gmra.mrb[0].mxu0 %v1152
  %v1431 = vpop.f32.mrb[0].mxu0
  %v1432 = vadd.f32 %v1190, %v1431
  %v1433 = vpop.f32.mrb[0].mxu0
  %v1434 = vadd.f32 %v1194, %v1433
  %v1435 = vpop.f32.mrb[0].mxu0
  %v1436 = vadd.f32 %v1190, %v1435
  %v1437 = vpop.f32.mrb[0].mxu0
  %v1438 = vadd.f32 %v1194, %v1437
  %1439 = vdwg.mxu0
  %1440 = vmatprep.subr.bf16.mxu0 %v1306
  %1441 = vmatpush1.bf16.msra.mxu0 %v1305
  %1442 = vmatprep.subr.bf16.mxu0 %v1310
  %1443 = vmatpush1.bf16.msra.mxu0 %v1309
  %1444 = vmatprep.subr.bf16.mxu0 %v1314
  %1445 = vmatpush1.bf16.msra.mxu0 %v1313
  %1446 = vmatprep.subr.bf16.mxu0 %v1318
  %1447 = vmatpush1.bf16.msra.mxu0 %v1317
  %1448 = vmatprep.subr.bf16.mxu0 %v1322
  %1449 = vmatpush1.bf16.msra.mxu0 %v1321
  %1450 = vmatprep.subr.bf16.mxu0 %v1326
  %1451 = vmatpush1.bf16.msra.mxu0 %v1325
  %1452 = vmatprep.subr.bf16.mxu0 %v1330
  %1453 = vmatpush1.bf16.msra.mxu0 %v1329
  %1454 = vmatprep.subr.bf16.mxu0 %v1334
  %1455 = vmatpush1.bf16.msra.mxu0 %v1333
  %1456 = vmatprep.subr.bf16.mxu0 0
  %1457 = vmatpush1.bf16.msra.mxu0 0
  %1458 = vmatprep.subr.bf16.mxu0 0
  %1459 = vmatpush1.bf16.msra.mxu0 0
  %1460 = vmatprep.subr.bf16.mxu0 0
  %1461 = vmatpush1.bf16.msra.mxu0 0
  %1462 = vmatprep.subr.bf16.mxu0 0
  %1463 = vmatpush1.bf16.msra.mxu0 0
  %1464 = vmatprep.subr.bf16.mxu0 0
  %1465 = vmatpush1.bf16.msra.mxu0 0
  %1466 = vmatprep.subr.bf16.mxu0 0
  %1467 = vmatpush1.bf16.msra.mxu0 0
  %1468 = vmatprep.subr.bf16.mxu0 0
  %1469 = vmatpush1.bf16.msra.mxu0 0
  %1470 = vmatprep.subr.bf16.mxu0 0
  %1471 = vmatpush1.bf16.msra.mxu0 0
  %1472 = vmatprep.mubr.bf16.mxu0 0
  %1473 = vmatmul.mubr.bf16.gmra.mrb[0].mxu0 %v1149
  %v1474 = vpop.f32.mrb[0].mxu0
  %v1475 = vadd.f32 %v1198, %v1474
  %v1476 = vpop.f32.mrb[0].mxu0
  %v1477 = vadd.f32 %v1202, %v1476
  %v1478 = vpop.f32.mrb[0].mxu0
  %v1479 = vadd.f32 %v1198, %v1478
  %v1480 = vpop.f32.mrb[0].mxu0
  %v1481 = vadd.f32 %v1202, %v1480
  %1482 = vmatprep.mubr.bf16.mxu0 0
  %1483 = vmatmul.mubr.bf16.gmra.mrb[0].mxu0 %v1150
  %v1484 = vpop.f32.mrb[0].mxu0
  %v1485 = vadd.f32 %v1198, %v1484
  %v1486 = vpop.f32.mrb[0].mxu0
  %v1487 = vadd.f32 %v1202, %v1486
  %v1488 = vpop.f32.mrb[0].mxu0
  %v1489 = vadd.f32 %v1198, %v1488
  %v1490 = vpop.f32.mrb[0].mxu0
  %v1491 = vadd.f32 %v1202, %v1490
  %1492 = vmatprep.mubr.bf16.mxu0 0
  %1493 = vmatmul.mubr.bf16.gmra.mrb[0].mxu0 %v1151
  %v1494 = vpop.f32.mrb[0].mxu0
  %v1495 = vadd.f32 %v1198, %v1494
  %v1496 = vpop.f32.mrb[0].mxu0
  %v1497 = vadd.f32 %v1202, %v1496
  %v1498 = vpop.f32.mrb[0].mxu0
  %v1499 = vadd.f32 %v1198, %v1498
  %v1500 = vpop.f32.mrb[0].mxu0
  %v1501 = vadd.f32 %v1202, %v1500
  %1502 = vmatprep.mubr.bf16.mxu0 0
  %1503 = vmatmul.mubr.bf16.gmra.mrb[0].mxu0 %v1152
  %v1504 = vpop.f32.mrb[0].mxu0
  %v1505 = vadd.f32 %v1198, %v1504
  %v1506 = vpop.f32.mrb[0].mxu0
  %v1507 = vadd.f32 %v1202, %v1506
  %v1508 = vpop.f32.mrb[0].mxu0
  %v1509 = vadd.f32 %v1198, %v1508
  %v1510 = vpop.f32.mrb[0].mxu0
  %v1511 = vadd.f32 %v1202, %v1510
  %1512 = vdwg.mxu0
  %v1513 = vpack.c.bf16 %v1402, %v1402
  %v1514 = vpack.c.bf16 %v1404, %v1404
  %v1515 = vpack.c.bf16 %v1475, %v1475
  %v1516 = vpack.c.bf16 %v1477, %v1477
  %v1517 = vpack.c.bf16 %v1406, %v1406
  %v1518 = vpack.c.bf16 %v1408, %v1408
  %v1519 = vpack.c.bf16 %v1479, %v1479
  %v1520 = vpack.c.bf16 %v1481, %v1481
  %v1521 = vpack.c.bf16 %v1412, %v1412
  %v1522 = vpack.c.bf16 %v1414, %v1414
  %v1523 = vpack.c.bf16 %v1485, %v1485
  %v1524 = vpack.c.bf16 %v1487, %v1487
  %v1525 = vpack.c.bf16 %v1416, %v1416
  %v1526 = vpack.c.bf16 %v1418, %v1418
  %v1527 = vpack.c.bf16 %v1489, %v1489
  %v1528 = vpack.c.bf16 %v1491, %v1491
  %v1529 = vpack.c.bf16 %v1422, %v1422
  %v1530 = vpack.c.bf16 %v1424, %v1424
  %v1531 = vpack.c.bf16 %v1495, %v1495
  %v1532 = vpack.c.bf16 %v1497, %v1497
  %v1533 = vpack.c.bf16 %v1426, %v1426
  %v1534 = vpack.c.bf16 %v1428, %v1428
  %v1535 = vpack.c.bf16 %v1499, %v1499
  %v1536 = vpack.c.bf16 %v1501, %v1501
  %v1537 = vpack.c.bf16 %v1432, %v1432
  %v1538 = vpack.c.bf16 %v1434, %v1434
  %v1539 = vpack.c.bf16 %v1505, %v1505
  %v1540 = vpack.c.bf16 %v1507, %v1507
  %v1541 = vpack.c.bf16 %v1436, %v1436
  %v1542 = vpack.c.bf16 %v1438, %v1438
  %v1543 = vpack.c.bf16 %v1509, %v1509
  %v1544 = vpack.c.bf16 %v1511, %v1511
  %v1577 = vunpack.c.l.b16 %v1513
  %v1578 = vunpack.c.l.b16 %v1514
  %v1579 = vunpack.c.l.b16 %v1515
  %v1580 = vunpack.c.l.b16 %v1516
  %v1581 = vunpack.c.l.b16 %v1517
  %v1582 = vunpack.c.l.b16 %v1518
  %v1583 = vunpack.c.l.b16 %v1519
  %v1584 = vunpack.c.l.b16 %v1520
  %v1585 = vunpack.c.l.b16 %v1521
  %v1586 = vunpack.c.l.b16 %v1522
  %v1587 = vunpack.c.l.b16 %v1523
  %v1588 = vunpack.c.l.b16 %v1524
  %v1589 = vunpack.c.l.b16 %v1525
  %v1590 = vunpack.c.l.b16 %v1526
  %v1591 = vunpack.c.l.b16 %v1527
  %v1592 = vunpack.c.l.b16 %v1528
  %v1593 = vunpack.c.l.b16 %v1529
  %v1594 = vunpack.c.l.b16 %v1530
  %v1595 = vunpack.c.l.b16 %v1531
  %v1596 = vunpack.c.l.b16 %v1532
  %v1597 = vunpack.c.l.b16 %v1533
  %v1598 = vunpack.c.l.b16 %v1534
  %v1599 = vunpack.c.l.b16 %v1535
  %v1600 = vunpack.c.l.b16 %v1536
  %v1601 = vunpack.c.l.b16 %v1537
  %v1602 = vunpack.c.l.b16 %v1538
  %v1603 = vunpack.c.l.b16 %v1539
  %v1604 = vunpack.c.l.b16 %v1540
  %v1605 = vunpack.c.l.b16 %v1541
  %v1606 = vunpack.c.l.b16 %v1542
  %v1607 = vunpack.c.l.b16 %v1543
  %v1608 = vunpack.c.l.b16 %v1544
  %v1609 = vpack.c.b16 %v1578, %v1577
  %v1610 = vpack.c.b16 %v1580, %v1579
  %v1611 = vpack.c.b16 %v1582, %v1581
  %v1612 = vpack.c.b16 %v1584, %v1583
  %v1613 = vpack.c.b16 %v1586, %v1585
  %v1614 = vpack.c.b16 %v1588, %v1587
  %v1615 = vpack.c.b16 %v1590, %v1589
  %v1616 = vpack.c.b16 %v1592, %v1591
  %v1617 = vpack.c.b16 %v1594, %v1593
  %v1618 = vpack.c.b16 %v1596, %v1595
  %v1619 = vpack.c.b16 %v1598, %v1597
  %v1620 = vpack.c.b16 %v1600, %v1599
  %v1621 = vpack.c.b16 %v1602, %v1601
  %v1622 = vpack.c.b16 %v1604, %v1603
  %v1623 = vpack.c.b16 %v1606, %v1605
  %v1624 = vpack.c.b16 %v1608, %v1607
  %1641 = vst [vmem:[%s6] sm:$0xff] %v1609
  %1642 = vst [vmem:[%s6 + $0x8] sm:$0xff] %v1610
  %1643 = vst [vmem:[%s6 + $0x10] sm:$0xff] %v1611
  %1644 = vst [vmem:[%s6 + $0x18] sm:$0xff] %v1612
  %1645 = vst [vmem:[%s6 + $0x20] sm:$0xff] %v1613
  %1646 = vst [vmem:[%s6 + $0x28] sm:$0xff] %v1614
  %1647 = vst [vmem:[%s6 + $0x30] sm:$0xff] %v1615
  %1648 = vst [vmem:[%s6 + $0x38] sm:$0xff] %v1616
  %1649 = vst [vmem:[%s6 + $0x40] sm:$0xff] %v1617
  %1650 = vst [vmem:[%s6 + $0x48] sm:$0xff] %v1618
  %1651 = vst [vmem:[%s6 + $0x50] sm:$0xff] %v1619
  %1652 = vst [vmem:[%s6 + $0x58] sm:$0xff] %v1620
  %1653 = vst [vmem:[%s6 + $0x60] sm:$0xff] %v1621
  %1654 = vst [vmem:[%s6 + $0x68] sm:$0xff] %v1622
  %1655 = vst [vmem:[%s6 + $0x70] sm:$0xff] %v1623
  %1656 = vst [vmem:[%s6 + $0x78] sm:$0xff] %v1624
  // Predicated region
  $region30: #{lstm_enc_forward.2} parent=0 // pred_check
    %p1657 = pneg %p27
  $region31: #{lstm_enc_forward.2} parent=0 // pred_check_branch
    %1659 = sbr.rel (%p1657) target = $region33
  $region32: #{lstm_enc_forward.2} parent=0 // pred_region
    %1660 = vst [vmem:[%s7] sm:$0xff] %v1136
    %1661 = vst [vmem:[%s8] sm:$0xff] %v1134
  $region33: #{lstm_enc_forward.2} parent=0 // pred_fallthru
    _
  // Predicated region
  $region34: #{lstm_enc_forward.2} parent=0 // pred_check
    _
  $region35: #{lstm_enc_forward.2} parent=0 // pred_check_branch
    %1663 = sbr.rel (0) target = $region37
  $region36: #{lstm_enc_forward.2} parent=0 // pred_region
    _
  $region37: #{lstm_enc_forward.2} parent=0 // pred_fallthru
    _
  // Predicated region
  $region38: #{lstm_enc_forward.2} parent=0 // pred_check
    _
  $region39: #{lstm_enc_forward.2} parent=0 // pred_check_branch
    %1665 = sbr.rel (0) target = $region41
  $region40: #{lstm_enc_forward.2} parent=0 // pred_region
    _
  $region41: #{lstm_enc_forward.2} parent=0 // pred_fallthru
    _
  // Predicated region
  $region42: #{lstm_enc_forward.2} parent=0 // pred_check
    _
  $region43: #{lstm_enc_forward.2} parent=0 // pred_check_branch
    %1667 = sbr.rel (0) target = $region45
  $region44: #{lstm_enc_forward.2} parent=0 // pred_region
    _
  $region45: #{lstm_enc_forward.2} parent=0 // pred_fallthru
    _
  // Predicated region
  $region46: #{lstm_enc_forward.2} parent=0 // pred_check
    _
  $region47: #{lstm_enc_forward.2} parent=0 // pred_check_branch
    %1669 = sbr.rel (0) target = $region49
  $region48: #{lstm_enc_forward.2} parent=0 // pred_region
    _
  $region49: #{lstm_enc_forward.2} parent=0 // pred_fallthru
    _
  // Predicated region
  $region50: #{lstm_enc_forward.2} parent=0 // pred_check
    _
  $region51: #{lstm_enc_forward.2} parent=0 // pred_check_branch
    %1671 = sbr.rel (0) target = $region53
  $region52: #{lstm_enc_forward.2} parent=0 // pred_region
    _
  $region53: #{lstm_enc_forward.2} parent=0 // pred_fallthru
    _
  // Predicated region
  $region54: #{lstm_enc_forward.2} parent=0 // pred_check
    _
  $region55: #{lstm_enc_forward.2} parent=0 // pred_check_branch
    %1673 = sbr.rel (0) target = $region57
  $region56: #{lstm_enc_forward.2} parent=0 // pred_region
    _
  $region57: #{lstm_enc_forward.2} parent=0 // pred_fallthru
    _

</llo_original>
